<compile_context>
chip_gen: v5e
topology: v5e:2x2
jax: 0.10.0
libtpu: 0.0.40
codegen_flags: <defaults>
</compile_context>

<pallas_src>
import functools

import jax
import jax.numpy as jnp
from jax import lax
from jax.experimental import pallas as pl
from jax.experimental.pallas import tpu as pltpu

KS = 5    # conv kernel size
PAD = 2   # conv padding
OFF = 64  # flat (lane) halo of the activation scratch; must be >= PAD*W + PAD


def mnet_kernel(x_ref, w1_ref, b1_ref, w2_ref, b2_ref, tau_ref, o_ref,
                pf_ref, patch_ref, *, H, W, L):
    """Full Mnet forward for one batch element.

    x_ref     : (1, C, H*W)        input, channels on sublanes, spatial on lanes
    w1,w2     : (L, C, KS*KS*C)    BN-folded, tap-stacked conv weights
    b1,b2     : (L, C, 1)          BN-folded biases
    tau       : (C, 1)             per-channel threshold
    o_ref     : (1, C, H*W)        relu( ... - tau)
    pf_ref    : (C, OFF+H*W+OFF)   zero-halo flat activation scratch (VMEM)
    patch_ref : (KS*KS*C, H*W)     stacked-patch matrix scratch (VMEM)
    """
    HW = H * W
    C = x_ref.shape[1]

    # Zero ONLY the two halo regions (the interior is fully rewritten before
    # every conv).  The zero halo implements the conv's vertical zero padding.
    pf_ref[:, :OFF] = jnp.zeros((C, OFF), jnp.float32)
    pf_ref[:, OFF + HW:] = jnp.zeros((C, OFF), jnp.float32)

    # Column-validity masks for the dx taps (fix row-wrap of the flattened
    # spatial axis).  Built once, reused by every conv of every layer.
    col = lax.broadcasted_iota(jnp.int32, (C, HW), 1) % W
    masks = []
    for dx in range(KS):
        d = dx - PAD
        masks.append(None if d == 0 else ((col + d >= 0) & (col + d < W)))

    def conv5x5(w_ref, b_ref, l):
        # Build the (25*C, HW) stacked-patch matrix: one shifted, dx-masked
        # slice of the padded flat activation per tap (tap = dy*KS + dx, the
        # same tap-major order the host used to stack the weights).
        for dy in range(KS):
            for dx in range(KS):
                s = (dy - PAD) * W + (dx - PAD)
                patch = pf_ref[:, OFF + s: OFF + s + HW]          # (C, HW)
                if masks[dx] is not None:                         # zero wrap cols
                    patch = jnp.where(masks[dx], patch, 0.0)
                t = dy * KS + dx
                patch_ref[t * C:(t + 1) * C, :] = patch
        # Single MXU contraction over K = 25*C.
        return jnp.dot(w_ref[l], patch_ref[...],
                       preferred_element_type=jnp.float32) + b_ref[l]

    a = x_ref[0].astype(jnp.float32)                              # (C, HW)

    for l in range(L):                                            # fused blocks
        pf_ref[:, OFF:OFF + HW] = a
        y1 = jnp.maximum(conv5x5(w1_ref, b1_ref, l), 0.0)         # conv1+BN+ReLU
        pf_ref[:, OFF:OFF + HW] = y1
        y2 = conv5x5(w2_ref, b2_ref, l)                           # conv2+BN
        a = jnp.maximum(a + y2, 0.0)                              # residual+ReLU

    # Final Mnet step:  M = relu(M - tau)
    o_ref[0] = jnp.maximum(a - tau_ref[...], 0.0).astype(o_ref.dtype)


def mnet_pallas(x2, w1, b1, w2, b2, tau, *, H, W):
    """x2: (N, C, H*W) float32 (flattened NCHW).  Returns (N, C, H*W)."""
    N, C, HW = x2.shape
    L = w1.shape[0]
    S = OFF + HW + OFF
    K = KS * KS * C
    kernel = functools.partial(mnet_kernel, H=H, W=W, L=L)

    flops = 2 * N * L * 2 * K * C * HW                    # 2 convs / layer
    bytes_accessed = 4 * (2 * N * C * HW + w1.size + w2.size
                          + b1.size + b2.size + tau.size)

    return pl.pallas_call(
        kernel,
        out_shape=jax.ShapeDtypeStruct((N, C, HW), x2.dtype),
        grid=(N,),
        in_specs=[
            pl.BlockSpec((1, C, HW), lambda n: (n, 0, 0)),
            pl.BlockSpec((L, C, K), lambda n: (0, 0, 0)),
            pl.BlockSpec((L, C, 1), lambda n: (0, 0, 0)),
            pl.BlockSpec((L, C, K), lambda n: (0, 0, 0)),
            pl.BlockSpec((L, C, 1), lambda n: (0, 0, 0)),
            pl.BlockSpec((C, 1), lambda n: (0, 0)),
        ],
        out_specs=pl.BlockSpec((1, C, HW), lambda n: (n, 0, 0)),
        scratch_shapes=[pltpu.VMEM((C, S), jnp.float32),
                        pltpu.VMEM((K, HW), jnp.float32)],
        compiler_params=pltpu.CompilerParams(dimension_semantics=("parallel",)),
        cost_estimate=pl.CostEstimate(flops=flops, transcendentals=0,
                                      bytes_accessed=bytes_accessed),
    )(x2, w1, b1, w2, b2, tau)


@jax.jit
def mnet_forward(x_nchw, params):
    """Full Mnet forward.  x_nchw: (N, C, H, W) like PyTorch."""
    N, C, H, W = x_nchw.shape
    x2 = x_nchw.reshape(N, C, H * W)              # free contiguous reshape
    out2 = mnet_pallas(x2, params["w1"], params["b1"], params["w2"],
                       params["b2"], params["tau"], H=H, W=W)
    return out2.reshape(N, C, H, W)


# ---------------------------------------------------------------------------
# Parameter construction (deterministic, synthetic weights — no checkpoints)
# ---------------------------------------------------------------------------
def fold_bn(w_oihw, b, gamma, beta, mean, var, eps=1e-5):
    """Fold inference-mode BatchNorm into the conv, tap-stacked for the kernel.
    Returns (w (Cout, KS*KS*Cin), bias (Cout, 1)); column order tap*Cin + cin
    with tap = ky*KS + kx, matching the in-kernel patch stacking."""
    scale = gamma / jnp.sqrt(var + eps)                          # (Cout,)
    w_f = w_oihw * scale[:, None, None, None]                    # scale per Cout
    b_f = (b - mean) * scale + beta                              # (Cout,)
    O, I = w_f.shape[0], w_f.shape[1]
    w_s = jnp.transpose(w_f, (0, 2, 3, 1)).reshape(O, KS * KS * I)
    return w_s.astype(jnp.float32), b_f.reshape(-1, 1).astype(jnp.float32)


def make_params(key, C, L, mtau=0.1):
    w1s, b1s, w2s, b2s = [], [], [], []
    for _ in range(L):
        for lst_w, lst_b in ((w1s, b1s), (w2s, b2s)):
            key, kw, kb, kg, kbe, km, kv = jax.random.split(key, 7)
            w = jax.random.normal(kw, (C, C, KS, KS), jnp.float32) * 0.1   # OIHW
            b = jax.random.normal(kb, (C,), jnp.float32) * 0.1
            gamma = 1.0 + 0.1 * jax.random.normal(kg, (C,), jnp.float32)
            beta = 0.1 * jax.random.normal(kbe, (C,), jnp.float32)
            mean = 0.1 * jax.random.normal(km, (C,), jnp.float32)
            var = 1.0 + 0.1 * jax.random.uniform(kv, (C,), jnp.float32)
            wf, bf = fold_bn(w, b, gamma, beta, mean, var)
            lst_w.append(wf)
            lst_b.append(bf)
    return {
        "w1": jnp.stack(w1s), "b1": jnp.stack(b1s),
        "w2": jnp.stack(w2s), "b2": jnp.stack(b2s),
        "tau": jnp.full((C, 1), mtau, jnp.float32),   # nn.Parameter, per-channel
    }


# ---------------------------------------------------------------------------
# Pure-JAX reference (same BN-folded params) for correctness checking
# ---------------------------------------------------------------------------
def conv5x5_ref(x_nhwc, w_s, b):
    O = w_s.shape[0]
    I = w_s.shape[1] // (KS * KS)
    w_hwio = jnp.transpose(w_s.reshape(O, KS, KS, I), (1, 2, 3, 0))   # HWIO
    y = lax.conv_general_dilated(
        x_nhwc, w_hwio, window_strides=(1, 1),
        padding=((PAD, PAD), (PAD, PAD)),
        dimension_numbers=("NHWC", "HWIO", "NHWC"),
        precision=lax.Precision.HIGHEST)
    return y + b.reshape(1, 1, 1, -1)


def mnet_forward_ref(x_nchw, params):
    x = jnp.transpose(x_nchw, (0, 2, 3, 1))        # NCHW -> NHWC
    L = params["w1"].shape[0]
    for l in range(L):
        y = jnp.maximum(conv5x5_ref(x, params["w1"][l], params["b1"][l]), 0.0)
        y = conv5x5_ref(y, params["w2"][l], params["b2"][l])
        x = jnp.maximum(x + y, 0.0)
    x = jnp.maximum(x - params["tau"].reshape(1, 1, 1, -1), 0.0)
    return jnp.transpose(x, (0, 3, 1, 2))          # NHWC -> NCHW


if __name__ == "__main__":
    # args.Np = 4 channels ; args.num_res = 2 ; args.Mtau = 0.1
    N, C, H, W = 2, 4, 16, 16
    L = 2

    key = jax.random.PRNGKey(0)
    kx, kp = jax.random.split(key)
    x = jax.random.normal(kx, (N, C, H, W), jnp.float32)    # NCHW like PyTorch
    params = make_params(kp, C, L)

    out = mnet_forward(x, params)
    out = jax.block_until_ready(out)
    assert out.shape == (N, C, H, W), out.shape

    ref = jax.block_until_ready(mnet_forward_ref(x, params))
    assert jnp.allclose(out, ref, rtol=1e-3, atol=1e-3), (
        float(jnp.max(jnp.abs(out - ref))))

    print("KERNEL_OK")
</pallas_src>

<mosaic_0001>
module attributes {stable_mosaic.version = 11 : i64} {
  func.func @mnet_kernel(%arg0: i32, %arg1: memref<1x4x256xf32, #tpu.memory_space<vmem>>, %arg2: memref<2x4x100xf32, #tpu.memory_space<vmem>>, %arg3: memref<2x4x1xf32, #tpu.memory_space<vmem>>, %arg4: memref<2x4x100xf32, #tpu.memory_space<vmem>>, %arg5: memref<2x4x1xf32, #tpu.memory_space<vmem>>, %arg6: memref<4x1xf32, #tpu.memory_space<vmem>>, %arg7: memref<1x4x256xf32, #tpu.memory_space<vmem>>, %arg8: memref<4x384xf32, #tpu.memory_space<vmem>>, %arg9: memref<100x256xf32, #tpu.memory_space<vmem>>) attributes {dimension_semantics = [#tpu.dimension_semantics<parallel>], iteration_bounds = array<i64: 2>, scalar_prefetch = 0 : i64, scratch_operands = 2 : i64, tpu.core_type = #tpu.core_type<tc>, window_params = [{transform_indices = @transform_0, window_bounds = array<i64: 1, 4, 256>}, {pipeline_mode = #tpu.pipeline_mode<synchronous>, transform_indices = @transform_1, window_bounds = array<i64: 2, 4, 100>}, {pipeline_mode = #tpu.pipeline_mode<synchronous>, transform_indices = @transform_2, window_bounds = array<i64: 2, 4, 1>}, {pipeline_mode = #tpu.pipeline_mode<synchronous>, transform_indices = @transform_3, window_bounds = array<i64: 2, 4, 100>}, {pipeline_mode = #tpu.pipeline_mode<synchronous>, transform_indices = @transform_4, window_bounds = array<i64: 2, 4, 1>}, {pipeline_mode = #tpu.pipeline_mode<synchronous>, transform_indices = @transform_5, window_bounds = array<i64: 4, 1>}, {transform_indices = @transform_6, window_bounds = array<i64: 1, 4, 256>}]} {
    %cst = arith.constant 0.000000e+00 : f32
    %0 = vector.broadcast %cst : f32 to vector<4x64xf32>
    %c0 = arith.constant 0 : index
    %c0_0 = arith.constant 0 : index
    %1 = vector.load %arg8[%c0, %c0_0] : memref<4x384xf32, #tpu.memory_space<vmem>>, vector<4x64xf32>
    tpu.vector_store %arg8[%c0, %c0_0], %0 {strides = array<i32>} : memref<4x384xf32, #tpu.memory_space<vmem>>, vector<4x64xf32>,
    %cst_1 = arith.constant 0.000000e+00 : f32
    %2 = vector.broadcast %cst_1 : f32 to vector<4x64xf32>
    %c0_2 = arith.constant 0 : index
    %c320 = arith.constant 320 : index
    %3 = vector.load %arg8[%c0_2, %c320] : memref<4x384xf32, #tpu.memory_space<vmem>>, vector<4x64xf32>
    tpu.vector_store %arg8[%c0_2, %c320], %2 {strides = array<i32>} : memref<4x384xf32, #tpu.memory_space<vmem>>, vector<4x64xf32>,
    %4 = tpu.iota {dimensions = array<i32: 1>} : vector<4x256xi32>
    %c16_i32 = arith.constant 16 : i32
    %c0_i32 = arith.constant 0 : i32
    %5 = arith.cmpi eq, %c16_i32, %c0_i32 : i32
    %c1_i32 = arith.constant 1 : i32
    %6 = arith.select %5, %c1_i32, %c16_i32 : i32
    %7 = vector.broadcast %6 : i32 to vector<4x256xi32>
    %8 = arith.remsi %4, %7 : vector<4x256xi32>
    %c0_i32_3 = arith.constant 0 : i32
    %9 = vector.broadcast %c0_i32_3 : i32 to vector<4x256xi32>
    %10 = arith.cmpi ne, %8, %9 : vector<4x256xi32>
    %c0_i32_4 = arith.constant 0 : i32
    %11 = vector.broadcast %c0_i32_4 : i32 to vector<4x256xi32>
    %12 = arith.cmpi slt, %8, %11 : vector<4x256xi32>
    %c0_i32_5 = arith.constant 0 : i32
    %13 = arith.cmpi slt, %6, %c0_i32_5 : i32
    %14 = vector.broadcast %13 : i1 to vector<4x256xi1>
    %15 = vector.broadcast %14 : vector<4x256xi1> to vector<4x256xi1>
    %16 = arith.xori %12, %15 : vector<4x256xi1>
    %17 = arith.andi %16, %10 : vector<4x256xi1>
    %18 = vector.broadcast %6 : i32 to vector<4x256xi32>
    %19 = arith.addi %8, %18 : vector<4x256xi32>
    %20 = arith.select %17, %19, %8 : vector<4x256xi1>, vector<4x256xi32>
    %c-2_i32 = arith.constant -2 : i32
    %21 = vector.broadcast %c-2_i32 : i32 to vector<4x256xi32>
    %22 = arith.addi %20, %21 : vector<4x256xi32>
    %c0_i32_6 = arith.constant 0 : i32
    %23 = vector.broadcast %c0_i32_6 : i32 to vector<4x256xi32>
    %24 = arith.cmpi sge, %22, %23 : vector<4x256xi32>
    %c-2_i32_7 = arith.constant -2 : i32
    %25 = vector.broadcast %c-2_i32_7 : i32 to vector<4x256xi32>
    %26 = arith.addi %20, %25 : vector<4x256xi32>
    %c16_i32_8 = arith.constant 16 : i32
    %27 = vector.broadcast %c16_i32_8 : i32 to vector<4x256xi32>
    %28 = arith.cmpi slt, %26, %27 : vector<4x256xi32>
    %29 = arith.andi %24, %28 : vector<4x256xi1>
    %c-1_i32 = arith.constant -1 : i32
    %30 = vector.broadcast %c-1_i32 : i32 to vector<4x256xi32>
    %31 = arith.addi %20, %30 : vector<4x256xi32>
    %c0_i32_9 = arith.constant 0 : i32
    %32 = vector.broadcast %c0_i32_9 : i32 to vector<4x256xi32>
    %33 = arith.cmpi sge, %31, %32 : vector<4x256xi32>
    %c-1_i32_10 = arith.constant -1 : i32
    %34 = vector.broadcast %c-1_i32_10 : i32 to vector<4x256xi32>
    %35 = arith.addi %20, %34 : vector<4x256xi32>
    %c16_i32_11 = arith.constant 16 : i32
    %36 = vector.broadcast %c16_i32_11 : i32 to vector<4x256xi32>
    %37 = arith.cmpi slt, %35, %36 : vector<4x256xi32>
    %38 = arith.andi %33, %37 : vector<4x256xi1>
    %c1_i32_12 = arith.constant 1 : i32
    %39 = vector.broadcast %c1_i32_12 : i32 to vector<4x256xi32>
    %40 = arith.addi %20, %39 : vector<4x256xi32>
    %c0_i32_13 = arith.constant 0 : i32
    %41 = vector.broadcast %c0_i32_13 : i32 to vector<4x256xi32>
    %42 = arith.cmpi sge, %40, %41 : vector<4x256xi32>
    %c1_i32_14 = arith.constant 1 : i32
    %43 = vector.broadcast %c1_i32_14 : i32 to vector<4x256xi32>
    %44 = arith.addi %20, %43 : vector<4x256xi32>
    %c16_i32_15 = arith.constant 16 : i32
    %45 = vector.broadcast %c16_i32_15 : i32 to vector<4x256xi32>
    %46 = arith.cmpi slt, %44, %45 : vector<4x256xi32>
    %47 = arith.andi %42, %46 : vector<4x256xi1>
    %c2_i32 = arith.constant 2 : i32
    %48 = vector.broadcast %c2_i32 : i32 to vector<4x256xi32>
    %49 = arith.addi %20, %48 : vector<4x256xi32>
    %c0_i32_16 = arith.constant 0 : i32
    %50 = vector.broadcast %c0_i32_16 : i32 to vector<4x256xi32>
    %51 = arith.cmpi sge, %49, %50 : vector<4x256xi32>
    %c2_i32_17 = arith.constant 2 : i32
    %52 = vector.broadcast %c2_i32_17 : i32 to vector<4x256xi32>
    %53 = arith.addi %20, %52 : vector<4x256xi32>
    %c16_i32_18 = arith.constant 16 : i32
    %54 = vector.broadcast %c16_i32_18 : i32 to vector<4x256xi32>
    %55 = arith.cmpi slt, %53, %54 : vector<4x256xi32>
    %56 = arith.andi %51, %55 : vector<4x256xi1>
    %c0_19 = arith.constant 0 : index
    %c0_20 = arith.constant 0 : index
    %c0_21 = arith.constant 0 : index
    %57 = vector.load %arg1[%c0_19, %c0_20, %c0_21] : memref<1x4x256xf32, #tpu.memory_space<vmem>>, vector<1x4x256xf32>
    %58 = vector.shape_cast %57 : vector<1x4x256xf32> to vector<4x256xf32>
    %c0_22 = arith.constant 0 : index
    %c64 = arith.constant 64 : index
    %59 = vector.load %arg8[%c0_22, %c64] : memref<4x384xf32, #tpu.memory_space<vmem>>, vector<4x256xf32>
    tpu.vector_store %arg8[%c0_22, %c64], %58 {strides = array<i32>} : memref<4x384xf32, #tpu.memory_space<vmem>>, vector<4x256xf32>,
    %c0_23 = arith.constant 0 : index
    %c30 = arith.constant 30 : index
    %60 = vector.load %arg8[%c0_23, %c30] : memref<4x384xf32, #tpu.memory_space<vmem>>, vector<4x256xf32>
    %cst_24 = arith.constant 0.000000e+00 : f32
    %61 = vector.broadcast %cst_24 : f32 to vector<4x256xf32>
    %62 = arith.select %29, %60, %61 : vector<4x256xi1>, vector<4x256xf32>
    %c0_25 = arith.constant 0 : index
    %c0_26 = arith.constant 0 : index
    %63 = vector.load %arg9[%c0_25, %c0_26] : memref<100x256xf32, #tpu.memory_space<vmem>>, vector<4x256xf32>
    tpu.vector_store %arg9[%c0_25, %c0_26], %62 {strides = array<i32>} : memref<100x256xf32, #tpu.memory_space<vmem>>, vector<4x256xf32>,
    %c0_27 = arith.constant 0 : index
    %c31 = arith.constant 31 : index
    %64 = vector.load %arg8[%c0_27, %c31] : memref<4x384xf32, #tpu.memory_space<vmem>>, vector<4x256xf32>
    %cst_28 = arith.constant 0.000000e+00 : f32
    %65 = vector.broadcast %cst_28 : f32 to vector<4x256xf32>
    %66 = arith.select %38, %64, %65 : vector<4x256xi1>, vector<4x256xf32>
    %c4 = arith.constant 4 : index
    %c0_29 = arith.constant 0 : index
    %67 = vector.load %arg9[%c4, %c0_29] : memref<100x256xf32, #tpu.memory_space<vmem>>, vector<4x256xf32>
    tpu.vector_store %arg9[%c4, %c0_29], %66 {strides = array<i32>} : memref<100x256xf32, #tpu.memory_space<vmem>>, vector<4x256xf32>,
    %c0_30 = arith.constant 0 : index
    %c32 = arith.constant 32 : index
    %68 = vector.load %arg8[%c0_30, %c32] : memref<4x384xf32, #tpu.memory_space<vmem>>, vector<4x256xf32>
    %c8 = arith.constant 8 : index
    %c0_31 = arith.constant 0 : index
    %69 = vector.load %arg9[%c8, %c0_31] : memref<100x256xf32, #tpu.memory_space<vmem>>, vector<4x256xf32>
    tpu.vector_store %arg9[%c8, %c0_31], %68 {strides = array<i32>} : memref<100x256xf32, #tpu.memory_space<vmem>>, vector<4x256xf32>,
    %c0_32 = arith.constant 0 : index
    %c33 = arith.constant 33 : index
    %70 = vector.load %arg8[%c0_32, %c33] : memref<4x384xf32, #tpu.memory_space<vmem>>, vector<4x256xf32>
    %cst_33 = arith.constant 0.000000e+00 : f32
    %71 = vector.broadcast %cst_33 : f32 to vector<4x256xf32>
    %72 = arith.select %47, %70, %71 : vector<4x256xi1>, vector<4x256xf32>
    %c12 = arith.constant 12 : index
    %c0_34 = arith.constant 0 : index
    %73 = vector.load %arg9[%c12, %c0_34] : memref<100x256xf32, #tpu.memory_space<vmem>>, vector<4x256xf32>
    tpu.vector_store %arg9[%c12, %c0_34], %72 {strides = array<i32>} : memref<100x256xf32, #tpu.memory_space<vmem>>, vector<4x256xf32>,
    %c0_35 = arith.constant 0 : index
    %c34 = arith.constant 34 : index
    %74 = vector.load %arg8[%c0_35, %c34] : memref<4x384xf32, #tpu.memory_space<vmem>>, vector<4x256xf32>
    %cst_36 = arith.constant 0.000000e+00 : f32
    %75 = vector.broadcast %cst_36 : f32 to vector<4x256xf32>
    %76 = arith.select %56, %74, %75 : vector<4x256xi1>, vector<4x256xf32>
    %c16 = arith.constant 16 : index
    %c0_37 = arith.constant 0 : index
    %77 = vector.load %arg9[%c16, %c0_37] : memref<100x256xf32, #tpu.memory_space<vmem>>, vector<4x256xf32>
    tpu.vector_store %arg9[%c16, %c0_37], %76 {strides = array<i32>} : memref<100x256xf32, #tpu.memory_space<vmem>>, vector<4x256xf32>,
    %c0_38 = arith.constant 0 : index
    %c46 = arith.constant 46 : index
    %78 = vector.load %arg8[%c0_38, %c46] : memref<4x384xf32, #tpu.memory_space<vmem>>, vector<4x256xf32>
    %cst_39 = arith.constant 0.000000e+00 : f32
    %79 = vector.broadcast %cst_39 : f32 to vector<4x256xf32>
    %80 = arith.select %29, %78, %79 : vector<4x256xi1>, vector<4x256xf32>
    %c20 = arith.constant 20 : index
    %c0_40 = arith.constant 0 : index
    %81 = vector.load %arg9[%c20, %c0_40] : memref<100x256xf32, #tpu.memory_space<vmem>>, vector<4x256xf32>
    tpu.vector_store %arg9[%c20, %c0_40], %80 {strides = array<i32>} : memref<100x256xf32, #tpu.memory_space<vmem>>, vector<4x256xf32>,
    %c0_41 = arith.constant 0 : index
    %c47 = arith.constant 47 : index
    %82 = vector.load %arg8[%c0_41, %c47] : memref<4x384xf32, #tpu.memory_space<vmem>>, vector<4x256xf32>
    %cst_42 = arith.constant 0.000000e+00 : f32
    %83 = vector.broadcast %cst_42 : f32 to vector<4x256xf32>
    %84 = arith.select %38, %82, %83 : vector<4x256xi1>, vector<4x256xf32>
    %c24 = arith.constant 24 : index
    %c0_43 = arith.constant 0 : index
    %85 = vector.load %arg9[%c24, %c0_43] : memref<100x256xf32, #tpu.memory_space<vmem>>, vector<4x256xf32>
    tpu.vector_store %arg9[%c24, %c0_43], %84 {strides = array<i32>} : memref<100x256xf32, #tpu.memory_space<vmem>>, vector<4x256xf32>,
    %c0_44 = arith.constant 0 : index
    %c48 = arith.constant 48 : index
    %86 = vector.load %arg8[%c0_44, %c48] : memref<4x384xf32, #tpu.memory_space<vmem>>, vector<4x256xf32>
    %c28 = arith.constant 28 : index
    %c0_45 = arith.constant 0 : index
    %87 = vector.load %arg9[%c28, %c0_45] : memref<100x256xf32, #tpu.memory_space<vmem>>, vector<4x256xf32>
    tpu.vector_store %arg9[%c28, %c0_45], %86 {strides = array<i32>} : memref<100x256xf32, #tpu.memory_space<vmem>>, vector<4x256xf32>,
    %c0_46 = arith.constant 0 : index
    %c49 = arith.constant 49 : index
    %88 = vector.load %arg8[%c0_46, %c49] : memref<4x384xf32, #tpu.memory_space<vmem>>, vector<4x256xf32>
    %cst_47 = arith.constant 0.000000e+00 : f32
    %89 = vector.broadcast %cst_47 : f32 to vector<4x256xf32>
    %90 = arith.select %47, %88, %89 : vector<4x256xi1>, vector<4x256xf32>
    %c32_48 = arith.constant 32 : index
    %c0_49 = arith.constant 0 : index
    %91 = vector.load %arg9[%c32_48, %c0_49] : memref<100x256xf32, #tpu.memory_space<vmem>>, vector<4x256xf32>
    tpu.vector_store %arg9[%c32_48, %c0_49], %90 {strides = array<i32>} : memref<100x256xf32, #tpu.memory_space<vmem>>, vector<4x256xf32>,
    %c0_50 = arith.constant 0 : index
    %c50 = arith.constant 50 : index
    %92 = vector.load %arg8[%c0_50, %c50] : memref<4x384xf32, #tpu.memory_space<vmem>>, vector<4x256xf32>
    %cst_51 = arith.constant 0.000000e+00 : f32
    %93 = vector.broadcast %cst_51 : f32 to vector<4x256xf32>
    %94 = arith.select %56, %92, %93 : vector<4x256xi1>, vector<4x256xf32>
    %c36 = arith.constant 36 : index
    %c0_52 = arith.constant 0 : index
    %95 = vector.load %arg9[%c36, %c0_52] : memref<100x256xf32, #tpu.memory_space<vmem>>, vector<4x256xf32>
    tpu.vector_store %arg9[%c36, %c0_52], %94 {strides = array<i32>} : memref<100x256xf32, #tpu.memory_space<vmem>>, vector<4x256xf32>,
    %c0_53 = arith.constant 0 : index
    %c62 = arith.constant 62 : index
    %96 = vector.load %arg8[%c0_53, %c62] : memref<4x384xf32, #tpu.memory_space<vmem>>, vector<4x256xf32>
    %cst_54 = arith.constant 0.000000e+00 : f32
    %97 = vector.broadcast %cst_54 : f32 to vector<4x256xf32>
    %98 = arith.select %29, %96, %97 : vector<4x256xi1>, vector<4x256xf32>
    %c40 = arith.constant 40 : index
    %c0_55 = arith.constant 0 : index
    %99 = vector.load %arg9[%c40, %c0_55] : memref<100x256xf32, #tpu.memory_space<vmem>>, vector<4x256xf32>
    tpu.vector_store %arg9[%c40, %c0_55], %98 {strides = array<i32>} : memref<100x256xf32, #tpu.memory_space<vmem>>, vector<4x256xf32>,
    %c0_56 = arith.constant 0 : index
    %c63 = arith.constant 63 : index
    %100 = vector.load %arg8[%c0_56, %c63] : memref<4x384xf32, #tpu.memory_space<vmem>>, vector<4x256xf32>
    %cst_57 = arith.constant 0.000000e+00 : f32
    %101 = vector.broadcast %cst_57 : f32 to vector<4x256xf32>
    %102 = arith.select %38, %100, %101 : vector<4x256xi1>, vector<4x256xf32>
    %c44 = arith.constant 44 : index
    %c0_58 = arith.constant 0 : index
    %103 = vector.load %arg9[%c44, %c0_58] : memref<100x256xf32, #tpu.memory_space<vmem>>, vector<4x256xf32>
    tpu.vector_store %arg9[%c44, %c0_58], %102 {strides = array<i32>} : memref<100x256xf32, #tpu.memory_space<vmem>>, vector<4x256xf32>,
    %c0_59 = arith.constant 0 : index
    %c64_60 = arith.constant 64 : index
    %104 = vector.load %arg8[%c0_59, %c64_60] : memref<4x384xf32, #tpu.memory_space<vmem>>, vector<4x256xf32>
    %c48_61 = arith.constant 48 : index
    %c0_62 = arith.constant 0 : index
    %105 = vector.load %arg9[%c48_61, %c0_62] : memref<100x256xf32, #tpu.memory_space<vmem>>, vector<4x256xf32>
    tpu.vector_store %arg9[%c48_61, %c0_62], %104 {strides = array<i32>} : memref<100x256xf32, #tpu.memory_space<vmem>>, vector<4x256xf32>,
    %c0_63 = arith.constant 0 : index
    %c65 = arith.constant 65 : index
    %106 = vector.load %arg8[%c0_63, %c65] : memref<4x384xf32, #tpu.memory_space<vmem>>, vector<4x256xf32>
    %cst_64 = arith.constant 0.000000e+00 : f32
    %107 = vector.broadcast %cst_64 : f32 to vector<4x256xf32>
    %108 = arith.select %47, %106, %107 : vector<4x256xi1>, vector<4x256xf32>
    %c52 = arith.constant 52 : index
    %c0_65 = arith.constant 0 : index
    %109 = vector.load %arg9[%c52, %c0_65] : memref<100x256xf32, #tpu.memory_space<vmem>>, vector<4x256xf32>
    tpu.vector_store %arg9[%c52, %c0_65], %108 {strides = array<i32>} : memref<100x256xf32, #tpu.memory_space<vmem>>, vector<4x256xf32>,
    %c0_66 = arith.constant 0 : index
    %c66 = arith.constant 66 : index
    %110 = vector.load %arg8[%c0_66, %c66] : memref<4x384xf32, #tpu.memory_space<vmem>>, vector<4x256xf32>
    %cst_67 = arith.constant 0.000000e+00 : f32
    %111 = vector.broadcast %cst_67 : f32 to vector<4x256xf32>
    %112 = arith.select %56, %110, %111 : vector<4x256xi1>, vector<4x256xf32>
    %c56 = arith.constant 56 : index
    %c0_68 = arith.constant 0 : index
    %113 = vector.load %arg9[%c56, %c0_68] : memref<100x256xf32, #tpu.memory_space<vmem>>, vector<4x256xf32>
    tpu.vector_store %arg9[%c56, %c0_68], %112 {strides = array<i32>} : memref<100x256xf32, #tpu.memory_space<vmem>>, vector<4x256xf32>,
    %c0_69 = arith.constant 0 : index
    %c78 = arith.constant 78 : index
    %114 = vector.load %arg8[%c0_69, %c78] : memref<4x384xf32, #tpu.memory_space<vmem>>, vector<4x256xf32>
    %cst_70 = arith.constant 0.000000e+00 : f32
    %115 = vector.broadcast %cst_70 : f32 to vector<4x256xf32>
    %116 = arith.select %29, %114, %115 : vector<4x256xi1>, vector<4x256xf32>
    %c60 = arith.constant 60 : index
    %c0_71 = arith.constant 0 : index
    %117 = vector.load %arg9[%c60, %c0_71] : memref<100x256xf32, #tpu.memory_space<vmem>>, vector<4x256xf32>
    tpu.vector_store %arg9[%c60, %c0_71], %116 {strides = array<i32>} : memref<100x256xf32, #tpu.memory_space<vmem>>, vector<4x256xf32>,
    %c0_72 = arith.constant 0 : index
    %c79 = arith.constant 79 : index
    %118 = vector.load %arg8[%c0_72, %c79] : memref<4x384xf32, #tpu.memory_space<vmem>>, vector<4x256xf32>
    %cst_73 = arith.constant 0.000000e+00 : f32
    %119 = vector.broadcast %cst_73 : f32 to vector<4x256xf32>
    %120 = arith.select %38, %118, %119 : vector<4x256xi1>, vector<4x256xf32>
    %c64_74 = arith.constant 64 : index
    %c0_75 = arith.constant 0 : index
    %121 = vector.load %arg9[%c64_74, %c0_75] : memref<100x256xf32, #tpu.memory_space<vmem>>, vector<4x256xf32>
    tpu.vector_store %arg9[%c64_74, %c0_75], %120 {strides = array<i32>} : memref<100x256xf32, #tpu.memory_space<vmem>>, vector<4x256xf32>,
    %c0_76 = arith.constant 0 : index
    %c80 = arith.constant 80 : index
    %122 = vector.load %arg8[%c0_76, %c80] : memref<4x384xf32, #tpu.memory_space<vmem>>, vector<4x256xf32>
    %c68 = arith.constant 68 : index
    %c0_77 = arith.constant 0 : index
    %123 = vector.load %arg9[%c68, %c0_77] : memref<100x256xf32, #tpu.memory_space<vmem>>, vector<4x256xf32>
    tpu.vector_store %arg9[%c68, %c0_77], %122 {strides = array<i32>} : memref<100x256xf32, #tpu.memory_space<vmem>>, vector<4x256xf32>,
    %c0_78 = arith.constant 0 : index
    %c81 = arith.constant 81 : index
    %124 = vector.load %arg8[%c0_78, %c81] : memref<4x384xf32, #tpu.memory_space<vmem>>, vector<4x256xf32>
    %cst_79 = arith.constant 0.000000e+00 : f32
    %125 = vector.broadcast %cst_79 : f32 to vector<4x256xf32>
    %126 = arith.select %47, %124, %125 : vector<4x256xi1>, vector<4x256xf32>
    %c72 = arith.constant 72 : index
    %c0_80 = arith.constant 0 : index
    %127 = vector.load %arg9[%c72, %c0_80] : memref<100x256xf32, #tpu.memory_space<vmem>>, vector<4x256xf32>
    tpu.vector_store %arg9[%c72, %c0_80], %126 {strides = array<i32>} : memref<100x256xf32, #tpu.memory_space<vmem>>, vector<4x256xf32>,
    %c0_81 = arith.constant 0 : index
    %c82 = arith.constant 82 : index
    %128 = vector.load %arg8[%c0_81, %c82] : memref<4x384xf32, #tpu.memory_space<vmem>>, vector<4x256xf32>
    %cst_82 = arith.constant 0.000000e+00 : f32
    %129 = vector.broadcast %cst_82 : f32 to vector<4x256xf32>
    %130 = arith.select %56, %128, %129 : vector<4x256xi1>, vector<4x256xf32>
    %c76 = arith.constant 76 : index
    %c0_83 = arith.constant 0 : index
    %131 = vector.load %arg9[%c76, %c0_83] : memref<100x256xf32, #tpu.memory_space<vmem>>, vector<4x256xf32>
    tpu.vector_store %arg9[%c76, %c0_83], %130 {strides = array<i32>} : memref<100x256xf32, #tpu.memory_space<vmem>>, vector<4x256xf32>,
    %c0_84 = arith.constant 0 : index
    %c94 = arith.constant 94 : index
    %132 = vector.load %arg8[%c0_84, %c94] : memref<4x384xf32, #tpu.memory_space<vmem>>, vector<4x256xf32>
    %cst_85 = arith.constant 0.000000e+00 : f32
    %133 = vector.broadcast %cst_85 : f32 to vector<4x256xf32>
    %134 = arith.select %29, %132, %133 : vector<4x256xi1>, vector<4x256xf32>
    %c80_86 = arith.constant 80 : index
    %c0_87 = arith.constant 0 : index
    %135 = vector.load %arg9[%c80_86, %c0_87] : memref<100x256xf32, #tpu.memory_space<vmem>>, vector<4x256xf32>
    tpu.vector_store %arg9[%c80_86, %c0_87], %134 {strides = array<i32>} : memref<100x256xf32, #tpu.memory_space<vmem>>, vector<4x256xf32>,
    %c0_88 = arith.constant 0 : index
    %c95 = arith.constant 95 : index
    %136 = vector.load %arg8[%c0_88, %c95] : memref<4x384xf32, #tpu.memory_space<vmem>>, vector<4x256xf32>
    %cst_89 = arith.constant 0.000000e+00 : f32
    %137 = vector.broadcast %cst_89 : f32 to vector<4x256xf32>
    %138 = arith.select %38, %136, %137 : vector<4x256xi1>, vector<4x256xf32>
    %c84 = arith.constant 84 : index
    %c0_90 = arith.constant 0 : index
    %139 = vector.load %arg9[%c84, %c0_90] : memref<100x256xf32, #tpu.memory_space<vmem>>, vector<4x256xf32>
    tpu.vector_store %arg9[%c84, %c0_90], %138 {strides = array<i32>} : memref<100x256xf32, #tpu.memory_space<vmem>>, vector<4x256xf32>,
    %c0_91 = arith.constant 0 : index
    %c96 = arith.constant 96 : index
    %140 = vector.load %arg8[%c0_91, %c96] : memref<4x384xf32, #tpu.memory_space<vmem>>, vector<4x256xf32>
    %c88 = arith.constant 88 : index
    %c0_92 = arith.constant 0 : index
    %141 = vector.load %arg9[%c88, %c0_92] : memref<100x256xf32, #tpu.memory_space<vmem>>, vector<4x256xf32>
    tpu.vector_store %arg9[%c88, %c0_92], %140 {strides = array<i32>} : memref<100x256xf32, #tpu.memory_space<vmem>>, vector<4x256xf32>,
    %c0_93 = arith.constant 0 : index
    %c97 = arith.constant 97 : index
    %142 = vector.load %arg8[%c0_93, %c97] : memref<4x384xf32, #tpu.memory_space<vmem>>, vector<4x256xf32>
    %cst_94 = arith.constant 0.000000e+00 : f32
    %143 = vector.broadcast %cst_94 : f32 to vector<4x256xf32>
    %144 = arith.select %47, %142, %143 : vector<4x256xi1>, vector<4x256xf32>
    %c92 = arith.constant 92 : index
    %c0_95 = arith.constant 0 : index
    %145 = vector.load %arg9[%c92, %c0_95] : memref<100x256xf32, #tpu.memory_space<vmem>>, vector<4x256xf32>
    tpu.vector_store %arg9[%c92, %c0_95], %144 {strides = array<i32>} : memref<100x256xf32, #tpu.memory_space<vmem>>, vector<4x256xf32>,
    %c0_96 = arith.constant 0 : index
    %c98 = arith.constant 98 : index
    %146 = vector.load %arg8[%c0_96, %c98] : memref<4x384xf32, #tpu.memory_space<vmem>>, vector<4x256xf32>
    %cst_97 = arith.constant 0.000000e+00 : f32
    %147 = vector.broadcast %cst_97 : f32 to vector<4x256xf32>
    %148 = arith.select %56, %146, %147 : vector<4x256xi1>, vector<4x256xf32>
    %c96_98 = arith.constant 96 : index
    %c0_99 = arith.constant 0 : index
    %149 = vector.load %arg9[%c96_98, %c0_99] : memref<100x256xf32, #tpu.memory_space<vmem>>, vector<4x256xf32>
    tpu.vector_store %arg9[%c96_98, %c0_99], %148 {strides = array<i32>} : memref<100x256xf32, #tpu.memory_space<vmem>>, vector<4x256xf32>,
    %c0_100 = arith.constant 0 : index
    %c0_101 = arith.constant 0 : index
    %c0_102 = arith.constant 0 : index
    %150 = vector.load %arg2[%c0_100, %c0_101, %c0_102] : memref<2x4x100xf32, #tpu.memory_space<vmem>>, vector<1x4x100xf32>
    %151 = vector.shape_cast %150 : vector<1x4x100xf32> to vector<4x100xf32>
    %c0_103 = arith.constant 0 : index
    %c0_104 = arith.constant 0 : index
    %152 = vector.load %arg9[%c0_103, %c0_104] : memref<100x256xf32, #tpu.memory_space<vmem>>, vector<100x256xf32>
    %cst_105 = arith.constant dense<0.000000e+00> : vector<4x256xf32>
    %153 = tpu.matmul %151, %152, %cst_105 {dimension_numbers = #tpu.dot_dimension_numbers<[1], [0], [0], [1], [0, 0, 1, 1], [], []>} : vector<4x100xf32>, vector<100x256xf32>, vector<4x256xf32> -> vector<4x256xf32>
    %c0_106 = arith.constant 0 : index
    %c0_107 = arith.constant 0 : index
    %c0_108 = arith.constant 0 : index
    %154 = vector.load %arg3[%c0_106, %c0_107, %c0_108] : memref<2x4x1xf32, #tpu.memory_space<vmem>>, vector<1x4x1xf32>
    %155 = vector.shape_cast %154 : vector<1x4x1xf32> to vector<4x1xf32>
    %156 = vector.broadcast %155 : vector<4x1xf32> to vector<4x256xf32>
    %157 = arith.addf %153, %156 : vector<4x256xf32>
    %cst_109 = arith.constant 0.000000e+00 : f32
    %158 = vector.broadcast %cst_109 : f32 to vector<4x256xf32>
    %159 = arith.maximumf %157, %158 : vector<4x256xf32>
    %c0_110 = arith.constant 0 : index
    %c64_111 = arith.constant 64 : index
    %160 = vector.load %arg8[%c0_110, %c64_111] : memref<4x384xf32, #tpu.memory_space<vmem>>, vector<4x256xf32>
    tpu.vector_store %arg8[%c0_110, %c64_111], %159 {strides = array<i32>} : memref<4x384xf32, #tpu.memory_space<vmem>>, vector<4x256xf32>,
    %c0_112 = arith.constant 0 : index
    %c30_113 = arith.constant 30 : index
    %161 = vector.load %arg8[%c0_112, %c30_113] : memref<4x384xf32, #tpu.memory_space<vmem>>, vector<4x256xf32>
    %cst_114 = arith.constant 0.000000e+00 : f32
    %162 = vector.broadcast %cst_114 : f32 to vector<4x256xf32>
    %163 = arith.select %29, %161, %162 : vector<4x256xi1>, vector<4x256xf32>
    %c0_115 = arith.constant 0 : index
    %c0_116 = arith.constant 0 : index
    %164 = vector.load %arg9[%c0_115, %c0_116] : memref<100x256xf32, #tpu.memory_space<vmem>>, vector<4x256xf32>
    tpu.vector_store %arg9[%c0_115, %c0_116], %163 {strides = array<i32>} : memref<100x256xf32, #tpu.memory_space<vmem>>, vector<4x256xf32>,
    %c0_117 = arith.constant 0 : index
    %c31_118 = arith.constant 31 : index
    %165 = vector.load %arg8[%c0_117, %c31_118] : memref<4x384xf32, #tpu.memory_space<vmem>>, vector<4x256xf32>
    %cst_119 = arith.constant 0.000000e+00 : f32
    %166 = vector.broadcast %cst_119 : f32 to vector<4x256xf32>
    %167 = arith.select %38, %165, %166 : vector<4x256xi1>, vector<4x256xf32>
    %c4_120 = arith.constant 4 : index
    %c0_121 = arith.constant 0 : index
    %168 = vector.load %arg9[%c4_120, %c0_121] : memref<100x256xf32, #tpu.memory_space<vmem>>, vector<4x256xf32>
    tpu.vector_store %arg9[%c4_120, %c0_121], %167 {strides = array<i32>} : memref<100x256xf32, #tpu.memory_space<vmem>>, vector<4x256xf32>,
    %c0_122 = arith.constant 0 : index
    %c32_123 = arith.constant 32 : index
    %169 = vector.load %arg8[%c0_122, %c32_123] : memref<4x384xf32, #tpu.memory_space<vmem>>, vector<4x256xf32>
    %c8_124 = arith.constant 8 : index
    %c0_125 = arith.constant 0 : index
    %170 = vector.load %arg9[%c8_124, %c0_125] : memref<100x256xf32, #tpu.memory_space<vmem>>, vector<4x256xf32>
    tpu.vector_store %arg9[%c8_124, %c0_125], %169 {strides = array<i32>} : memref<100x256xf32, #tpu.memory_space<vmem>>, vector<4x256xf32>,
    %c0_126 = arith.constant 0 : index
    %c33_127 = arith.constant 33 : index
    %171 = vector.load %arg8[%c0_126, %c33_127] : memref<4x384xf32, #tpu.memory_space<vmem>>, vector<4x256xf32>
    %cst_128 = arith.constant 0.000000e+00 : f32
    %172 = vector.broadcast %cst_128 : f32 to vector<4x256xf32>
    %173 = arith.select %47, %171, %172 : vector<4x256xi1>, vector<4x256xf32>
    %c12_129 = arith.constant 12 : index
    %c0_130 = arith.constant 0 : index
    %174 = vector.load %arg9[%c12_129, %c0_130] : memref<100x256xf32, #tpu.memory_space<vmem>>, vector<4x256xf32>
    tpu.vector_store %arg9[%c12_129, %c0_130], %173 {strides = array<i32>} : memref<100x256xf32, #tpu.memory_space<vmem>>, vector<4x256xf32>,
    %c0_131 = arith.constant 0 : index
    %c34_132 = arith.constant 34 : index
    %175 = vector.load %arg8[%c0_131, %c34_132] : memref<4x384xf32, #tpu.memory_space<vmem>>, vector<4x256xf32>
    %cst_133 = arith.constant 0.000000e+00 : f32
    %176 = vector.broadcast %cst_133 : f32 to vector<4x256xf32>
    %177 = arith.select %56, %175, %176 : vector<4x256xi1>, vector<4x256xf32>
    %c16_134 = arith.constant 16 : index
    %c0_135 = arith.constant 0 : index
    %178 = vector.load %arg9[%c16_134, %c0_135] : memref<100x256xf32, #tpu.memory_space<vmem>>, vector<4x256xf32>
    tpu.vector_store %arg9[%c16_134, %c0_135], %177 {strides = array<i32>} : memref<100x256xf32, #tpu.memory_space<vmem>>, vector<4x256xf32>,
    %c0_136 = arith.constant 0 : index
    %c46_137 = arith.constant 46 : index
    %179 = vector.load %arg8[%c0_136, %c46_137] : memref<4x384xf32, #tpu.memory_space<vmem>>, vector<4x256xf32>
    %cst_138 = arith.constant 0.000000e+00 : f32
    %180 = vector.broadcast %cst_138 : f32 to vector<4x256xf32>
    %181 = arith.select %29, %179, %180 : vector<4x256xi1>, vector<4x256xf32>
    %c20_139 = arith.constant 20 : index
    %c0_140 = arith.constant 0 : index
    %182 = vector.load %arg9[%c20_139, %c0_140] : memref<100x256xf32, #tpu.memory_space<vmem>>, vector<4x256xf32>
    tpu.vector_store %arg9[%c20_139, %c0_140], %181 {strides = array<i32>} : memref<100x256xf32, #tpu.memory_space<vmem>>, vector<4x256xf32>,
    %c0_141 = arith.constant 0 : index
    %c47_142 = arith.constant 47 : index
    %183 = vector.load %arg8[%c0_141, %c47_142] : memref<4x384xf32, #tpu.memory_space<vmem>>, vector<4x256xf32>
    %cst_143 = arith.constant 0.000000e+00 : f32
    %184 = vector.broadcast %cst_143 : f32 to vector<4x256xf32>
    %185 = arith.select %38, %183, %184 : vector<4x256xi1>, vector<4x256xf32>
    %c24_144 = arith.constant 24 : index
    %c0_145 = arith.constant 0 : index
    %186 = vector.load %arg9[%c24_144, %c0_145] : memref<100x256xf32, #tpu.memory_space<vmem>>, vector<4x256xf32>
    tpu.vector_store %arg9[%c24_144, %c0_145], %185 {strides = array<i32>} : memref<100x256xf32, #tpu.memory_space<vmem>>, vector<4x256xf32>,
    %c0_146 = arith.constant 0 : index
    %c48_147 = arith.constant 48 : index
    %187 = vector.load %arg8[%c0_146, %c48_147] : memref<4x384xf32, #tpu.memory_space<vmem>>, vector<4x256xf32>
    %c28_148 = arith.constant 28 : index
    %c0_149 = arith.constant 0 : index
    %188 = vector.load %arg9[%c28_148, %c0_149] : memref<100x256xf32, #tpu.memory_space<vmem>>, vector<4x256xf32>
    tpu.vector_store %arg9[%c28_148, %c0_149], %187 {strides = array<i32>} : memref<100x256xf32, #tpu.memory_space<vmem>>, vector<4x256xf32>,
    %c0_150 = arith.constant 0 : index
    %c49_151 = arith.constant 49 : index
    %189 = vector.load %arg8[%c0_150, %c49_151] : memref<4x384xf32, #tpu.memory_space<vmem>>, vector<4x256xf32>
    %cst_152 = arith.constant 0.000000e+00 : f32
    %190 = vector.broadcast %cst_152 : f32 to vector<4x256xf32>
    %191 = arith.select %47, %189, %190 : vector<4x256xi1>, vector<4x256xf32>
    %c32_153 = arith.constant 32 : index
    %c0_154 = arith.constant 0 : index
    %192 = vector.load %arg9[%c32_153, %c0_154] : memref<100x256xf32, #tpu.memory_space<vmem>>, vector<4x256xf32>
    tpu.vector_store %arg9[%c32_153, %c0_154], %191 {strides = array<i32>} : memref<100x256xf32, #tpu.memory_space<vmem>>, vector<4x256xf32>,
    %c0_155 = arith.constant 0 : index
    %c50_156 = arith.constant 50 : index
    %193 = vector.load %arg8[%c0_155, %c50_156] : memref<4x384xf32, #tpu.memory_space<vmem>>, vector<4x256xf32>
    %cst_157 = arith.constant 0.000000e+00 : f32
    %194 = vector.broadcast %cst_157 : f32 to vector<4x256xf32>
    %195 = arith.select %56, %193, %194 : vector<4x256xi1>, vector<4x256xf32>
    %c36_158 = arith.constant 36 : index
    %c0_159 = arith.constant 0 : index
    %196 = vector.load %arg9[%c36_158, %c0_159] : memref<100x256xf32, #tpu.memory_space<vmem>>, vector<4x256xf32>
    tpu.vector_store %arg9[%c36_158, %c0_159], %195 {strides = array<i32>} : memref<100x256xf32, #tpu.memory_space<vmem>>, vector<4x256xf32>,
    %c0_160 = arith.constant 0 : index
    %c62_161 = arith.constant 62 : index
    %197 = vector.load %arg8[%c0_160, %c62_161] : memref<4x384xf32, #tpu.memory_space<vmem>>, vector<4x256xf32>
    %cst_162 = arith.constant 0.000000e+00 : f32
    %198 = vector.broadcast %cst_162 : f32 to vector<4x256xf32>
    %199 = arith.select %29, %197, %198 : vector<4x256xi1>, vector<4x256xf32>
    %c40_163 = arith.constant 40 : index
    %c0_164 = arith.constant 0 : index
    %200 = vector.load %arg9[%c40_163, %c0_164] : memref<100x256xf32, #tpu.memory_space<vmem>>, vector<4x256xf32>
    tpu.vector_store %arg9[%c40_163, %c0_164], %199 {strides = array<i32>} : memref<100x256xf32, #tpu.memory_space<vmem>>, vector<4x256xf32>,
    %c0_165 = arith.constant 0 : index
    %c63_166 = arith.constant 63 : index
    %201 = vector.load %arg8[%c0_165, %c63_166] : memref<4x384xf32, #tpu.memory_space<vmem>>, vector<4x256xf32>
    %cst_167 = arith.constant 0.000000e+00 : f32
    %202 = vector.broadcast %cst_167 : f32 to vector<4x256xf32>
    %203 = arith.select %38, %201, %202 : vector<4x256xi1>, vector<4x256xf32>
    %c44_168 = arith.constant 44 : index
    %c0_169 = arith.constant 0 : index
    %204 = vector.load %arg9[%c44_168, %c0_169] : memref<100x256xf32, #tpu.memory_space<vmem>>, vector<4x256xf32>
    tpu.vector_store %arg9[%c44_168, %c0_169], %203 {strides = array<i32>} : memref<100x256xf32, #tpu.memory_space<vmem>>, vector<4x256xf32>,
    %c0_170 = arith.constant 0 : index
    %c64_171 = arith.constant 64 : index
    %205 = vector.load %arg8[%c0_170, %c64_171] : memref<4x384xf32, #tpu.memory_space<vmem>>, vector<4x256xf32>
    %c48_172 = arith.constant 48 : index
    %c0_173 = arith.constant 0 : index
    %206 = vector.load %arg9[%c48_172, %c0_173] : memref<100x256xf32, #tpu.memory_space<vmem>>, vector<4x256xf32>
    tpu.vector_store %arg9[%c48_172, %c0_173], %205 {strides = array<i32>} : memref<100x256xf32, #tpu.memory_space<vmem>>, vector<4x256xf32>,
    %c0_174 = arith.constant 0 : index
    %c65_175 = arith.constant 65 : index
    %207 = vector.load %arg8[%c0_174, %c65_175] : memref<4x384xf32, #tpu.memory_space<vmem>>, vector<4x256xf32>
    %cst_176 = arith.constant 0.000000e+00 : f32
    %208 = vector.broadcast %cst_176 : f32 to vector<4x256xf32>
    %209 = arith.select %47, %207, %208 : vector<4x256xi1>, vector<4x256xf32>
    %c52_177 = arith.constant 52 : index
    %c0_178 = arith.constant 0 : index
    %210 = vector.load %arg9[%c52_177, %c0_178] : memref<100x256xf32, #tpu.memory_space<vmem>>, vector<4x256xf32>
    tpu.vector_store %arg9[%c52_177, %c0_178], %209 {strides = array<i32>} : memref<100x256xf32, #tpu.memory_space<vmem>>, vector<4x256xf32>,
    %c0_179 = arith.constant 0 : index
    %c66_180 = arith.constant 66 : index
    %211 = vector.load %arg8[%c0_179, %c66_180] : memref<4x384xf32, #tpu.memory_space<vmem>>, vector<4x256xf32>
    %cst_181 = arith.constant 0.000000e+00 : f32
    %212 = vector.broadcast %cst_181 : f32 to vector<4x256xf32>
    %213 = arith.select %56, %211, %212 : vector<4x256xi1>, vector<4x256xf32>
    %c56_182 = arith.constant 56 : index
    %c0_183 = arith.constant 0 : index
    %214 = vector.load %arg9[%c56_182, %c0_183] : memref<100x256xf32, #tpu.memory_space<vmem>>, vector<4x256xf32>
    tpu.vector_store %arg9[%c56_182, %c0_183], %213 {strides = array<i32>} : memref<100x256xf32, #tpu.memory_space<vmem>>, vector<4x256xf32>,
    %c0_184 = arith.constant 0 : index
    %c78_185 = arith.constant 78 : index
    %215 = vector.load %arg8[%c0_184, %c78_185] : memref<4x384xf32, #tpu.memory_space<vmem>>, vector<4x256xf32>
    %cst_186 = arith.constant 0.000000e+00 : f32
    %216 = vector.broadcast %cst_186 : f32 to vector<4x256xf32>
    %217 = arith.select %29, %215, %216 : vector<4x256xi1>, vector<4x256xf32>
    %c60_187 = arith.constant 60 : index
    %c0_188 = arith.constant 0 : index
    %218 = vector.load %arg9[%c60_187, %c0_188] : memref<100x256xf32, #tpu.memory_space<vmem>>, vector<4x256xf32>
    tpu.vector_store %arg9[%c60_187, %c0_188], %217 {strides = array<i32>} : memref<100x256xf32, #tpu.memory_space<vmem>>, vector<4x256xf32>,
    %c0_189 = arith.constant 0 : index
    %c79_190 = arith.constant 79 : index
    %219 = vector.load %arg8[%c0_189, %c79_190] : memref<4x384xf32, #tpu.memory_space<vmem>>, vector<4x256xf32>
    %cst_191 = arith.constant 0.000000e+00 : f32
    %220 = vector.broadcast %cst_191 : f32 to vector<4x256xf32>
    %221 = arith.select %38, %219, %220 : vector<4x256xi1>, vector<4x256xf32>
    %c64_192 = arith.constant 64 : index
    %c0_193 = arith.constant 0 : index
    %222 = vector.load %arg9[%c64_192, %c0_193] : memref<100x256xf32, #tpu.memory_space<vmem>>, vector<4x256xf32>
    tpu.vector_store %arg9[%c64_192, %c0_193], %221 {strides = array<i32>} : memref<100x256xf32, #tpu.memory_space<vmem>>, vector<4x256xf32>,
    %c0_194 = arith.constant 0 : index
    %c80_195 = arith.constant 80 : index
    %223 = vector.load %arg8[%c0_194, %c80_195] : memref<4x384xf32, #tpu.memory_space<vmem>>, vector<4x256xf32>
    %c68_196 = arith.constant 68 : index
    %c0_197 = arith.constant 0 : index
    %224 = vector.load %arg9[%c68_196, %c0_197] : memref<100x256xf32, #tpu.memory_space<vmem>>, vector<4x256xf32>
    tpu.vector_store %arg9[%c68_196, %c0_197], %223 {strides = array<i32>} : memref<100x256xf32, #tpu.memory_space<vmem>>, vector<4x256xf32>,
    %c0_198 = arith.constant 0 : index
    %c81_199 = arith.constant 81 : index
    %225 = vector.load %arg8[%c0_198, %c81_199] : memref<4x384xf32, #tpu.memory_space<vmem>>, vector<4x256xf32>
    %cst_200 = arith.constant 0.000000e+00 : f32
    %226 = vector.broadcast %cst_200 : f32 to vector<4x256xf32>
    %227 = arith.select %47, %225, %226 : vector<4x256xi1>, vector<4x256xf32>
    %c72_201 = arith.constant 72 : index
    %c0_202 = arith.constant 0 : index
    %228 = vector.load %arg9[%c72_201, %c0_202] : memref<100x256xf32, #tpu.memory_space<vmem>>, vector<4x256xf32>
    tpu.vector_store %arg9[%c72_201, %c0_202], %227 {strides = array<i32>} : memref<100x256xf32, #tpu.memory_space<vmem>>, vector<4x256xf32>,
    %c0_203 = arith.constant 0 : index
    %c82_204 = arith.constant 82 : index
    %229 = vector.load %arg8[%c0_203, %c82_204] : memref<4x384xf32, #tpu.memory_space<vmem>>, vector<4x256xf32>
    %cst_205 = arith.constant 0.000000e+00 : f32
    %230 = vector.broadcast %cst_205 : f32 to vector<4x256xf32>
    %231 = arith.select %56, %229, %230 : vector<4x256xi1>, vector<4x256xf32>
    %c76_206 = arith.constant 76 : index
    %c0_207 = arith.constant 0 : index
    %232 = vector.load %arg9[%c76_206, %c0_207] : memref<100x256xf32, #tpu.memory_space<vmem>>, vector<4x256xf32>
    tpu.vector_store %arg9[%c76_206, %c0_207], %231 {strides = array<i32>} : memref<100x256xf32, #tpu.memory_space<vmem>>, vector<4x256xf32>,
    %c0_208 = arith.constant 0 : index
    %c94_209 = arith.constant 94 : index
    %233 = vector.load %arg8[%c0_208, %c94_209] : memref<4x384xf32, #tpu.memory_space<vmem>>, vector<4x256xf32>
    %cst_210 = arith.constant 0.000000e+00 : f32
    %234 = vector.broadcast %cst_210 : f32 to vector<4x256xf32>
    %235 = arith.select %29, %233, %234 : vector<4x256xi1>, vector<4x256xf32>
    %c80_211 = arith.constant 80 : index
    %c0_212 = arith.constant 0 : index
    %236 = vector.load %arg9[%c80_211, %c0_212] : memref<100x256xf32, #tpu.memory_space<vmem>>, vector<4x256xf32>
    tpu.vector_store %arg9[%c80_211, %c0_212], %235 {strides = array<i32>} : memref<100x256xf32, #tpu.memory_space<vmem>>, vector<4x256xf32>,
    %c0_213 = arith.constant 0 : index
    %c95_214 = arith.constant 95 : index
    %237 = vector.load %arg8[%c0_213, %c95_214] : memref<4x384xf32, #tpu.memory_space<vmem>>, vector<4x256xf32>
    %cst_215 = arith.constant 0.000000e+00 : f32
    %238 = vector.broadcast %cst_215 : f32 to vector<4x256xf32>
    %239 = arith.select %38, %237, %238 : vector<4x256xi1>, vector<4x256xf32>
    %c84_216 = arith.constant 84 : index
    %c0_217 = arith.constant 0 : index
    %240 = vector.load %arg9[%c84_216, %c0_217] : memref<100x256xf32, #tpu.memory_space<vmem>>, vector<4x256xf32>
    tpu.vector_store %arg9[%c84_216, %c0_217], %239 {strides = array<i32>} : memref<100x256xf32, #tpu.memory_space<vmem>>, vector<4x256xf32>,
    %c0_218 = arith.constant 0 : index
    %c96_219 = arith.constant 96 : index
    %241 = vector.load %arg8[%c0_218, %c96_219] : memref<4x384xf32, #tpu.memory_space<vmem>>, vector<4x256xf32>
    %c88_220 = arith.constant 88 : index
    %c0_221 = arith.constant 0 : index
    %242 = vector.load %arg9[%c88_220, %c0_221] : memref<100x256xf32, #tpu.memory_space<vmem>>, vector<4x256xf32>
    tpu.vector_store %arg9[%c88_220, %c0_221], %241 {strides = array<i32>} : memref<100x256xf32, #tpu.memory_space<vmem>>, vector<4x256xf32>,
    %c0_222 = arith.constant 0 : index
    %c97_223 = arith.constant 97 : index
    %243 = vector.load %arg8[%c0_222, %c97_223] : memref<4x384xf32, #tpu.memory_space<vmem>>, vector<4x256xf32>
    %cst_224 = arith.constant 0.000000e+00 : f32
    %244 = vector.broadcast %cst_224 : f32 to vector<4x256xf32>
    %245 = arith.select %47, %243, %244 : vector<4x256xi1>, vector<4x256xf32>
    %c92_225 = arith.constant 92 : index
    %c0_226 = arith.constant 0 : index
    %246 = vector.load %arg9[%c92_225, %c0_226] : memref<100x256xf32, #tpu.memory_space<vmem>>, vector<4x256xf32>
    tpu.vector_store %arg9[%c92_225, %c0_226], %245 {strides = array<i32>} : memref<100x256xf32, #tpu.memory_space<vmem>>, vector<4x256xf32>,
    %c0_227 = arith.constant 0 : index
    %c98_228 = arith.constant 98 : index
    %247 = vector.load %arg8[%c0_227, %c98_228] : memref<4x384xf32, #tpu.memory_space<vmem>>, vector<4x256xf32>
    %cst_229 = arith.constant 0.000000e+00 : f32
    %248 = vector.broadcast %cst_229 : f32 to vector<4x256xf32>
    %249 = arith.select %56, %247, %248 : vector<4x256xi1>, vector<4x256xf32>
    %c96_230 = arith.constant 96 : index
    %c0_231 = arith.constant 0 : index
    %250 = vector.load %arg9[%c96_230, %c0_231] : memref<100x256xf32, #tpu.memory_space<vmem>>, vector<4x256xf32>
    tpu.vector_store %arg9[%c96_230, %c0_231], %249 {strides = array<i32>} : memref<100x256xf32, #tpu.memory_space<vmem>>, vector<4x256xf32>,
    %c0_232 = arith.constant 0 : index
    %c0_233 = arith.constant 0 : index
    %c0_234 = arith.constant 0 : index
    %251 = vector.load %arg4[%c0_232, %c0_233, %c0_234] : memref<2x4x100xf32, #tpu.memory_space<vmem>>, vector<1x4x100xf32>
    %252 = vector.shape_cast %251 : vector<1x4x100xf32> to vector<4x100xf32>
    %c0_235 = arith.constant 0 : index
    %c0_236 = arith.constant 0 : index
    %253 = vector.load %arg9[%c0_235, %c0_236] : memref<100x256xf32, #tpu.memory_space<vmem>>, vector<100x256xf32>
    %cst_237 = arith.constant dense<0.000000e+00> : vector<4x256xf32>
    %254 = tpu.matmul %252, %253, %cst_237 {dimension_numbers = #tpu.dot_dimension_numbers<[1], [0], [0], [1], [0, 0, 1, 1], [], []>} : vector<4x100xf32>, vector<100x256xf32>, vector<4x256xf32> -> vector<4x256xf32>
    %c0_238 = arith.constant 0 : index
    %c0_239 = arith.constant 0 : index
    %c0_240 = arith.constant 0 : index
    %255 = vector.load %arg5[%c0_238, %c0_239, %c0_240] : memref<2x4x1xf32, #tpu.memory_space<vmem>>, vector<1x4x1xf32>
    %256 = vector.shape_cast %255 : vector<1x4x1xf32> to vector<4x1xf32>
    %257 = vector.broadcast %256 : vector<4x1xf32> to vector<4x256xf32>
    %258 = arith.addf %254, %257 : vector<4x256xf32>
    %259 = arith.addf %58, %258 : vector<4x256xf32>
    %cst_241 = arith.constant 0.000000e+00 : f32
    %260 = vector.broadcast %cst_241 : f32 to vector<4x256xf32>
    %261 = arith.maximumf %259, %260 : vector<4x256xf32>
    %c0_242 = arith.constant 0 : index
    %c64_243 = arith.constant 64 : index
    %262 = vector.load %arg8[%c0_242, %c64_243] : memref<4x384xf32, #tpu.memory_space<vmem>>, vector<4x256xf32>
    tpu.vector_store %arg8[%c0_242, %c64_243], %261 {strides = array<i32>} : memref<4x384xf32, #tpu.memory_space<vmem>>, vector<4x256xf32>,
    %c0_244 = arith.constant 0 : index
    %c30_245 = arith.constant 30 : index
    %263 = vector.load %arg8[%c0_244, %c30_245] : memref<4x384xf32, #tpu.memory_space<vmem>>, vector<4x256xf32>
    %cst_246 = arith.constant 0.000000e+00 : f32
    %264 = vector.broadcast %cst_246 : f32 to vector<4x256xf32>
    %265 = arith.select %29, %263, %264 : vector<4x256xi1>, vector<4x256xf32>
    %c0_247 = arith.constant 0 : index
    %c0_248 = arith.constant 0 : index
    %266 = vector.load %arg9[%c0_247, %c0_248] : memref<100x256xf32, #tpu.memory_space<vmem>>, vector<4x256xf32>
    tpu.vector_store %arg9[%c0_247, %c0_248], %265 {strides = array<i32>} : memref<100x256xf32, #tpu.memory_space<vmem>>, vector<4x256xf32>,
    %c0_249 = arith.constant 0 : index
    %c31_250 = arith.constant 31 : index
    %267 = vector.load %arg8[%c0_249, %c31_250] : memref<4x384xf32, #tpu.memory_space<vmem>>, vector<4x256xf32>
    %cst_251 = arith.constant 0.000000e+00 : f32
    %268 = vector.broadcast %cst_251 : f32 to vector<4x256xf32>
    %269 = arith.select %38, %267, %268 : vector<4x256xi1>, vector<4x256xf32>
    %c4_252 = arith.constant 4 : index
    %c0_253 = arith.constant 0 : index
    %270 = vector.load %arg9[%c4_252, %c0_253] : memref<100x256xf32, #tpu.memory_space<vmem>>, vector<4x256xf32>
    tpu.vector_store %arg9[%c4_252, %c0_253], %269 {strides = array<i32>} : memref<100x256xf32, #tpu.memory_space<vmem>>, vector<4x256xf32>,
    %c0_254 = arith.constant 0 : index
    %c32_255 = arith.constant 32 : index
    %271 = vector.load %arg8[%c0_254, %c32_255] : memref<4x384xf32, #tpu.memory_space<vmem>>, vector<4x256xf32>
    %c8_256 = arith.constant 8 : index
    %c0_257 = arith.constant 0 : index
    %272 = vector.load %arg9[%c8_256, %c0_257] : memref<100x256xf32, #tpu.memory_space<vmem>>, vector<4x256xf32>
    tpu.vector_store %arg9[%c8_256, %c0_257], %271 {strides = array<i32>} : memref<100x256xf32, #tpu.memory_space<vmem>>, vector<4x256xf32>,
    %c0_258 = arith.constant 0 : index
    %c33_259 = arith.constant 33 : index
    %273 = vector.load %arg8[%c0_258, %c33_259] : memref<4x384xf32, #tpu.memory_space<vmem>>, vector<4x256xf32>
    %cst_260 = arith.constant 0.000000e+00 : f32
    %274 = vector.broadcast %cst_260 : f32 to vector<4x256xf32>
    %275 = arith.select %47, %273, %274 : vector<4x256xi1>, vector<4x256xf32>
    %c12_261 = arith.constant 12 : index
    %c0_262 = arith.constant 0 : index
    %276 = vector.load %arg9[%c12_261, %c0_262] : memref<100x256xf32, #tpu.memory_space<vmem>>, vector<4x256xf32>
    tpu.vector_store %arg9[%c12_261, %c0_262], %275 {strides = array<i32>} : memref<100x256xf32, #tpu.memory_space<vmem>>, vector<4x256xf32>,
    %c0_263 = arith.constant 0 : index
    %c34_264 = arith.constant 34 : index
    %277 = vector.load %arg8[%c0_263, %c34_264] : memref<4x384xf32, #tpu.memory_space<vmem>>, vector<4x256xf32>
    %cst_265 = arith.constant 0.000000e+00 : f32
    %278 = vector.broadcast %cst_265 : f32 to vector<4x256xf32>
    %279 = arith.select %56, %277, %278 : vector<4x256xi1>, vector<4x256xf32>
    %c16_266 = arith.constant 16 : index
    %c0_267 = arith.constant 0 : index
    %280 = vector.load %arg9[%c16_266, %c0_267] : memref<100x256xf32, #tpu.memory_space<vmem>>, vector<4x256xf32>
    tpu.vector_store %arg9[%c16_266, %c0_267], %279 {strides = array<i32>} : memref<100x256xf32, #tpu.memory_space<vmem>>, vector<4x256xf32>,
    %c0_268 = arith.constant 0 : index
    %c46_269 = arith.constant 46 : index
    %281 = vector.load %arg8[%c0_268, %c46_269] : memref<4x384xf32, #tpu.memory_space<vmem>>, vector<4x256xf32>
    %cst_270 = arith.constant 0.000000e+00 : f32
    %282 = vector.broadcast %cst_270 : f32 to vector<4x256xf32>
    %283 = arith.select %29, %281, %282 : vector<4x256xi1>, vector<4x256xf32>
    %c20_271 = arith.constant 20 : index
    %c0_272 = arith.constant 0 : index
    %284 = vector.load %arg9[%c20_271, %c0_272] : memref<100x256xf32, #tpu.memory_space<vmem>>, vector<4x256xf32>
    tpu.vector_store %arg9[%c20_271, %c0_272], %283 {strides = array<i32>} : memref<100x256xf32, #tpu.memory_space<vmem>>, vector<4x256xf32>,
    %c0_273 = arith.constant 0 : index
    %c47_274 = arith.constant 47 : index
    %285 = vector.load %arg8[%c0_273, %c47_274] : memref<4x384xf32, #tpu.memory_space<vmem>>, vector<4x256xf32>
    %cst_275 = arith.constant 0.000000e+00 : f32
    %286 = vector.broadcast %cst_275 : f32 to vector<4x256xf32>
    %287 = arith.select %38, %285, %286 : vector<4x256xi1>, vector<4x256xf32>
    %c24_276 = arith.constant 24 : index
    %c0_277 = arith.constant 0 : index
    %288 = vector.load %arg9[%c24_276, %c0_277] : memref<100x256xf32, #tpu.memory_space<vmem>>, vector<4x256xf32>
    tpu.vector_store %arg9[%c24_276, %c0_277], %287 {strides = array<i32>} : memref<100x256xf32, #tpu.memory_space<vmem>>, vector<4x256xf32>,
    %c0_278 = arith.constant 0 : index
    %c48_279 = arith.constant 48 : index
    %289 = vector.load %arg8[%c0_278, %c48_279] : memref<4x384xf32, #tpu.memory_space<vmem>>, vector<4x256xf32>
    %c28_280 = arith.constant 28 : index
    %c0_281 = arith.constant 0 : index
    %290 = vector.load %arg9[%c28_280, %c0_281] : memref<100x256xf32, #tpu.memory_space<vmem>>, vector<4x256xf32>
    tpu.vector_store %arg9[%c28_280, %c0_281], %289 {strides = array<i32>} : memref<100x256xf32, #tpu.memory_space<vmem>>, vector<4x256xf32>,
    %c0_282 = arith.constant 0 : index
    %c49_283 = arith.constant 49 : index
    %291 = vector.load %arg8[%c0_282, %c49_283] : memref<4x384xf32, #tpu.memory_space<vmem>>, vector<4x256xf32>
    %cst_284 = arith.constant 0.000000e+00 : f32
    %292 = vector.broadcast %cst_284 : f32 to vector<4x256xf32>
    %293 = arith.select %47, %291, %292 : vector<4x256xi1>, vector<4x256xf32>
    %c32_285 = arith.constant 32 : index
    %c0_286 = arith.constant 0 : index
    %294 = vector.load %arg9[%c32_285, %c0_286] : memref<100x256xf32, #tpu.memory_space<vmem>>, vector<4x256xf32>
    tpu.vector_store %arg9[%c32_285, %c0_286], %293 {strides = array<i32>} : memref<100x256xf32, #tpu.memory_space<vmem>>, vector<4x256xf32>,
    %c0_287 = arith.constant 0 : index
    %c50_288 = arith.constant 50 : index
    %295 = vector.load %arg8[%c0_287, %c50_288] : memref<4x384xf32, #tpu.memory_space<vmem>>, vector<4x256xf32>
    %cst_289 = arith.constant 0.000000e+00 : f32
    %296 = vector.broadcast %cst_289 : f32 to vector<4x256xf32>
    %297 = arith.select %56, %295, %296 : vector<4x256xi1>, vector<4x256xf32>
    %c36_290 = arith.constant 36 : index
    %c0_291 = arith.constant 0 : index
    %298 = vector.load %arg9[%c36_290, %c0_291] : memref<100x256xf32, #tpu.memory_space<vmem>>, vector<4x256xf32>
    tpu.vector_store %arg9[%c36_290, %c0_291], %297 {strides = array<i32>} : memref<100x256xf32, #tpu.memory_space<vmem>>, vector<4x256xf32>,
    %c0_292 = arith.constant 0 : index
    %c62_293 = arith.constant 62 : index
    %299 = vector.load %arg8[%c0_292, %c62_293] : memref<4x384xf32, #tpu.memory_space<vmem>>, vector<4x256xf32>
    %cst_294 = arith.constant 0.000000e+00 : f32
    %300 = vector.broadcast %cst_294 : f32 to vector<4x256xf32>
    %301 = arith.select %29, %299, %300 : vector<4x256xi1>, vector<4x256xf32>
    %c40_295 = arith.constant 40 : index
    %c0_296 = arith.constant 0 : index
    %302 = vector.load %arg9[%c40_295, %c0_296] : memref<100x256xf32, #tpu.memory_space<vmem>>, vector<4x256xf32>
    tpu.vector_store %arg9[%c40_295, %c0_296], %301 {strides = array<i32>} : memref<100x256xf32, #tpu.memory_space<vmem>>, vector<4x256xf32>,
    %c0_297 = arith.constant 0 : index
    %c63_298 = arith.constant 63 : index
    %303 = vector.load %arg8[%c0_297, %c63_298] : memref<4x384xf32, #tpu.memory_space<vmem>>, vector<4x256xf32>
    %cst_299 = arith.constant 0.000000e+00 : f32
    %304 = vector.broadcast %cst_299 : f32 to vector<4x256xf32>
    %305 = arith.select %38, %303, %304 : vector<4x256xi1>, vector<4x256xf32>
    %c44_300 = arith.constant 44 : index
    %c0_301 = arith.constant 0 : index
    %306 = vector.load %arg9[%c44_300, %c0_301] : memref<100x256xf32, #tpu.memory_space<vmem>>, vector<4x256xf32>
    tpu.vector_store %arg9[%c44_300, %c0_301], %305 {strides = array<i32>} : memref<100x256xf32, #tpu.memory_space<vmem>>, vector<4x256xf32>,
    %c0_302 = arith.constant 0 : index
    %c64_303 = arith.constant 64 : index
    %307 = vector.load %arg8[%c0_302, %c64_303] : memref<4x384xf32, #tpu.memory_space<vmem>>, vector<4x256xf32>
    %c48_304 = arith.constant 48 : index
    %c0_305 = arith.constant 0 : index
    %308 = vector.load %arg9[%c48_304, %c0_305] : memref<100x256xf32, #tpu.memory_space<vmem>>, vector<4x256xf32>
    tpu.vector_store %arg9[%c48_304, %c0_305], %307 {strides = array<i32>} : memref<100x256xf32, #tpu.memory_space<vmem>>, vector<4x256xf32>,
    %c0_306 = arith.constant 0 : index
    %c65_307 = arith.constant 65 : index
    %309 = vector.load %arg8[%c0_306, %c65_307] : memref<4x384xf32, #tpu.memory_space<vmem>>, vector<4x256xf32>
    %cst_308 = arith.constant 0.000000e+00 : f32
    %310 = vector.broadcast %cst_308 : f32 to vector<4x256xf32>
    %311 = arith.select %47, %309, %310 : vector<4x256xi1>, vector<4x256xf32>
    %c52_309 = arith.constant 52 : index
    %c0_310 = arith.constant 0 : index
    %312 = vector.load %arg9[%c52_309, %c0_310] : memref<100x256xf32, #tpu.memory_space<vmem>>, vector<4x256xf32>
    tpu.vector_store %arg9[%c52_309, %c0_310], %311 {strides = array<i32>} : memref<100x256xf32, #tpu.memory_space<vmem>>, vector<4x256xf32>,
    %c0_311 = arith.constant 0 : index
    %c66_312 = arith.constant 66 : index
    %313 = vector.load %arg8[%c0_311, %c66_312] : memref<4x384xf32, #tpu.memory_space<vmem>>, vector<4x256xf32>
    %cst_313 = arith.constant 0.000000e+00 : f32
    %314 = vector.broadcast %cst_313 : f32 to vector<4x256xf32>
    %315 = arith.select %56, %313, %314 : vector<4x256xi1>, vector<4x256xf32>
    %c56_314 = arith.constant 56 : index
    %c0_315 = arith.constant 0 : index
    %316 = vector.load %arg9[%c56_314, %c0_315] : memref<100x256xf32, #tpu.memory_space<vmem>>, vector<4x256xf32>
    tpu.vector_store %arg9[%c56_314, %c0_315], %315 {strides = array<i32>} : memref<100x256xf32, #tpu.memory_space<vmem>>, vector<4x256xf32>,
    %c0_316 = arith.constant 0 : index
    %c78_317 = arith.constant 78 : index
    %317 = vector.load %arg8[%c0_316, %c78_317] : memref<4x384xf32, #tpu.memory_space<vmem>>, vector<4x256xf32>
    %cst_318 = arith.constant 0.000000e+00 : f32
    %318 = vector.broadcast %cst_318 : f32 to vector<4x256xf32>
    %319 = arith.select %29, %317, %318 : vector<4x256xi1>, vector<4x256xf32>
    %c60_319 = arith.constant 60 : index
    %c0_320 = arith.constant 0 : index
    %320 = vector.load %arg9[%c60_319, %c0_320] : memref<100x256xf32, #tpu.memory_space<vmem>>, vector<4x256xf32>
    tpu.vector_store %arg9[%c60_319, %c0_320], %319 {strides = array<i32>} : memref<100x256xf32, #tpu.memory_space<vmem>>, vector<4x256xf32>,
    %c0_321 = arith.constant 0 : index
    %c79_322 = arith.constant 79 : index
    %321 = vector.load %arg8[%c0_321, %c79_322] : memref<4x384xf32, #tpu.memory_space<vmem>>, vector<4x256xf32>
    %cst_323 = arith.constant 0.000000e+00 : f32
    %322 = vector.broadcast %cst_323 : f32 to vector<4x256xf32>
    %323 = arith.select %38, %321, %322 : vector<4x256xi1>, vector<4x256xf32>
    %c64_324 = arith.constant 64 : index
    %c0_325 = arith.constant 0 : index
    %324 = vector.load %arg9[%c64_324, %c0_325] : memref<100x256xf32, #tpu.memory_space<vmem>>, vector<4x256xf32>
    tpu.vector_store %arg9[%c64_324, %c0_325], %323 {strides = array<i32>} : memref<100x256xf32, #tpu.memory_space<vmem>>, vector<4x256xf32>,
    %c0_326 = arith.constant 0 : index
    %c80_327 = arith.constant 80 : index
    %325 = vector.load %arg8[%c0_326, %c80_327] : memref<4x384xf32, #tpu.memory_space<vmem>>, vector<4x256xf32>
    %c68_328 = arith.constant 68 : index
    %c0_329 = arith.constant 0 : index
    %326 = vector.load %arg9[%c68_328, %c0_329] : memref<100x256xf32, #tpu.memory_space<vmem>>, vector<4x256xf32>
    tpu.vector_store %arg9[%c68_328, %c0_329], %325 {strides = array<i32>} : memref<100x256xf32, #tpu.memory_space<vmem>>, vector<4x256xf32>,
    %c0_330 = arith.constant 0 : index
    %c81_331 = arith.constant 81 : index
    %327 = vector.load %arg8[%c0_330, %c81_331] : memref<4x384xf32, #tpu.memory_space<vmem>>, vector<4x256xf32>
    %cst_332 = arith.constant 0.000000e+00 : f32
    %328 = vector.broadcast %cst_332 : f32 to vector<4x256xf32>
    %329 = arith.select %47, %327, %328 : vector<4x256xi1>, vector<4x256xf32>
    %c72_333 = arith.constant 72 : index
    %c0_334 = arith.constant 0 : index
    %330 = vector.load %arg9[%c72_333, %c0_334] : memref<100x256xf32, #tpu.memory_space<vmem>>, vector<4x256xf32>
    tpu.vector_store %arg9[%c72_333, %c0_334], %329 {strides = array<i32>} : memref<100x256xf32, #tpu.memory_space<vmem>>, vector<4x256xf32>,
    %c0_335 = arith.constant 0 : index
    %c82_336 = arith.constant 82 : index
    %331 = vector.load %arg8[%c0_335, %c82_336] : memref<4x384xf32, #tpu.memory_space<vmem>>, vector<4x256xf32>
    %cst_337 = arith.constant 0.000000e+00 : f32
    %332 = vector.broadcast %cst_337 : f32 to vector<4x256xf32>
    %333 = arith.select %56, %331, %332 : vector<4x256xi1>, vector<4x256xf32>
    %c76_338 = arith.constant 76 : index
    %c0_339 = arith.constant 0 : index
    %334 = vector.load %arg9[%c76_338, %c0_339] : memref<100x256xf32, #tpu.memory_space<vmem>>, vector<4x256xf32>
    tpu.vector_store %arg9[%c76_338, %c0_339], %333 {strides = array<i32>} : memref<100x256xf32, #tpu.memory_space<vmem>>, vector<4x256xf32>,
    %c0_340 = arith.constant 0 : index
    %c94_341 = arith.constant 94 : index
    %335 = vector.load %arg8[%c0_340, %c94_341] : memref<4x384xf32, #tpu.memory_space<vmem>>, vector<4x256xf32>
    %cst_342 = arith.constant 0.000000e+00 : f32
    %336 = vector.broadcast %cst_342 : f32 to vector<4x256xf32>
    %337 = arith.select %29, %335, %336 : vector<4x256xi1>, vector<4x256xf32>
    %c80_343 = arith.constant 80 : index
    %c0_344 = arith.constant 0 : index
    %338 = vector.load %arg9[%c80_343, %c0_344] : memref<100x256xf32, #tpu.memory_space<vmem>>, vector<4x256xf32>
    tpu.vector_store %arg9[%c80_343, %c0_344], %337 {strides = array<i32>} : memref<100x256xf32, #tpu.memory_space<vmem>>, vector<4x256xf32>,
    %c0_345 = arith.constant 0 : index
    %c95_346 = arith.constant 95 : index
    %339 = vector.load %arg8[%c0_345, %c95_346] : memref<4x384xf32, #tpu.memory_space<vmem>>, vector<4x256xf32>
    %cst_347 = arith.constant 0.000000e+00 : f32
    %340 = vector.broadcast %cst_347 : f32 to vector<4x256xf32>
    %341 = arith.select %38, %339, %340 : vector<4x256xi1>, vector<4x256xf32>
    %c84_348 = arith.constant 84 : index
    %c0_349 = arith.constant 0 : index
    %342 = vector.load %arg9[%c84_348, %c0_349] : memref<100x256xf32, #tpu.memory_space<vmem>>, vector<4x256xf32>
    tpu.vector_store %arg9[%c84_348, %c0_349], %341 {strides = array<i32>} : memref<100x256xf32, #tpu.memory_space<vmem>>, vector<4x256xf32>,
    %c0_350 = arith.constant 0 : index
    %c96_351 = arith.constant 96 : index
    %343 = vector.load %arg8[%c0_350, %c96_351] : memref<4x384xf32, #tpu.memory_space<vmem>>, vector<4x256xf32>
    %c88_352 = arith.constant 88 : index
    %c0_353 = arith.constant 0 : index
    %344 = vector.load %arg9[%c88_352, %c0_353] : memref<100x256xf32, #tpu.memory_space<vmem>>, vector<4x256xf32>
    tpu.vector_store %arg9[%c88_352, %c0_353], %343 {strides = array<i32>} : memref<100x256xf32, #tpu.memory_space<vmem>>, vector<4x256xf32>,
    %c0_354 = arith.constant 0 : index
    %c97_355 = arith.constant 97 : index
    %345 = vector.load %arg8[%c0_354, %c97_355] : memref<4x384xf32, #tpu.memory_space<vmem>>, vector<4x256xf32>
    %cst_356 = arith.constant 0.000000e+00 : f32
    %346 = vector.broadcast %cst_356 : f32 to vector<4x256xf32>
    %347 = arith.select %47, %345, %346 : vector<4x256xi1>, vector<4x256xf32>
    %c92_357 = arith.constant 92 : index
    %c0_358 = arith.constant 0 : index
    %348 = vector.load %arg9[%c92_357, %c0_358] : memref<100x256xf32, #tpu.memory_space<vmem>>, vector<4x256xf32>
    tpu.vector_store %arg9[%c92_357, %c0_358], %347 {strides = array<i32>} : memref<100x256xf32, #tpu.memory_space<vmem>>, vector<4x256xf32>,
    %c0_359 = arith.constant 0 : index
    %c98_360 = arith.constant 98 : index
    %349 = vector.load %arg8[%c0_359, %c98_360] : memref<4x384xf32, #tpu.memory_space<vmem>>, vector<4x256xf32>
    %cst_361 = arith.constant 0.000000e+00 : f32
    %350 = vector.broadcast %cst_361 : f32 to vector<4x256xf32>
    %351 = arith.select %56, %349, %350 : vector<4x256xi1>, vector<4x256xf32>
    %c96_362 = arith.constant 96 : index
    %c0_363 = arith.constant 0 : index
    %352 = vector.load %arg9[%c96_362, %c0_363] : memref<100x256xf32, #tpu.memory_space<vmem>>, vector<4x256xf32>
    tpu.vector_store %arg9[%c96_362, %c0_363], %351 {strides = array<i32>} : memref<100x256xf32, #tpu.memory_space<vmem>>, vector<4x256xf32>,
    %c1 = arith.constant 1 : index
    %c0_364 = arith.constant 0 : index
    %c0_365 = arith.constant 0 : index
    %353 = vector.load %arg2[%c1, %c0_364, %c0_365] : memref<2x4x100xf32, #tpu.memory_space<vmem>>, vector<1x4x100xf32>
    %354 = vector.shape_cast %353 : vector<1x4x100xf32> to vector<4x100xf32>
    %c0_366 = arith.constant 0 : index
    %c0_367 = arith.constant 0 : index
    %355 = vector.load %arg9[%c0_366, %c0_367] : memref<100x256xf32, #tpu.memory_space<vmem>>, vector<100x256xf32>
    %cst_368 = arith.constant dense<0.000000e+00> : vector<4x256xf32>
    %356 = tpu.matmul %354, %355, %cst_368 {dimension_numbers = #tpu.dot_dimension_numbers<[1], [0], [0], [1], [0, 0, 1, 1], [], []>} : vector<4x100xf32>, vector<100x256xf32>, vector<4x256xf32> -> vector<4x256xf32>
    %c1_369 = arith.constant 1 : index
    %c0_370 = arith.constant 0 : index
    %c0_371 = arith.constant 0 : index
    %357 = vector.load %arg3[%c1_369, %c0_370, %c0_371] : memref<2x4x1xf32, #tpu.memory_space<vmem>>, vector<1x4x1xf32>
    %358 = vector.shape_cast %357 : vector<1x4x1xf32> to vector<4x1xf32>
    %359 = vector.broadcast %358 : vector<4x1xf32> to vector<4x256xf32>
    %360 = arith.addf %356, %359 : vector<4x256xf32>
    %cst_372 = arith.constant 0.000000e+00 : f32
    %361 = vector.broadcast %cst_372 : f32 to vector<4x256xf32>
    %362 = arith.maximumf %360, %361 : vector<4x256xf32>
    %c0_373 = arith.constant 0 : index
    %c64_374 = arith.constant 64 : index
    %363 = vector.load %arg8[%c0_373, %c64_374] : memref<4x384xf32, #tpu.memory_space<vmem>>, vector<4x256xf32>
    tpu.vector_store %arg8[%c0_373, %c64_374], %362 {strides = array<i32>} : memref<4x384xf32, #tpu.memory_space<vmem>>, vector<4x256xf32>,
    %c0_375 = arith.constant 0 : index
    %c30_376 = arith.constant 30 : index
    %364 = vector.load %arg8[%c0_375, %c30_376] : memref<4x384xf32, #tpu.memory_space<vmem>>, vector<4x256xf32>
    %cst_377 = arith.constant 0.000000e+00 : f32
    %365 = vector.broadcast %cst_377 : f32 to vector<4x256xf32>
    %366 = arith.select %29, %364, %365 : vector<4x256xi1>, vector<4x256xf32>
    %c0_378 = arith.constant 0 : index
    %c0_379 = arith.constant 0 : index
    %367 = vector.load %arg9[%c0_378, %c0_379] : memref<100x256xf32, #tpu.memory_space<vmem>>, vector<4x256xf32>
    tpu.vector_store %arg9[%c0_378, %c0_379], %366 {strides = array<i32>} : memref<100x256xf32, #tpu.memory_space<vmem>>, vector<4x256xf32>,
    %c0_380 = arith.constant 0 : index
    %c31_381 = arith.constant 31 : index
    %368 = vector.load %arg8[%c0_380, %c31_381] : memref<4x384xf32, #tpu.memory_space<vmem>>, vector<4x256xf32>
    %cst_382 = arith.constant 0.000000e+00 : f32
    %369 = vector.broadcast %cst_382 : f32 to vector<4x256xf32>
    %370 = arith.select %38, %368, %369 : vector<4x256xi1>, vector<4x256xf32>
    %c4_383 = arith.constant 4 : index
    %c0_384 = arith.constant 0 : index
    %371 = vector.load %arg9[%c4_383, %c0_384] : memref<100x256xf32, #tpu.memory_space<vmem>>, vector<4x256xf32>
    tpu.vector_store %arg9[%c4_383, %c0_384], %370 {strides = array<i32>} : memref<100x256xf32, #tpu.memory_space<vmem>>, vector<4x256xf32>,
    %c0_385 = arith.constant 0 : index
    %c32_386 = arith.constant 32 : index
    %372 = vector.load %arg8[%c0_385, %c32_386] : memref<4x384xf32, #tpu.memory_space<vmem>>, vector<4x256xf32>
    %c8_387 = arith.constant 8 : index
    %c0_388 = arith.constant 0 : index
    %373 = vector.load %arg9[%c8_387, %c0_388] : memref<100x256xf32, #tpu.memory_space<vmem>>, vector<4x256xf32>
    tpu.vector_store %arg9[%c8_387, %c0_388], %372 {strides = array<i32>} : memref<100x256xf32, #tpu.memory_space<vmem>>, vector<4x256xf32>,
    %c0_389 = arith.constant 0 : index
    %c33_390 = arith.constant 33 : index
    %374 = vector.load %arg8[%c0_389, %c33_390] : memref<4x384xf32, #tpu.memory_space<vmem>>, vector<4x256xf32>
    %cst_391 = arith.constant 0.000000e+00 : f32
    %375 = vector.broadcast %cst_391 : f32 to vector<4x256xf32>
    %376 = arith.select %47, %374, %375 : vector<4x256xi1>, vector<4x256xf32>
    %c12_392 = arith.constant 12 : index
    %c0_393 = arith.constant 0 : index
    %377 = vector.load %arg9[%c12_392, %c0_393] : memref<100x256xf32, #tpu.memory_space<vmem>>, vector<4x256xf32>
    tpu.vector_store %arg9[%c12_392, %c0_393], %376 {strides = array<i32>} : memref<100x256xf32, #tpu.memory_space<vmem>>, vector<4x256xf32>,
    %c0_394 = arith.constant 0 : index
    %c34_395 = arith.constant 34 : index
    %378 = vector.load %arg8[%c0_394, %c34_395] : memref<4x384xf32, #tpu.memory_space<vmem>>, vector<4x256xf32>
    %cst_396 = arith.constant 0.000000e+00 : f32
    %379 = vector.broadcast %cst_396 : f32 to vector<4x256xf32>
    %380 = arith.select %56, %378, %379 : vector<4x256xi1>, vector<4x256xf32>
    %c16_397 = arith.constant 16 : index
    %c0_398 = arith.constant 0 : index
    %381 = vector.load %arg9[%c16_397, %c0_398] : memref<100x256xf32, #tpu.memory_space<vmem>>, vector<4x256xf32>
    tpu.vector_store %arg9[%c16_397, %c0_398], %380 {strides = array<i32>} : memref<100x256xf32, #tpu.memory_space<vmem>>, vector<4x256xf32>,
    %c0_399 = arith.constant 0 : index
    %c46_400 = arith.constant 46 : index
    %382 = vector.load %arg8[%c0_399, %c46_400] : memref<4x384xf32, #tpu.memory_space<vmem>>, vector<4x256xf32>
    %cst_401 = arith.constant 0.000000e+00 : f32
    %383 = vector.broadcast %cst_401 : f32 to vector<4x256xf32>
    %384 = arith.select %29, %382, %383 : vector<4x256xi1>, vector<4x256xf32>
    %c20_402 = arith.constant 20 : index
    %c0_403 = arith.constant 0 : index
    %385 = vector.load %arg9[%c20_402, %c0_403] : memref<100x256xf32, #tpu.memory_space<vmem>>, vector<4x256xf32>
    tpu.vector_store %arg9[%c20_402, %c0_403], %384 {strides = array<i32>} : memref<100x256xf32, #tpu.memory_space<vmem>>, vector<4x256xf32>,
    %c0_404 = arith.constant 0 : index
    %c47_405 = arith.constant 47 : index
    %386 = vector.load %arg8[%c0_404, %c47_405] : memref<4x384xf32, #tpu.memory_space<vmem>>, vector<4x256xf32>
    %cst_406 = arith.constant 0.000000e+00 : f32
    %387 = vector.broadcast %cst_406 : f32 to vector<4x256xf32>
    %388 = arith.select %38, %386, %387 : vector<4x256xi1>, vector<4x256xf32>
    %c24_407 = arith.constant 24 : index
    %c0_408 = arith.constant 0 : index
    %389 = vector.load %arg9[%c24_407, %c0_408] : memref<100x256xf32, #tpu.memory_space<vmem>>, vector<4x256xf32>
    tpu.vector_store %arg9[%c24_407, %c0_408], %388 {strides = array<i32>} : memref<100x256xf32, #tpu.memory_space<vmem>>, vector<4x256xf32>,
    %c0_409 = arith.constant 0 : index
    %c48_410 = arith.constant 48 : index
    %390 = vector.load %arg8[%c0_409, %c48_410] : memref<4x384xf32, #tpu.memory_space<vmem>>, vector<4x256xf32>
    %c28_411 = arith.constant 28 : index
    %c0_412 = arith.constant 0 : index
    %391 = vector.load %arg9[%c28_411, %c0_412] : memref<100x256xf32, #tpu.memory_space<vmem>>, vector<4x256xf32>
    tpu.vector_store %arg9[%c28_411, %c0_412], %390 {strides = array<i32>} : memref<100x256xf32, #tpu.memory_space<vmem>>, vector<4x256xf32>,
    %c0_413 = arith.constant 0 : index
    %c49_414 = arith.constant 49 : index
    %392 = vector.load %arg8[%c0_413, %c49_414] : memref<4x384xf32, #tpu.memory_space<vmem>>, vector<4x256xf32>
    %cst_415 = arith.constant 0.000000e+00 : f32
    %393 = vector.broadcast %cst_415 : f32 to vector<4x256xf32>
    %394 = arith.select %47, %392, %393 : vector<4x256xi1>, vector<4x256xf32>
    %c32_416 = arith.constant 32 : index
    %c0_417 = arith.constant 0 : index
    %395 = vector.load %arg9[%c32_416, %c0_417] : memref<100x256xf32, #tpu.memory_space<vmem>>, vector<4x256xf32>
    tpu.vector_store %arg9[%c32_416, %c0_417], %394 {strides = array<i32>} : memref<100x256xf32, #tpu.memory_space<vmem>>, vector<4x256xf32>,
    %c0_418 = arith.constant 0 : index
    %c50_419 = arith.constant 50 : index
    %396 = vector.load %arg8[%c0_418, %c50_419] : memref<4x384xf32, #tpu.memory_space<vmem>>, vector<4x256xf32>
    %cst_420 = arith.constant 0.000000e+00 : f32
    %397 = vector.broadcast %cst_420 : f32 to vector<4x256xf32>
    %398 = arith.select %56, %396, %397 : vector<4x256xi1>, vector<4x256xf32>
    %c36_421 = arith.constant 36 : index
    %c0_422 = arith.constant 0 : index
    %399 = vector.load %arg9[%c36_421, %c0_422] : memref<100x256xf32, #tpu.memory_space<vmem>>, vector<4x256xf32>
    tpu.vector_store %arg9[%c36_421, %c0_422], %398 {strides = array<i32>} : memref<100x256xf32, #tpu.memory_space<vmem>>, vector<4x256xf32>,
    %c0_423 = arith.constant 0 : index
    %c62_424 = arith.constant 62 : index
    %400 = vector.load %arg8[%c0_423, %c62_424] : memref<4x384xf32, #tpu.memory_space<vmem>>, vector<4x256xf32>
    %cst_425 = arith.constant 0.000000e+00 : f32
    %401 = vector.broadcast %cst_425 : f32 to vector<4x256xf32>
    %402 = arith.select %29, %400, %401 : vector<4x256xi1>, vector<4x256xf32>
    %c40_426 = arith.constant 40 : index
    %c0_427 = arith.constant 0 : index
    %403 = vector.load %arg9[%c40_426, %c0_427] : memref<100x256xf32, #tpu.memory_space<vmem>>, vector<4x256xf32>
    tpu.vector_store %arg9[%c40_426, %c0_427], %402 {strides = array<i32>} : memref<100x256xf32, #tpu.memory_space<vmem>>, vector<4x256xf32>,
    %c0_428 = arith.constant 0 : index
    %c63_429 = arith.constant 63 : index
    %404 = vector.load %arg8[%c0_428, %c63_429] : memref<4x384xf32, #tpu.memory_space<vmem>>, vector<4x256xf32>
    %cst_430 = arith.constant 0.000000e+00 : f32
    %405 = vector.broadcast %cst_430 : f32 to vector<4x256xf32>
    %406 = arith.select %38, %404, %405 : vector<4x256xi1>, vector<4x256xf32>
    %c44_431 = arith.constant 44 : index
    %c0_432 = arith.constant 0 : index
    %407 = vector.load %arg9[%c44_431, %c0_432] : memref<100x256xf32, #tpu.memory_space<vmem>>, vector<4x256xf32>
    tpu.vector_store %arg9[%c44_431, %c0_432], %406 {strides = array<i32>} : memref<100x256xf32, #tpu.memory_space<vmem>>, vector<4x256xf32>,
    %c0_433 = arith.constant 0 : index
    %c64_434 = arith.constant 64 : index
    %408 = vector.load %arg8[%c0_433, %c64_434] : memref<4x384xf32, #tpu.memory_space<vmem>>, vector<4x256xf32>
    %c48_435 = arith.constant 48 : index
    %c0_436 = arith.constant 0 : index
    %409 = vector.load %arg9[%c48_435, %c0_436] : memref<100x256xf32, #tpu.memory_space<vmem>>, vector<4x256xf32>
    tpu.vector_store %arg9[%c48_435, %c0_436], %408 {strides = array<i32>} : memref<100x256xf32, #tpu.memory_space<vmem>>, vector<4x256xf32>,
    %c0_437 = arith.constant 0 : index
    %c65_438 = arith.constant 65 : index
    %410 = vector.load %arg8[%c0_437, %c65_438] : memref<4x384xf32, #tpu.memory_space<vmem>>, vector<4x256xf32>
    %cst_439 = arith.constant 0.000000e+00 : f32
    %411 = vector.broadcast %cst_439 : f32 to vector<4x256xf32>
    %412 = arith.select %47, %410, %411 : vector<4x256xi1>, vector<4x256xf32>
    %c52_440 = arith.constant 52 : index
    %c0_441 = arith.constant 0 : index
    %413 = vector.load %arg9[%c52_440, %c0_441] : memref<100x256xf32, #tpu.memory_space<vmem>>, vector<4x256xf32>
    tpu.vector_store %arg9[%c52_440, %c0_441], %412 {strides = array<i32>} : memref<100x256xf32, #tpu.memory_space<vmem>>, vector<4x256xf32>,
    %c0_442 = arith.constant 0 : index
    %c66_443 = arith.constant 66 : index
    %414 = vector.load %arg8[%c0_442, %c66_443] : memref<4x384xf32, #tpu.memory_space<vmem>>, vector<4x256xf32>
    %cst_444 = arith.constant 0.000000e+00 : f32
    %415 = vector.broadcast %cst_444 : f32 to vector<4x256xf32>
    %416 = arith.select %56, %414, %415 : vector<4x256xi1>, vector<4x256xf32>
    %c56_445 = arith.constant 56 : index
    %c0_446 = arith.constant 0 : index
    %417 = vector.load %arg9[%c56_445, %c0_446] : memref<100x256xf32, #tpu.memory_space<vmem>>, vector<4x256xf32>
    tpu.vector_store %arg9[%c56_445, %c0_446], %416 {strides = array<i32>} : memref<100x256xf32, #tpu.memory_space<vmem>>, vector<4x256xf32>,
    %c0_447 = arith.constant 0 : index
    %c78_448 = arith.constant 78 : index
    %418 = vector.load %arg8[%c0_447, %c78_448] : memref<4x384xf32, #tpu.memory_space<vmem>>, vector<4x256xf32>
    %cst_449 = arith.constant 0.000000e+00 : f32
    %419 = vector.broadcast %cst_449 : f32 to vector<4x256xf32>
    %420 = arith.select %29, %418, %419 : vector<4x256xi1>, vector<4x256xf32>
    %c60_450 = arith.constant 60 : index
    %c0_451 = arith.constant 0 : index
    %421 = vector.load %arg9[%c60_450, %c0_451] : memref<100x256xf32, #tpu.memory_space<vmem>>, vector<4x256xf32>
    tpu.vector_store %arg9[%c60_450, %c0_451], %420 {strides = array<i32>} : memref<100x256xf32, #tpu.memory_space<vmem>>, vector<4x256xf32>,
    %c0_452 = arith.constant 0 : index
    %c79_453 = arith.constant 79 : index
    %422 = vector.load %arg8[%c0_452, %c79_453] : memref<4x384xf32, #tpu.memory_space<vmem>>, vector<4x256xf32>
    %cst_454 = arith.constant 0.000000e+00 : f32
    %423 = vector.broadcast %cst_454 : f32 to vector<4x256xf32>
    %424 = arith.select %38, %422, %423 : vector<4x256xi1>, vector<4x256xf32>
    %c64_455 = arith.constant 64 : index
    %c0_456 = arith.constant 0 : index
    %425 = vector.load %arg9[%c64_455, %c0_456] : memref<100x256xf32, #tpu.memory_space<vmem>>, vector<4x256xf32>
    tpu.vector_store %arg9[%c64_455, %c0_456], %424 {strides = array<i32>} : memref<100x256xf32, #tpu.memory_space<vmem>>, vector<4x256xf32>,
    %c0_457 = arith.constant 0 : index
    %c80_458 = arith.constant 80 : index
    %426 = vector.load %arg8[%c0_457, %c80_458] : memref<4x384xf32, #tpu.memory_space<vmem>>, vector<4x256xf32>
    %c68_459 = arith.constant 68 : index
    %c0_460 = arith.constant 0 : index
    %427 = vector.load %arg9[%c68_459, %c0_460] : memref<100x256xf32, #tpu.memory_space<vmem>>, vector<4x256xf32>
    tpu.vector_store %arg9[%c68_459, %c0_460], %426 {strides = array<i32>} : memref<100x256xf32, #tpu.memory_space<vmem>>, vector<4x256xf32>,
    %c0_461 = arith.constant 0 : index
    %c81_462 = arith.constant 81 : index
    %428 = vector.load %arg8[%c0_461, %c81_462] : memref<4x384xf32, #tpu.memory_space<vmem>>, vector<4x256xf32>
    %cst_463 = arith.constant 0.000000e+00 : f32
    %429 = vector.broadcast %cst_463 : f32 to vector<4x256xf32>
    %430 = arith.select %47, %428, %429 : vector<4x256xi1>, vector<4x256xf32>
    %c72_464 = arith.constant 72 : index
    %c0_465 = arith.constant 0 : index
    %431 = vector.load %arg9[%c72_464, %c0_465] : memref<100x256xf32, #tpu.memory_space<vmem>>, vector<4x256xf32>
    tpu.vector_store %arg9[%c72_464, %c0_465], %430 {strides = array<i32>} : memref<100x256xf32, #tpu.memory_space<vmem>>, vector<4x256xf32>,
    %c0_466 = arith.constant 0 : index
    %c82_467 = arith.constant 82 : index
    %432 = vector.load %arg8[%c0_466, %c82_467] : memref<4x384xf32, #tpu.memory_space<vmem>>, vector<4x256xf32>
    %cst_468 = arith.constant 0.000000e+00 : f32
    %433 = vector.broadcast %cst_468 : f32 to vector<4x256xf32>
    %434 = arith.select %56, %432, %433 : vector<4x256xi1>, vector<4x256xf32>
    %c76_469 = arith.constant 76 : index
    %c0_470 = arith.constant 0 : index
    %435 = vector.load %arg9[%c76_469, %c0_470] : memref<100x256xf32, #tpu.memory_space<vmem>>, vector<4x256xf32>
    tpu.vector_store %arg9[%c76_469, %c0_470], %434 {strides = array<i32>} : memref<100x256xf32, #tpu.memory_space<vmem>>, vector<4x256xf32>,
    %c0_471 = arith.constant 0 : index
    %c94_472 = arith.constant 94 : index
    %436 = vector.load %arg8[%c0_471, %c94_472] : memref<4x384xf32, #tpu.memory_space<vmem>>, vector<4x256xf32>
    %cst_473 = arith.constant 0.000000e+00 : f32
    %437 = vector.broadcast %cst_473 : f32 to vector<4x256xf32>
    %438 = arith.select %29, %436, %437 : vector<4x256xi1>, vector<4x256xf32>
    %c80_474 = arith.constant 80 : index
    %c0_475 = arith.constant 0 : index
    %439 = vector.load %arg9[%c80_474, %c0_475] : memref<100x256xf32, #tpu.memory_space<vmem>>, vector<4x256xf32>
    tpu.vector_store %arg9[%c80_474, %c0_475], %438 {strides = array<i32>} : memref<100x256xf32, #tpu.memory_space<vmem>>, vector<4x256xf32>,
    %c0_476 = arith.constant 0 : index
    %c95_477 = arith.constant 95 : index
    %440 = vector.load %arg8[%c0_476, %c95_477] : memref<4x384xf32, #tpu.memory_space<vmem>>, vector<4x256xf32>
    %cst_478 = arith.constant 0.000000e+00 : f32
    %441 = vector.broadcast %cst_478 : f32 to vector<4x256xf32>
    %442 = arith.select %38, %440, %441 : vector<4x256xi1>, vector<4x256xf32>
    %c84_479 = arith.constant 84 : index
    %c0_480 = arith.constant 0 : index
    %443 = vector.load %arg9[%c84_479, %c0_480] : memref<100x256xf32, #tpu.memory_space<vmem>>, vector<4x256xf32>
    tpu.vector_store %arg9[%c84_479, %c0_480], %442 {strides = array<i32>} : memref<100x256xf32, #tpu.memory_space<vmem>>, vector<4x256xf32>,
    %c0_481 = arith.constant 0 : index
    %c96_482 = arith.constant 96 : index
    %444 = vector.load %arg8[%c0_481, %c96_482] : memref<4x384xf32, #tpu.memory_space<vmem>>, vector<4x256xf32>
    %c88_483 = arith.constant 88 : index
    %c0_484 = arith.constant 0 : index
    %445 = vector.load %arg9[%c88_483, %c0_484] : memref<100x256xf32, #tpu.memory_space<vmem>>, vector<4x256xf32>
    tpu.vector_store %arg9[%c88_483, %c0_484], %444 {strides = array<i32>} : memref<100x256xf32, #tpu.memory_space<vmem>>, vector<4x256xf32>,
    %c0_485 = arith.constant 0 : index
    %c97_486 = arith.constant 97 : index
    %446 = vector.load %arg8[%c0_485, %c97_486] : memref<4x384xf32, #tpu.memory_space<vmem>>, vector<4x256xf32>
    %cst_487 = arith.constant 0.000000e+00 : f32
    %447 = vector.broadcast %cst_487 : f32 to vector<4x256xf32>
    %448 = arith.select %47, %446, %447 : vector<4x256xi1>, vector<4x256xf32>
    %c92_488 = arith.constant 92 : index
    %c0_489 = arith.constant 0 : index
    %449 = vector.load %arg9[%c92_488, %c0_489] : memref<100x256xf32, #tpu.memory_space<vmem>>, vector<4x256xf32>
    tpu.vector_store %arg9[%c92_488, %c0_489], %448 {strides = array<i32>} : memref<100x256xf32, #tpu.memory_space<vmem>>, vector<4x256xf32>,
    %c0_490 = arith.constant 0 : index
    %c98_491 = arith.constant 98 : index
    %450 = vector.load %arg8[%c0_490, %c98_491] : memref<4x384xf32, #tpu.memory_space<vmem>>, vector<4x256xf32>
    %cst_492 = arith.constant 0.000000e+00 : f32
    %451 = vector.broadcast %cst_492 : f32 to vector<4x256xf32>
    %452 = arith.select %56, %450, %451 : vector<4x256xi1>, vector<4x256xf32>
    %c96_493 = arith.constant 96 : index
    %c0_494 = arith.constant 0 : index
    %453 = vector.load %arg9[%c96_493, %c0_494] : memref<100x256xf32, #tpu.memory_space<vmem>>, vector<4x256xf32>
    tpu.vector_store %arg9[%c96_493, %c0_494], %452 {strides = array<i32>} : memref<100x256xf32, #tpu.memory_space<vmem>>, vector<4x256xf32>,
    %c1_495 = arith.constant 1 : index
    %c0_496 = arith.constant 0 : index
    %c0_497 = arith.constant 0 : index
    %454 = vector.load %arg4[%c1_495, %c0_496, %c0_497] : memref<2x4x100xf32, #tpu.memory_space<vmem>>, vector<1x4x100xf32>
    %455 = vector.shape_cast %454 : vector<1x4x100xf32> to vector<4x100xf32>
    %c0_498 = arith.constant 0 : index
    %c0_499 = arith.constant 0 : index
    %456 = vector.load %arg9[%c0_498, %c0_499] : memref<100x256xf32, #tpu.memory_space<vmem>>, vector<100x256xf32>
    %cst_500 = arith.constant dense<0.000000e+00> : vector<4x256xf32>
    %457 = tpu.matmul %455, %456, %cst_500 {dimension_numbers = #tpu.dot_dimension_numbers<[1], [0], [0], [1], [0, 0, 1, 1], [], []>} : vector<4x100xf32>, vector<100x256xf32>, vector<4x256xf32> -> vector<4x256xf32>
    %c1_501 = arith.constant 1 : index
    %c0_502 = arith.constant 0 : index
    %c0_503 = arith.constant 0 : index
    %458 = vector.load %arg5[%c1_501, %c0_502, %c0_503] : memref<2x4x1xf32, #tpu.memory_space<vmem>>, vector<1x4x1xf32>
    %459 = vector.shape_cast %458 : vector<1x4x1xf32> to vector<4x1xf32>
    %460 = vector.broadcast %459 : vector<4x1xf32> to vector<4x256xf32>
    %461 = arith.addf %457, %460 : vector<4x256xf32>
    %462 = arith.addf %261, %461 : vector<4x256xf32>
    %cst_504 = arith.constant 0.000000e+00 : f32
    %463 = vector.broadcast %cst_504 : f32 to vector<4x256xf32>
    %464 = arith.maximumf %462, %463 : vector<4x256xf32>
    %c0_505 = arith.constant 0 : index
    %c0_506 = arith.constant 0 : index
    %465 = vector.load %arg6[%c0_505, %c0_506] : memref<4x1xf32, #tpu.memory_space<vmem>>, vector<4x1xf32>
    %466 = vector.broadcast %465 : vector<4x1xf32> to vector<4x256xf32>
    %467 = arith.subf %464, %466 : vector<4x256xf32>
    %cst_507 = arith.constant 0.000000e+00 : f32
    %468 = vector.broadcast %cst_507 : f32 to vector<4x256xf32>
    %469 = arith.maximumf %467, %468 : vector<4x256xf32>
    %c0_508 = arith.constant 0 : index
    %c0_509 = arith.constant 0 : index
    %c0_510 = arith.constant 0 : index
    %470 = vector.load %arg7[%c0_508, %c0_509, %c0_510] : memref<1x4x256xf32, #tpu.memory_space<vmem>>, vector<1x4x256xf32>
    %471 = vector.shape_cast %470 : vector<1x4x256xf32> to vector<4x256xf32>
    %472 = vector.shape_cast %469 : vector<4x256xf32> to vector<1x4x256xf32>
    tpu.vector_store %arg7[%c0_508, %c0_509, %c0_510], %472 {strides = array<i32>} : memref<1x4x256xf32, #tpu.memory_space<vmem>>, vector<1x4x256xf32>,
    return
  }
  func.func @transform_0(%arg0: i32) -> (i32, i32, i32) {
    %c0_i32 = arith.constant 0 : i32
    %c0_i32_0 = arith.constant 0 : i32
    %c0_i32_1 = arith.constant 0 : i32
    return %arg0, %c0_i32, %c0_i32_0 : i32, i32, i32
  }
  func.func @transform_1(%arg0: i32) -> (i32, i32, i32) {
    %c0_i32 = arith.constant 0 : i32
    %c0_i32_0 = arith.constant 0 : i32
    %c0_i32_1 = arith.constant 0 : i32
    %c0_i32_2 = arith.constant 0 : i32
    return %c0_i32, %c0_i32_0, %c0_i32_1 : i32, i32, i32
  }
  func.func @transform_2(%arg0: i32) -> (i32, i32, i32) {
    %c0_i32 = arith.constant 0 : i32
    %c0_i32_0 = arith.constant 0 : i32
    %c0_i32_1 = arith.constant 0 : i32
    %c0_i32_2 = arith.constant 0 : i32
    return %c0_i32, %c0_i32_0, %c0_i32_1 : i32, i32, i32
  }
  func.func @transform_3(%arg0: i32) -> (i32, i32, i32) {
    %c0_i32 = arith.constant 0 : i32
    %c0_i32_0 = arith.constant 0 : i32
    %c0_i32_1 = arith.constant 0 : i32
    %c0_i32_2 = arith.constant 0 : i32
    return %c0_i32, %c0_i32_0, %c0_i32_1 : i32, i32, i32
  }
  func.func @transform_4(%arg0: i32) -> (i32, i32, i32) {
    %c0_i32 = arith.constant 0 : i32
    %c0_i32_0 = arith.constant 0 : i32
    %c0_i32_1 = arith.constant 0 : i32
    %c0_i32_2 = arith.constant 0 : i32
    return %c0_i32, %c0_i32_0, %c0_i32_1 : i32, i32, i32
  }
  func.func @transform_5(%arg0: i32) -> (i32, i32) {
    %c0_i32 = arith.constant 0 : i32
    %c0_i32_0 = arith.constant 0 : i32
    %c0_i32_1 = arith.constant 0 : i32
    return %c0_i32, %c0_i32_0 : i32, i32
  }
  func.func @transform_6(%arg0: i32) -> (i32, i32, i32) {
    %c0_i32 = arith.constant 0 : i32
    %c0_i32_0 = arith.constant 0 : i32
    %c0_i32_1 = arith.constant 0 : i32
    return %arg0, %c0_i32, %c0_i32_0 : i32, i32, i32
  }
}

</mosaic_0001>

<llo_original>
// kernel: mnet_forward.1
$region0: #{mnet_forward.1}
  #allocation0 [shape = 'u32[]', space=smem, size = 0x4, offset = 0x4, fixed_abs, tag = 'smem constant byte address 0x4 - core index']
  #allocation1 [shape = 'u32[72,128]{1,0:T(1,128)}', space=vmem, size = 0x9000, scoped, tag = 'internal scratch']
  #allocation2 [shape = 'f32[4,384]{1,0:T(4,128)}', space=vmem, size = 0x1800, scoped, tag = 'scratch operand']
  #allocation3 [shape = 'f32[100,256]{1,0:T(8,128)}', space=vmem, size = 0x1a000, scoped, tag = 'scratch operand']
  %s0 = inlined_call_operand.vmem [shape: f32[2,4,256], index: 0, kind: input, shape index: {}]
  %s1 = inlined_call_operand.vmem [shape: f32[2,4,100], index: 1, kind: input, shape index: {}]
  %s2 = inlined_call_operand.vmem [shape: f32[2,4,1], index: 2, kind: input, shape index: {}]
  %s3 = inlined_call_operand.vmem [shape: f32[2,4,100], index: 3, kind: input, shape index: {}]
  %s4 = inlined_call_operand.vmem [shape: f32[2,4,1], index: 4, kind: input, shape index: {}]
  %s5 = inlined_call_operand.vmem [shape: f32[4,1], index: 5, kind: input, shape index: {}]
  %s6 = inlined_call_operand.vmem [shape: f32[2,4,256], index: 6, kind: output, shape index: {}]
  %s7 = sld [smem:[#allocation0]]
  $region57: #{mnet_forward.1} parent=0
    _
  %s9 = ssub.s32 1, %s7
  %s10 = scalar_select 0, %s9, %s7
  loop: start=0, step=1, limit=4
  $region2: #{mnet_forward.1} parent=0 // loop_pre_header
    _
  $region3: #{mnet_forward.1} parent=0 // loop_header
    %s12 = sphi 0, %s16
    %p13 = scmp.ge.s32.totalorder %s12, 4
    %s22 = sphi 0, %s24
    %s25 = sphi 0, %s22
    %s26 = sphi 0, %s25
    %s42 = sphi 0, %s26
    %s46 = sphi 0, %s46
    %s48 = sphi 0, %s46
    %s49 = sphi 0, %s48
    %s63 = sphi 0, %s49
    %s67 = sphi 0, %s67
    %s69 = sphi 0, %s67
    %s70 = sphi 0, %s69
    %s84 = sphi 0, %s70
    %s88 = sphi 0, %s88
    %s90 = sphi 0, %s88
    %s91 = sphi 0, %s90
    %s105 = sphi 0, %s91
    %s109 = sphi 0, %s109
    %s111 = sphi 0, %s109
    %s112 = sphi 0, %s111
    %s126 = sphi 0, %s112
    %s130 = sphi 0, %s130
    %s132 = sphi 0, %s130
    %s133 = sphi 0, %s132
    %s147 = sphi 0, %s133
    %s153 = sphi 0, %s155
    %s156 = sphi 0, %s153
    %s157 = sphi 0, %s156
    %s173 = sphi 0, %s157
  $region4: #{mnet_forward.1} parent=0 // loop_header_branch
    %15 = sbr.rel (%p13) target = $region8
  $region5: #{mnet_forward.1} parent=0 // loop_body
    %s17 = ssub.s32 %s12, 1
    %s18 = ssub.s32 %s12, 2
    %s19 = sadd.s32 %s12, 1
    %s20 = ssub.s32 %s12, %s19
    %p21 = scmp.eq.s32.totalorder %s20, 0
    %s23 = sadd.s32 %s22, 1
    %s24 = scalar_select %p21, %s22, %s23
    %p27 = pneg %p21
    %p28 = scmp.eq.s32.totalorder %s12, 1
    %p29 = por %p27, %p28
    %p30 = scmp.ne.s32.totalorder %s22, %s25
    %p31 = scmp.eq.s32.totalorder %s12, 0
    %p32 = por %p30, %p31
    %p33 = scmp.ne.s32.totalorder %s22, %s25
    %p34 = scmp.eq.s32.totalorder %s17, 1
    %p35 = por %p33, %p34
    %p36 = scmp.ne.s32.totalorder %s25, %s26
    %p37 = scmp.eq.s32.totalorder %s17, 0
    %p38 = por %p36, %p37
    %p39 = scmp.ne.s32.totalorder %s25, %s26
    %p40 = scmp.eq.s32.totalorder %s18, 1
    %p41 = por %p39, %p40
    %p43 = scmp.ne.s32.totalorder %s26, %s42
    %p44 = scmp.eq.s32.totalorder %s18, 0
    %p45 = por %p43, %p44
    %s47 = sadd.s32 %s46, 1
    %p50 = scmp.eq.s32.totalorder %s12, 1
    %p51 = scmp.ne.s32.totalorder %s46, %s48
    %p52 = scmp.eq.s32.totalorder %s12, 0
    %p53 = por %p51, %p52
    %p54 = scmp.ne.s32.totalorder %s46, %s48
    %p55 = scmp.eq.s32.totalorder %s17, 1
    %p56 = por %p54, %p55
    %p57 = scmp.ne.s32.totalorder %s48, %s49
    %p58 = scmp.eq.s32.totalorder %s17, 0
    %p59 = por %p57, %p58
    %p60 = scmp.ne.s32.totalorder %s48, %s49
    %p61 = scmp.eq.s32.totalorder %s18, 1
    %p62 = por %p60, %p61
    %p64 = scmp.ne.s32.totalorder %s49, %s63
    %p65 = scmp.eq.s32.totalorder %s18, 0
    %p66 = por %p64, %p65
    %s68 = sadd.s32 %s67, 1
    %p71 = scmp.eq.s32.totalorder %s12, 1
    %p72 = scmp.ne.s32.totalorder %s67, %s69
    %p73 = scmp.eq.s32.totalorder %s12, 0
    %p74 = por %p72, %p73
    %p75 = scmp.ne.s32.totalorder %s67, %s69
    %p76 = scmp.eq.s32.totalorder %s17, 1
    %p77 = por %p75, %p76
    %p78 = scmp.ne.s32.totalorder %s69, %s70
    %p79 = scmp.eq.s32.totalorder %s17, 0
    %p80 = por %p78, %p79
    %p81 = scmp.ne.s32.totalorder %s69, %s70
    %p82 = scmp.eq.s32.totalorder %s18, 1
    %p83 = por %p81, %p82
    %p85 = scmp.ne.s32.totalorder %s70, %s84
    %p86 = scmp.eq.s32.totalorder %s18, 0
    %p87 = por %p85, %p86
    %s89 = sadd.s32 %s88, 1
    %p92 = scmp.eq.s32.totalorder %s12, 1
    %p93 = scmp.ne.s32.totalorder %s88, %s90
    %p94 = scmp.eq.s32.totalorder %s12, 0
    %p95 = por %p93, %p94
    %p96 = scmp.ne.s32.totalorder %s88, %s90
    %p97 = scmp.eq.s32.totalorder %s17, 1
    %p98 = por %p96, %p97
    %p99 = scmp.ne.s32.totalorder %s90, %s91
    %p100 = scmp.eq.s32.totalorder %s17, 0
    %p101 = por %p99, %p100
    %p102 = scmp.ne.s32.totalorder %s90, %s91
    %p103 = scmp.eq.s32.totalorder %s18, 1
    %p104 = por %p102, %p103
    %p106 = scmp.ne.s32.totalorder %s91, %s105
    %p107 = scmp.eq.s32.totalorder %s18, 0
    %p108 = por %p106, %p107
    %s110 = sadd.s32 %s109, 1
    %p113 = scmp.eq.s32.totalorder %s12, 1
    %p114 = scmp.ne.s32.totalorder %s109, %s111
    %p115 = scmp.eq.s32.totalorder %s12, 0
    %p116 = por %p114, %p115
    %p117 = scmp.ne.s32.totalorder %s109, %s111
    %p118 = scmp.eq.s32.totalorder %s17, 1
    %p119 = por %p117, %p118
    %p120 = scmp.ne.s32.totalorder %s111, %s112
    %p121 = scmp.eq.s32.totalorder %s17, 0
    %p122 = por %p120, %p121
    %p123 = scmp.ne.s32.totalorder %s111, %s112
    %p124 = scmp.eq.s32.totalorder %s18, 1
    %p125 = por %p123, %p124
    %p127 = scmp.ne.s32.totalorder %s112, %s126
    %p128 = scmp.eq.s32.totalorder %s18, 0
    %p129 = por %p127, %p128
    %s131 = sadd.s32 %s130, 1
    %p134 = scmp.eq.s32.totalorder %s12, 1
    %p135 = scmp.ne.s32.totalorder %s130, %s132
    %p136 = scmp.eq.s32.totalorder %s12, 0
    %p137 = por %p135, %p136
    %p138 = scmp.ne.s32.totalorder %s130, %s132
    %p139 = scmp.eq.s32.totalorder %s17, 1
    %p140 = por %p138, %p139
    %p141 = scmp.ne.s32.totalorder %s132, %s133
    %p142 = scmp.eq.s32.totalorder %s17, 0
    %p143 = por %p141, %p142
    %p144 = scmp.ne.s32.totalorder %s132, %s133
    %p145 = scmp.eq.s32.totalorder %s18, 1
    %p146 = por %p144, %p145
    %p148 = scmp.ne.s32.totalorder %s133, %s147
    %p149 = scmp.eq.s32.totalorder %s18, 0
    %p150 = por %p148, %p149
    %s151 = ssub.s32 %s12, %s19
    %p152 = scmp.eq.s32.totalorder %s151, 0
    %s154 = sadd.s32 %s153, 1
    %s155 = scalar_select %p152, %s153, %s154
    %p158 = pneg %p152
    %p159 = scmp.eq.s32.totalorder %s12, 1
    %p160 = por %p158, %p159
    %p161 = scmp.ne.s32.totalorder %s153, %s156
    %p162 = scmp.eq.s32.totalorder %s12, 0
    %p163 = por %p161, %p162
    %p164 = scmp.ne.s32.totalorder %s153, %s156
    %p165 = scmp.eq.s32.totalorder %s17, 1
    %p166 = por %p164, %p165
    %p167 = scmp.ne.s32.totalorder %s156, %s157
    %p168 = scmp.eq.s32.totalorder %s17, 0
    %p169 = por %p167, %p168
    %p170 = scmp.ne.s32.totalorder %s156, %s157
    %p171 = scmp.eq.s32.totalorder %s18, 1
    %p172 = por %p170, %p171
    %p174 = scmp.ne.s32.totalorder %s157, %s173
    %p175 = scmp.eq.s32.totalorder %s18, 0
    %p176 = por %p174, %p175
    %p177 = scmp.le.s32.totalorder 1, %s12
    %p178 = scmp.lt.s32.totalorder %s12, 3
    %p179 = pnand %p177, %p178
    %p180 = pneg %p179
    // Predicated region
    $region9: #{mnet_forward.1} parent=5 // pred_check
      _
    $region10: #{mnet_forward.1} parent=5 // pred_check_branch
      %182 = sbr.rel (%p179) target = $region12
    $region11: #{mnet_forward.1} parent=5 // pred_region
      %s183 = ssub.s32 %s12, 1
      // Predicated region
      $region13: #{mnet_forward.1} parent=11 // pred_check
        %p184 = pneg %p59
      $region14: #{mnet_forward.1} parent=11 // pred_check_branch
        %186 = sbr.rel (%p184) target = $region16
      $region15: #{mnet_forward.1} parent=11 // pred_region
        _
      $region16: #{mnet_forward.1} parent=11 // pred_fallthru
        _
      // Predicated region
      $region17: #{mnet_forward.1} parent=11 // pred_check
        %p187 = pneg %p80
      $region18: #{mnet_forward.1} parent=11 // pred_check_branch
        %189 = sbr.rel (%p187) target = $region20
      $region19: #{mnet_forward.1} parent=11 // pred_region
        _
      $region20: #{mnet_forward.1} parent=11 // pred_fallthru
        _
      // Predicated region
      $region21: #{mnet_forward.1} parent=11 // pred_check
        %p190 = pneg %p101
      $region22: #{mnet_forward.1} parent=11 // pred_check_branch
        %192 = sbr.rel (%p190) target = $region24
      $region23: #{mnet_forward.1} parent=11 // pred_region
        _
      $region24: #{mnet_forward.1} parent=11 // pred_fallthru
        _
      // Predicated region
      $region25: #{mnet_forward.1} parent=11 // pred_check
        %p193 = pneg %p122
      $region26: #{mnet_forward.1} parent=11 // pred_check_branch
        %195 = sbr.rel (%p193) target = $region28
      $region27: #{mnet_forward.1} parent=11 // pred_region
        _
      $region28: #{mnet_forward.1} parent=11 // pred_fallthru
        _
      // Predicated region
      $region29: #{mnet_forward.1} parent=11 // pred_check
        %p196 = pneg %p143
      $region30: #{mnet_forward.1} parent=11 // pred_check_branch
        %198 = sbr.rel (%p196) target = $region32
      $region31: #{mnet_forward.1} parent=11 // pred_region
        _
      $region32: #{mnet_forward.1} parent=11 // pred_fallthru
        _
    $region12: #{mnet_forward.1} parent=5 // pred_fallthru
      _
    %p199 = scmp.lt.s32.totalorder %s12, 2
    // Predicated region
    $region33: #{mnet_forward.1} parent=5 // pred_check
      %p200 = pneg %p199
    $region34: #{mnet_forward.1} parent=5 // pred_check_branch
      %202 = sbr.rel (%p200) target = $region36
    $region35: #{mnet_forward.1} parent=5 // pred_region
      // Predicated region
      $region37: #{mnet_forward.1} parent=35 // pred_check
        %p203 = pneg %p32
      $region38: #{mnet_forward.1} parent=35 // pred_check_branch
        %205 = sbr.rel (%p203) target = $region40
      $region39: #{mnet_forward.1} parent=35 // pred_region
        %p206 = scmp.lt.s32.totalorder %s12, 1
        %s207 = scalar_select %p206, %s12, 1
        %s208 = smul.addr %s207, 2
        %s209 = smul.addr %s208, 4
        %s210 = scalar_lea.vmem %s0, %s209
      $region40: #{mnet_forward.1} parent=35 // pred_fallthru
        _
    $region36: #{mnet_forward.1} parent=5 // pred_fallthru
      _
    %p211 = scmp.le.s32.totalorder 1, %s12
    %p212 = scmp.lt.s32.totalorder %s12, 3
    %p213 = pnand %p211, %p212
    %p214 = pneg %p213
    // Predicated region
    $region41: #{mnet_forward.1} parent=5 // pred_check
      _
    $region42: #{mnet_forward.1} parent=5 // pred_check_branch
      %216 = sbr.rel (%p213) target = $region44
    $region43: #{mnet_forward.1} parent=5 // pred_region
      %s217 = ssub.s32 %s12, 1
      %p218 = scmp.lt.s32.totalorder %s17, 1
      %s219 = scalar_select %p218, %s17, 1
      %s220 = smul.addr %s219, 2
      %s221 = smul.addr %s220, 4
      %s222 = scalar_lea.vmem %s0, %s221
      %p223 = pneg %p38
      %p224 = pneg %p35
      %p225 = pneg %p59
      %p226 = pneg %p56
      %p227 = pneg %p80
      %p228 = pneg %p77
      %p229 = pneg %p101
      %p230 = pneg %p98
      %p231 = pneg %p122
      %p232 = pneg %p119
      %p233 = pneg %p143
      %p234 = pneg %p140
      %p235 = pneg %p169
      %p236 = pneg %p166
      %p237 = scmp.lt.s32.totalorder %s17, 1
      %s238 = scalar_select %p237, %s17, 1
      %s239 = smul.addr %s238, 2
      %s240 = smul.addr %s239, 4
      %s241 = scalar_lea.vmem %s6, %s240
      %p242 = scmp.lt.s32.totalorder %s17, 1
      %s243 = scalar_select %p242, %s17, 1
      %s244 = smul.addr %s243, 2
      %s245 = smul.addr %s244, 4
      %s246 = scalar_lea.vmem %s0, %s245
      %p247 = scmp.lt.s32.totalorder %s17, 1
      %s248 = scalar_select %p247, %s17, 1
      %s249 = smul.addr %s248, 2
      %s250 = smul.addr %s249, 4
      %s251 = scalar_lea.vmem %s6, %s250
      %vm252 = vcmask 519168
      %253 = vst.msk [vmem:[#allocation2] sm:$0xf] %vm252, 0.0
      %vm254 = vcmask 1043968
      %255 = vst.msk [vmem:[#allocation2 + $0x8] sm:$0xf] %vm254, 0.0
      %v256 = vlaneseq
      %v257 = vand.u32 %v256, 127
      %v258 = vadd.s32 %v257, 128
      %vm259 = vcmp.lt.s32.totalorder %v257, 0
      %v260 = vsub.s32 0, %v257
      %v261 = vsel %vm259, %v260, %v257
      %v262 = vshrl.u32 %v261, 4
      %v263 = vand.u32 %v261, 15
      %v264 = vsub.s32 0, %v263
      %v265 = vsel %vm259, %v264, %v263
      %vm266 = vcmp.lt.s32.totalorder %v258, 0
      %v267 = vsub.s32 0, %v258
      %v268 = vsel %vm266, %v267, %v258
      %v269 = vshrl.u32 %v268, 4
      %v270 = vand.u32 %v268, 15
      %v271 = vsub.s32 0, %v270
      %v272 = vsel %vm266, %v271, %v270
      %vm273 = vcmp.ne.s32.totalorder %v265, 0
      %vm274 = vcmp.ne.s32.totalorder %v272, 0
      %vm275 = vcmp.lt.s32.totalorder %v265, 0
      %vm276 = vcmp.lt.s32.totalorder %v272, 0
      %vm277 = vmand %vm275, %vm273
      %vm278 = vmand %vm276, %vm274
      %v279 = vadd.s32 %v265, 16
      %v280 = vadd.s32 %v272, 16
      %v281 = vsel %vm277, %v279, %v265
      %v282 = vsel %vm278, %v280, %v272
      %v283 = vadd.s32 %v281, 4294967294
      %v284 = vadd.s32 %v282, 4294967294
      %vm285 = vcmp.ge.s32.totalorder %v283, 0
      %vm286 = vcmp.ge.s32.totalorder %v284, 0
      %vm287 = vcmp.lt.s32.totalorder %v283, 16
      %vm288 = vcmp.lt.s32.totalorder %v284, 16
      %vm289 = vmand %vm285, %vm287
      %vm290 = vmand %vm286, %vm288
      %v291 = vadd.s32 %v281, 4294967295
      %v292 = vadd.s32 %v282, 4294967295
      %vm293 = vcmp.ge.s32.totalorder %v291, 0
      %vm294 = vcmp.ge.s32.totalorder %v292, 0
      %vm295 = vcmp.lt.s32.totalorder %v291, 16
      %vm296 = vcmp.lt.s32.totalorder %v292, 16
      %vm297 = vmand %vm293, %vm295
      %vm298 = vmand %vm294, %vm296
      %v299 = vadd.s32 %v281, 1
      %v300 = vadd.s32 %v282, 1
      %vm301 = vcmp.ge.s32.totalorder %v299, 0
      %vm302 = vcmp.ge.s32.totalorder %v300, 0
      %vm303 = vcmp.lt.s32.totalorder %v299, 16
      %vm304 = vcmp.lt.s32.totalorder %v300, 16
      %vm305 = vmand %vm301, %vm303
      %vm306 = vmand %vm302, %vm304
      %v307 = vadd.s32 %v281, 2
      %v308 = vadd.s32 %v282, 2
      %vm309 = vcmp.ge.s32.totalorder %v307, 0
      %vm310 = vcmp.ge.s32.totalorder %v308, 0
      %vm311 = vcmp.lt.s32.totalorder %v307, 16
      %vm312 = vcmp.lt.s32.totalorder %v308, 16
      %vm313 = vmand %vm309, %vm311
      %vm314 = vmand %vm310, %vm312
      %v315 = vld [vmem:[%s246] sm:$0xff]
      %317 = vrot.lane.b32.xlu0 %v315, 64
      %v318 = vpop.permute.xlu0 %317
      %v319 = vrot.slane %v318, 4
      %vm320 = vcmask 523264
      %v321 = vsel %vm320, %v319, %v318
      %vm324 = vcmask 1047556
      %vm325 = vmor %vm324, %vm254
      %326 = vst.msk [vmem:[#allocation2] sm:$0xff] %vm325, %v321
      %327 = vst.msk [vmem:[#allocation2 + $0x8] sm:$0xf] %vm252, %v319
      %v328 = vld [vmem:[#allocation2] sm:$0xff]
      %v329 = vld [vmem:[#allocation2 + $0x8] sm:$0xf]
      %332 = vst [vmem:[#allocation1] ss:$2 sm:$0xff] %v328
      %s333 = scalar_lea.vmem [#allocation1], 16
      %334 = vst [vmem:[%s333] ss:$2 sm:$0xff] %v329
      %v335 = vld.sshfl [vmem:[#allocation1] sm:$0xff pattern:$0x75316420]
      %v336 = vld.sshfl [vmem:[#allocation1 + $0x8] sm:$0xff pattern:$0x75316420]
      %v337 = vld.sshfl [vmem:[#allocation1 + $0x10] sm:$0xff pattern:$0x75316420]
      %338 = vrot.lane.b32.xlu0 %v335, 98
      %v339 = vpop.permute.xlu0 %338
      %340 = vrot.lane.b32.xlu0 %v336, 98
      %v341 = vpop.permute.xlu0 %340
      %342 = vrot.lane.b32.xlu0 %v337, 98
      %v343 = vpop.permute.xlu0 %342
      %vm344 = vcmask 801792
      %v345 = vsel %vm344, %v339, %v341
      %v346 = vsel %vm344, %v341, %v343
      %v349 = vsel %vm289, %v345, 0.0
      %v350 = vsel %vm290, %v346, 0.0
      %351 = vst [vmem:[#allocation3] sm:$0xf] %v349
      %352 = vst [vmem:[#allocation3 + $0x8] sm:$0xf] %v350
      %v353 = vld [vmem:[#allocation2] sm:$0xff]
      %v354 = vld [vmem:[#allocation2 + $0x8] sm:$0xf]
      %357 = vst [vmem:[#allocation1] ss:$2 sm:$0xff] %v353
      %s358 = scalar_lea.vmem [#allocation1], 16
      %359 = vst [vmem:[%s358] ss:$2 sm:$0xff] %v354
      %v360 = vld.sshfl [vmem:[#allocation1] sm:$0xff pattern:$0x75316420]
      %v361 = vld.sshfl [vmem:[#allocation1 + $0x8] sm:$0xff pattern:$0x75316420]
      %v362 = vld.sshfl [vmem:[#allocation1 + $0x10] sm:$0xff pattern:$0x75316420]
      %363 = vrot.lane.b32.xlu0 %v360, 97
      %v364 = vpop.permute.xlu0 %363
      %365 = vrot.lane.b32.xlu0 %v361, 97
      %v366 = vpop.permute.xlu0 %365
      %367 = vrot.lane.b32.xlu0 %v362, 97
      %v368 = vpop.permute.xlu0 %367
      %vm369 = vcmask 793600
      %v370 = vsel %vm369, %v364, %v366
      %v371 = vsel %vm369, %v366, %v368
      %v374 = vsel %vm297, %v370, 0.0
      %v375 = vsel %vm298, %v371, 0.0
      %v378 = vrot.slane %v374, 4
      %v379 = vrot.slane %v375, 4
      %382 = vst [vmem:[#allocation3] sm:$0xf0] %v378
      %383 = vst [vmem:[#allocation3 + $0x8] sm:$0xf0] %v379
      %v384 = vld [vmem:[#allocation2] sm:$0xff]
      %v385 = vld [vmem:[#allocation2 + $0x8] sm:$0xf]
      %388 = vst [vmem:[#allocation1] ss:$2 sm:$0xff] %v384
      %s389 = scalar_lea.vmem [#allocation1], 16
      %390 = vst [vmem:[%s389] ss:$2 sm:$0xff] %v385
      %v391 = vld.sshfl [vmem:[#allocation1] sm:$0xff pattern:$0x75316420]
      %v392 = vld.sshfl [vmem:[#allocation1 + $0x8] sm:$0xff pattern:$0x75316420]
      %v393 = vld.sshfl [vmem:[#allocation1 + $0x10] sm:$0xff pattern:$0x75316420]
      %394 = vrot.lane.b32.xlu0 %v391, 96
      %v395 = vpop.permute.xlu0 %394
      %396 = vrot.lane.b32.xlu0 %v392, 96
      %v397 = vpop.permute.xlu0 %396
      %398 = vrot.lane.b32.xlu0 %v393, 96
      %v399 = vpop.permute.xlu0 %398
      %vm400 = vcmask 785408
      %v401 = vsel %vm400, %v395, %v397
      %v402 = vsel %vm400, %v397, %v399
      %405 = vst [vmem:[#allocation3 + $0x10] sm:$0xf] %v401
      %406 = vst [vmem:[#allocation3 + $0x18] sm:$0xf] %v402
      %v407 = vld [vmem:[#allocation2] sm:$0xff]
      %v408 = vld [vmem:[#allocation2 + $0x8] sm:$0xf]
      %411 = vst [vmem:[#allocation1] ss:$2 sm:$0xff] %v407
      %s412 = scalar_lea.vmem [#allocation1], 16
      %413 = vst [vmem:[%s412] ss:$2 sm:$0xff] %v408
      %v414 = vld.sshfl [vmem:[#allocation1] sm:$0xff pattern:$0x75316420]
      %v415 = vld.sshfl [vmem:[#allocation1 + $0x8] sm:$0xff pattern:$0x75316420]
      %v416 = vld.sshfl [vmem:[#allocation1 + $0x10] sm:$0xff pattern:$0x75316420]
      %417 = vrot.lane.b32.xlu0 %v414, 95
      %v418 = vpop.permute.xlu0 %417
      %419 = vrot.lane.b32.xlu0 %v415, 95
      %v420 = vpop.permute.xlu0 %419
      %421 = vrot.lane.b32.xlu0 %v416, 95
      %v422 = vpop.permute.xlu0 %421
      %vm423 = vcmask 777216
      %v424 = vsel %vm423, %v418, %v420
      %v425 = vsel %vm423, %v420, %v422
      %v428 = vsel %vm305, %v424, 0.0
      %v429 = vsel %vm306, %v425, 0.0
      %v432 = vrot.slane %v428, 4
      %v433 = vrot.slane %v429, 4
      %436 = vst [vmem:[#allocation3 + $0x10] sm:$0xf0] %v432
      %437 = vst [vmem:[#allocation3 + $0x18] sm:$0xf0] %v433
      %v438 = vld [vmem:[#allocation2] sm:$0xff]
      %v439 = vld [vmem:[#allocation2 + $0x8] sm:$0xf]
      %442 = vst [vmem:[#allocation1] ss:$2 sm:$0xff] %v438
      %s443 = scalar_lea.vmem [#allocation1], 16
      %444 = vst [vmem:[%s443] ss:$2 sm:$0xff] %v439
      %v445 = vld.sshfl [vmem:[#allocation1] sm:$0xff pattern:$0x75316420]
      %v446 = vld.sshfl [vmem:[#allocation1 + $0x8] sm:$0xff pattern:$0x75316420]
      %v447 = vld.sshfl [vmem:[#allocation1 + $0x10] sm:$0xff pattern:$0x75316420]
      %448 = vrot.lane.b32.xlu0 %v445, 94
      %v449 = vpop.permute.xlu0 %448
      %450 = vrot.lane.b32.xlu0 %v446, 94
      %v451 = vpop.permute.xlu0 %450
      %452 = vrot.lane.b32.xlu0 %v447, 94
      %v453 = vpop.permute.xlu0 %452
      %vm454 = vcmask 769024
      %v455 = vsel %vm454, %v449, %v451
      %v456 = vsel %vm454, %v451, %v453
      %v459 = vsel %vm313, %v455, 0.0
      %v460 = vsel %vm314, %v456, 0.0
      %461 = vst [vmem:[#allocation3 + $0x20] sm:$0xf] %v459
      %462 = vst [vmem:[#allocation3 + $0x28] sm:$0xf] %v460
      %v463 = vld [vmem:[#allocation2] sm:$0xff]
      %v464 = vld [vmem:[#allocation2 + $0x8] sm:$0xf]
      %467 = vst [vmem:[#allocation1] ss:$2 sm:$0xff] %v463
      %s468 = scalar_lea.vmem [#allocation1], 16
      %469 = vst [vmem:[%s468] ss:$2 sm:$0xff] %v464
      %v470 = vld.sshfl [vmem:[#allocation1] sm:$0xff pattern:$0x75316420]
      %v471 = vld.sshfl [vmem:[#allocation1 + $0x8] sm:$0xff pattern:$0x75316420]
      %v472 = vld.sshfl [vmem:[#allocation1 + $0x10] sm:$0xff pattern:$0x75316420]
      %473 = vrot.lane.b32.xlu0 %v470, 82
      %v474 = vpop.permute.xlu0 %473
      %475 = vrot.lane.b32.xlu0 %v471, 82
      %v476 = vpop.permute.xlu0 %475
      %477 = vrot.lane.b32.xlu0 %v472, 82
      %v478 = vpop.permute.xlu0 %477
      %vm479 = vcmask 670720
      %v480 = vsel %vm479, %v474, %v476
      %v481 = vsel %vm479, %v476, %v478
      %v484 = vsel %vm289, %v480, 0.0
      %v485 = vsel %vm290, %v481, 0.0
      %v488 = vrot.slane %v484, 4
      %v489 = vrot.slane %v485, 4
      %492 = vst [vmem:[#allocation3 + $0x20] sm:$0xf0] %v488
      %493 = vst [vmem:[#allocation3 + $0x28] sm:$0xf0] %v489
      %v494 = vld [vmem:[#allocation2] sm:$0xff]
      %v495 = vld [vmem:[#allocation2 + $0x8] sm:$0xf]
      %498 = vst [vmem:[#allocation1] ss:$2 sm:$0xff] %v494
      %s499 = scalar_lea.vmem [#allocation1], 16
      %500 = vst [vmem:[%s499] ss:$2 sm:$0xff] %v495
      %v501 = vld.sshfl [vmem:[#allocation1] sm:$0xff pattern:$0x75316420]
      %v502 = vld.sshfl [vmem:[#allocation1 + $0x8] sm:$0xff pattern:$0x75316420]
      %v503 = vld.sshfl [vmem:[#allocation1 + $0x10] sm:$0xff pattern:$0x75316420]
      %504 = vrot.lane.b32.xlu0 %v501, 81
      %v505 = vpop.permute.xlu0 %504
      %506 = vrot.lane.b32.xlu0 %v502, 81
      %v507 = vpop.permute.xlu0 %506
      %508 = vrot.lane.b32.xlu0 %v503, 81
      %v509 = vpop.permute.xlu0 %508
      %vm510 = vcmask 662528
      %v511 = vsel %vm510, %v505, %v507
      %v512 = vsel %vm510, %v507, %v509
      %v515 = vsel %vm297, %v511, 0.0
      %v516 = vsel %vm298, %v512, 0.0
      %517 = vst [vmem:[#allocation3 + $0x30] sm:$0xf] %v515
      %518 = vst [vmem:[#allocation3 + $0x38] sm:$0xf] %v516
      %v519 = vld [vmem:[#allocation2] sm:$0xff]
      %v520 = vld [vmem:[#allocation2 + $0x8] sm:$0xf]
      %s523 = scalar_lea.vmem [#allocation1], 1
      %524 = vst [vmem:[%s523] ss:$2 sm:$0xff] %v519
      %s525 = scalar_lea.vmem [#allocation1], 17
      %526 = vst [vmem:[%s525] ss:$2 sm:$0xff] %v520
      %v527 = vld.sshfl [vmem:[#allocation1] sm:$0xff pattern:$0x75316420]
      %v528 = vld.sshfl [vmem:[#allocation1 + $0x8] sm:$0xff pattern:$0x75316420]
      %v529 = vld.sshfl [vmem:[#allocation1 + $0x10] sm:$0xff pattern:$0x75316420]
      %530 = vrot.lane.b32.xlu0 %v527, 80
      %v531 = vpop.permute.xlu0 %530
      %532 = vrot.lane.b32.xlu0 %v528, 80
      %v533 = vpop.permute.xlu0 %532
      %534 = vrot.lane.b32.xlu0 %v529, 80
      %v535 = vpop.permute.xlu0 %534
      %vm536 = vcmask 654336
      %v537 = vsel %vm536, %v531, %v533
      %v538 = vsel %vm536, %v533, %v535
      %541 = vst [vmem:[#allocation3 + $0x30] sm:$0xf0] %v537
      %542 = vst [vmem:[#allocation3 + $0x38] sm:$0xf0] %v538
      %v543 = vld [vmem:[#allocation2] sm:$0xff]
      %v544 = vld [vmem:[#allocation2 + $0x8] sm:$0xf]
      %547 = vst [vmem:[#allocation1] ss:$2 sm:$0xff] %v543
      %s548 = scalar_lea.vmem [#allocation1], 16
      %549 = vst [vmem:[%s548] ss:$2 sm:$0xff] %v544
      %v550 = vld.sshfl [vmem:[#allocation1] sm:$0xff pattern:$0x75316420]
      %v551 = vld.sshfl [vmem:[#allocation1 + $0x8] sm:$0xff pattern:$0x75316420]
      %v552 = vld.sshfl [vmem:[#allocation1 + $0x10] sm:$0xff pattern:$0x75316420]
      %553 = vrot.lane.b32.xlu0 %v550, 79
      %v554 = vpop.permute.xlu0 %553
      %555 = vrot.lane.b32.xlu0 %v551, 79
      %v556 = vpop.permute.xlu0 %555
      %557 = vrot.lane.b32.xlu0 %v552, 79
      %v558 = vpop.permute.xlu0 %557
      %vm559 = vcmask 646144
      %v560 = vsel %vm559, %v554, %v556
      %v561 = vsel %vm559, %v556, %v558
      %v564 = vsel %vm305, %v560, 0.0
      %v565 = vsel %vm306, %v561, 0.0
      %566 = vst [vmem:[#allocation3 + $0x40] sm:$0xf] %v564
      %567 = vst [vmem:[#allocation3 + $0x48] sm:$0xf] %v565
      %v568 = vld [vmem:[#allocation2] sm:$0xff]
      %v569 = vld [vmem:[#allocation2 + $0x8] sm:$0xf]
      %572 = vst [vmem:[#allocation1] ss:$2 sm:$0xff] %v568
      %s573 = scalar_lea.vmem [#allocation1], 16
      %574 = vst [vmem:[%s573] ss:$2 sm:$0xff] %v569
      %v575 = vld.sshfl [vmem:[#allocation1] sm:$0xff pattern:$0x75316420]
      %v576 = vld.sshfl [vmem:[#allocation1 + $0x8] sm:$0xff pattern:$0x75316420]
      %v577 = vld.sshfl [vmem:[#allocation1 + $0x10] sm:$0xff pattern:$0x75316420]
      %578 = vrot.lane.b32.xlu0 %v575, 78
      %v579 = vpop.permute.xlu0 %578
      %580 = vrot.lane.b32.xlu0 %v576, 78
      %v581 = vpop.permute.xlu0 %580
      %582 = vrot.lane.b32.xlu0 %v577, 78
      %v583 = vpop.permute.xlu0 %582
      %vm584 = vcmask 637952
      %v585 = vsel %vm584, %v579, %v581
      %v586 = vsel %vm584, %v581, %v583
      %v589 = vsel %vm313, %v585, 0.0
      %v590 = vsel %vm314, %v586, 0.0
      %v593 = vrot.slane %v589, 4
      %v594 = vrot.slane %v590, 4
      %597 = vst [vmem:[#allocation3 + $0x40] sm:$0xf0] %v593
      %598 = vst [vmem:[#allocation3 + $0x48] sm:$0xf0] %v594
      %v599 = vld [vmem:[#allocation2] sm:$0xff]
      %v600 = vld [vmem:[#allocation2 + $0x8] sm:$0xf]
      %603 = vst [vmem:[#allocation1] ss:$2 sm:$0xff] %v599
      %s604 = scalar_lea.vmem [#allocation1], 16
      %605 = vst [vmem:[%s604] ss:$2 sm:$0xff] %v600
      %v606 = vld.sshfl [vmem:[#allocation1] sm:$0xff pattern:$0x75316420]
      %v607 = vld.sshfl [vmem:[#allocation1 + $0x8] sm:$0xff pattern:$0x75316420]
      %v608 = vld.sshfl [vmem:[#allocation1 + $0x10] sm:$0xff pattern:$0x75316420]
      %609 = vrot.lane.b32.xlu0 %v606, 66
      %v610 = vpop.permute.xlu0 %609
      %611 = vrot.lane.b32.xlu0 %v607, 66
      %v612 = vpop.permute.xlu0 %611
      %613 = vrot.lane.b32.xlu0 %v608, 66
      %v614 = vpop.permute.xlu0 %613
      %vm615 = vcmask 539648
      %v616 = vsel %vm615, %v610, %v612
      %v617 = vsel %vm615, %v612, %v614
      %v620 = vsel %vm289, %v616, 0.0
      %v621 = vsel %vm290, %v617, 0.0
      %622 = vst [vmem:[#allocation3 + $0x50] sm:$0xf] %v620
      %623 = vst [vmem:[#allocation3 + $0x58] sm:$0xf] %v621
      %v624 = vld [vmem:[#allocation2] sm:$0xff]
      %v625 = vld [vmem:[#allocation2 + $0x8] sm:$0xf]
      %628 = vst [vmem:[#allocation1] ss:$2 sm:$0xff] %v624
      %s629 = scalar_lea.vmem [#allocation1], 16
      %630 = vst [vmem:[%s629] ss:$2 sm:$0xff] %v625
      %v631 = vld.sshfl [vmem:[#allocation1] sm:$0xff pattern:$0x75316420]
      %v632 = vld.sshfl [vmem:[#allocation1 + $0x8] sm:$0xff pattern:$0x75316420]
      %v633 = vld.sshfl [vmem:[#allocation1 + $0x10] sm:$0xff pattern:$0x75316420]
      %634 = vrot.lane.b32.xlu0 %v631, 65
      %v635 = vpop.permute.xlu0 %634
      %636 = vrot.lane.b32.xlu0 %v632, 65
      %v637 = vpop.permute.xlu0 %636
      %638 = vrot.lane.b32.xlu0 %v633, 65
      %v639 = vpop.permute.xlu0 %638
      %vm640 = vcmask 531456
      %v641 = vsel %vm640, %v635, %v637
      %v642 = vsel %vm640, %v637, %v639
      %v645 = vsel %vm297, %v641, 0.0
      %v646 = vsel %vm298, %v642, 0.0
      %v649 = vrot.slane %v645, 4
      %v650 = vrot.slane %v646, 4
      %653 = vst [vmem:[#allocation3 + $0x50] sm:$0xf0] %v649
      %654 = vst [vmem:[#allocation3 + $0x58] sm:$0xf0] %v650
      %v655 = vld [vmem:[#allocation2] sm:$0xff]
      %v656 = vld [vmem:[#allocation2 + $0x8] sm:$0xf]
      %659 = vst [vmem:[#allocation1] ss:$2 sm:$0xff] %v655
      %s660 = scalar_lea.vmem [#allocation1], 16
      %661 = vst [vmem:[%s660] ss:$2 sm:$0xff] %v656
      %v662 = vld.sshfl [vmem:[#allocation1] sm:$0xff pattern:$0x75316420]
      %v663 = vld.sshfl [vmem:[#allocation1 + $0x8] sm:$0xff pattern:$0x75316420]
      %v664 = vld.sshfl [vmem:[#allocation1 + $0x10] sm:$0xff pattern:$0x75316420]
      %665 = vrot.lane.b32.xlu0 %v662, 64
      %v666 = vpop.permute.xlu0 %665
      %667 = vrot.lane.b32.xlu0 %v663, 64
      %v668 = vpop.permute.xlu0 %667
      %669 = vrot.lane.b32.xlu0 %v664, 64
      %v670 = vpop.permute.xlu0 %669
      %v671 = vsel %vm320, %v666, %v668
      %v672 = vsel %vm320, %v668, %v670
      %675 = vst [vmem:[#allocation3 + $0x60] sm:$0xf] %v671
      %676 = vst [vmem:[#allocation3 + $0x68] sm:$0xf] %v672
      %v677 = vld [vmem:[#allocation2] sm:$0xff]
      %v678 = vld [vmem:[#allocation2 + $0x8] sm:$0xf]
      %681 = vst [vmem:[#allocation1] ss:$2 sm:$0xff] %v677
      %s682 = scalar_lea.vmem [#allocation1], 16
      %683 = vst [vmem:[%s682] ss:$2 sm:$0xff] %v678
      %v684 = vld.sshfl [vmem:[#allocation1] sm:$0xff pattern:$0x75316420]
      %v685 = vld.sshfl [vmem:[#allocation1 + $0x8] sm:$0xff pattern:$0x75316420]
      %v686 = vld.sshfl [vmem:[#allocation1 + $0x10] sm:$0xff pattern:$0x75316420]
      %687 = vrot.lane.b32.xlu0 %v684, 63
      %v688 = vpop.permute.xlu0 %687
      %689 = vrot.lane.b32.xlu0 %v685, 63
      %v690 = vpop.permute.xlu0 %689
      %691 = vrot.lane.b32.xlu0 %v686, 63
      %v692 = vpop.permute.xlu0 %691
      %vm693 = vcmask 515072
      %v694 = vsel %vm693, %v688, %v690
      %v695 = vsel %vm693, %v690, %v692
      %v698 = vsel %vm305, %v694, 0.0
      %v699 = vsel %vm306, %v695, 0.0
      %v702 = vrot.slane %v698, 4
      %v703 = vrot.slane %v699, 4
      %706 = vst [vmem:[#allocation3 + $0x60] sm:$0xf0] %v702
      %707 = vst [vmem:[#allocation3 + $0x68] sm:$0xf0] %v703
      %v708 = vld [vmem:[#allocation2] sm:$0xff]
      %v709 = vld [vmem:[#allocation2 + $0x8] sm:$0xf]
      %712 = vst [vmem:[#allocation1] ss:$2 sm:$0xff] %v708
      %s713 = scalar_lea.vmem [#allocation1], 16
      %714 = vst [vmem:[%s713] ss:$2 sm:$0xff] %v709
      %v715 = vld.sshfl [vmem:[#allocation1] sm:$0xff pattern:$0x75316420]
      %v716 = vld.sshfl [vmem:[#allocation1 + $0x8] sm:$0xff pattern:$0x75316420]
      %v717 = vld.sshfl [vmem:[#allocation1 + $0x10] sm:$0xff pattern:$0x75316420]
      %718 = vrot.lane.b32.xlu0 %v715, 62
      %v719 = vpop.permute.xlu0 %718
      %720 = vrot.lane.b32.xlu0 %v716, 62
      %v721 = vpop.permute.xlu0 %720
      %722 = vrot.lane.b32.xlu0 %v717, 62
      %v723 = vpop.permute.xlu0 %722
      %vm724 = vcmask 506880
      %v725 = vsel %vm724, %v719, %v721
      %v726 = vsel %vm724, %v721, %v723
      %v729 = vsel %vm313, %v725, 0.0
      %v730 = vsel %vm314, %v726, 0.0
      %731 = vst [vmem:[#allocation3 + $0x70] sm:$0xf] %v729
      %732 = vst [vmem:[#allocation3 + $0x78] sm:$0xf] %v730
      %v733 = vld [vmem:[#allocation2] sm:$0xff]
      %v734 = vld [vmem:[#allocation2 + $0x8] sm:$0xf]
      %737 = vst [vmem:[#allocation1] ss:$2 sm:$0xff] %v733
      %s738 = scalar_lea.vmem [#allocation1], 16
      %739 = vst [vmem:[%s738] ss:$2 sm:$0xff] %v734
      %v740 = vld.sshfl [vmem:[#allocation1] sm:$0xff pattern:$0x75316420]
      %v741 = vld.sshfl [vmem:[#allocation1 + $0x8] sm:$0xff pattern:$0x75316420]
      %v742 = vld.sshfl [vmem:[#allocation1 + $0x10] sm:$0xff pattern:$0x75316420]
      %743 = vrot.lane.b32.xlu0 %v740, 50
      %v744 = vpop.permute.xlu0 %743
      %745 = vrot.lane.b32.xlu0 %v741, 50
      %v746 = vpop.permute.xlu0 %745
      %747 = vrot.lane.b32.xlu0 %v742, 50
      %v748 = vpop.permute.xlu0 %747
      %vm749 = vcmask 408576
      %v750 = vsel %vm749, %v744, %v746
      %v751 = vsel %vm749, %v746, %v748
      %v754 = vsel %vm289, %v750, 0.0
      %v755 = vsel %vm290, %v751, 0.0
      %v758 = vrot.slane %v754, 4
      %v759 = vrot.slane %v755, 4
      %762 = vst [vmem:[#allocation3 + $0x70] sm:$0xf0] %v758
      %763 = vst [vmem:[#allocation3 + $0x78] sm:$0xf0] %v759
      %v764 = vld [vmem:[#allocation2] sm:$0xff]
      %v765 = vld [vmem:[#allocation2 + $0x8] sm:$0xf]
      %768 = vst [vmem:[#allocation1] ss:$2 sm:$0xff] %v764
      %s769 = scalar_lea.vmem [#allocation1], 16
      %770 = vst [vmem:[%s769] ss:$2 sm:$0xff] %v765
      %v771 = vld.sshfl [vmem:[#allocation1] sm:$0xff pattern:$0x75316420]
      %v772 = vld.sshfl [vmem:[#allocation1 + $0x8] sm:$0xff pattern:$0x75316420]
      %v773 = vld.sshfl [vmem:[#allocation1 + $0x10] sm:$0xff pattern:$0x75316420]
      %774 = vrot.lane.b32.xlu0 %v771, 49
      %v775 = vpop.permute.xlu0 %774
      %776 = vrot.lane.b32.xlu0 %v772, 49
      %v777 = vpop.permute.xlu0 %776
      %778 = vrot.lane.b32.xlu0 %v773, 49
      %v779 = vpop.permute.xlu0 %778
      %vm780 = vcmask 400384
      %v781 = vsel %vm780, %v775, %v777
      %v782 = vsel %vm780, %v777, %v779
      %v785 = vsel %vm297, %v781, 0.0
      %v786 = vsel %vm298, %v782, 0.0
      %787 = vst [vmem:[#allocation3 + $0x80] sm:$0xf] %v785
      %788 = vst [vmem:[#allocation3 + $0x88] sm:$0xf] %v786
      %v789 = vld [vmem:[#allocation2] sm:$0xff]
      %v790 = vld [vmem:[#allocation2 + $0x8] sm:$0xf]
      %s793 = scalar_lea.vmem [#allocation1], 1
      %794 = vst [vmem:[%s793] ss:$2 sm:$0xff] %v789
      %s795 = scalar_lea.vmem [#allocation1], 17
      %796 = vst [vmem:[%s795] ss:$2 sm:$0xff] %v790
      %v797 = vld.sshfl [vmem:[#allocation1] sm:$0xff pattern:$0x75316420]
      %v798 = vld.sshfl [vmem:[#allocation1 + $0x8] sm:$0xff pattern:$0x75316420]
      %v799 = vld.sshfl [vmem:[#allocation1 + $0x10] sm:$0xff pattern:$0x75316420]
      %800 = vrot.lane.b32.xlu0 %v797, 48
      %v801 = vpop.permute.xlu0 %800
      %802 = vrot.lane.b32.xlu0 %v798, 48
      %v803 = vpop.permute.xlu0 %802
      %804 = vrot.lane.b32.xlu0 %v799, 48
      %v805 = vpop.permute.xlu0 %804
      %vm806 = vcmask 392192
      %v807 = vsel %vm806, %v801, %v803
      %v808 = vsel %vm806, %v803, %v805
      %811 = vst [vmem:[#allocation3 + $0x80] sm:$0xf0] %v807
      %812 = vst [vmem:[#allocation3 + $0x88] sm:$0xf0] %v808
      %v813 = vld [vmem:[#allocation2] sm:$0xff]
      %v814 = vld [vmem:[#allocation2 + $0x8] sm:$0xf]
      %817 = vst [vmem:[#allocation1] ss:$2 sm:$0xff] %v813
      %s818 = scalar_lea.vmem [#allocation1], 16
      %819 = vst [vmem:[%s818] ss:$2 sm:$0xff] %v814
      %v820 = vld.sshfl [vmem:[#allocation1] sm:$0xff pattern:$0x75316420]
      %v821 = vld.sshfl [vmem:[#allocation1 + $0x8] sm:$0xff pattern:$0x75316420]
      %v822 = vld.sshfl [vmem:[#allocation1 + $0x10] sm:$0xff pattern:$0x75316420]
      %823 = vrot.lane.b32.xlu0 %v820, 47
      %v824 = vpop.permute.xlu0 %823
      %825 = vrot.lane.b32.xlu0 %v821, 47
      %v826 = vpop.permute.xlu0 %825
      %827 = vrot.lane.b32.xlu0 %v822, 47
      %v828 = vpop.permute.xlu0 %827
      %vm829 = vcmask 384000
      %v830 = vsel %vm829, %v824, %v826
      %v831 = vsel %vm829, %v826, %v828
      %v834 = vsel %vm305, %v830, 0.0
      %v835 = vsel %vm306, %v831, 0.0
      %836 = vst [vmem:[#allocation3 + $0x90] sm:$0xf] %v834
      %837 = vst [vmem:[#allocation3 + $0x98] sm:$0xf] %v835
      %v838 = vld [vmem:[#allocation2] sm:$0xff]
      %v839 = vld [vmem:[#allocation2 + $0x8] sm:$0xf]
      %842 = vst [vmem:[#allocation1] ss:$2 sm:$0xff] %v838
      %s843 = scalar_lea.vmem [#allocation1], 16
      %844 = vst [vmem:[%s843] ss:$2 sm:$0xff] %v839
      %v845 = vld.sshfl [vmem:[#allocation1] sm:$0xff pattern:$0x75316420]
      %v846 = vld.sshfl [vmem:[#allocation1 + $0x8] sm:$0xff pattern:$0x75316420]
      %v847 = vld.sshfl [vmem:[#allocation1 + $0x10] sm:$0xff pattern:$0x75316420]
      %848 = vrot.lane.b32.xlu0 %v845, 46
      %v849 = vpop.permute.xlu0 %848
      %850 = vrot.lane.b32.xlu0 %v846, 46
      %v851 = vpop.permute.xlu0 %850
      %852 = vrot.lane.b32.xlu0 %v847, 46
      %v853 = vpop.permute.xlu0 %852
      %vm854 = vcmask 375808
      %v855 = vsel %vm854, %v849, %v851
      %v856 = vsel %vm854, %v851, %v853
      %v859 = vsel %vm313, %v855, 0.0
      %v860 = vsel %vm314, %v856, 0.0
      %v863 = vrot.slane %v859, 4
      %v864 = vrot.slane %v860, 4
      %867 = vst [vmem:[#allocation3 + $0x90] sm:$0xf0] %v863
      %868 = vst [vmem:[#allocation3 + $0x98] sm:$0xf0] %v864
      %v869 = vld [vmem:[#allocation2] sm:$0xff]
      %v870 = vld [vmem:[#allocation2 + $0x8] sm:$0xf]
      %873 = vst [vmem:[#allocation1] ss:$2 sm:$0xff] %v869
      %s874 = scalar_lea.vmem [#allocation1], 16
      %875 = vst [vmem:[%s874] ss:$2 sm:$0xff] %v870
      %v876 = vld.sshfl [vmem:[#allocation1] sm:$0xff pattern:$0x75316420]
      %v877 = vld.sshfl [vmem:[#allocation1 + $0x8] sm:$0xff pattern:$0x75316420]
      %v878 = vld.sshfl [vmem:[#allocation1 + $0x10] sm:$0xff pattern:$0x75316420]
      %879 = vrot.lane.b32.xlu0 %v876, 34
      %v880 = vpop.permute.xlu0 %879
      %881 = vrot.lane.b32.xlu0 %v877, 34
      %v882 = vpop.permute.xlu0 %881
      %883 = vrot.lane.b32.xlu0 %v878, 34
      %v884 = vpop.permute.xlu0 %883
      %vm885 = vcmask 277504
      %v886 = vsel %vm885, %v880, %v882
      %v887 = vsel %vm885, %v882, %v884
      %v890 = vsel %vm289, %v886, 0.0
      %v891 = vsel %vm290, %v887, 0.0
      %892 = vst [vmem:[#allocation3 + $0xa0] sm:$0xf] %v890
      %893 = vst [vmem:[#allocation3 + $0xa8] sm:$0xf] %v891
      %v894 = vld [vmem:[#allocation2] sm:$0xff]
      %v895 = vld [vmem:[#allocation2 + $0x8] sm:$0xf]
      %898 = vst [vmem:[#allocation1] ss:$2 sm:$0xff] %v894
      %s899 = scalar_lea.vmem [#allocation1], 16
      %900 = vst [vmem:[%s899] ss:$2 sm:$0xff] %v895
      %v901 = vld.sshfl [vmem:[#allocation1] sm:$0xff pattern:$0x75316420]
      %v902 = vld.sshfl [vmem:[#allocation1 + $0x8] sm:$0xff pattern:$0x75316420]
      %v903 = vld.sshfl [vmem:[#allocation1 + $0x10] sm:$0xff pattern:$0x75316420]
      %904 = vrot.lane.b32.xlu0 %v901, 33
      %v905 = vpop.permute.xlu0 %904
      %906 = vrot.lane.b32.xlu0 %v902, 33
      %v907 = vpop.permute.xlu0 %906
      %908 = vrot.lane.b32.xlu0 %v903, 33
      %v909 = vpop.permute.xlu0 %908
      %vm910 = vcmask 269312
      %v911 = vsel %vm910, %v905, %v907
      %v912 = vsel %vm910, %v907, %v909
      %v915 = vsel %vm297, %v911, 0.0
      %v916 = vsel %vm298, %v912, 0.0
      %v919 = vrot.slane %v915, 4
      %v920 = vrot.slane %v916, 4
      %923 = vst [vmem:[#allocation3 + $0xa0] sm:$0xf0] %v919
      %924 = vst [vmem:[#allocation3 + $0xa8] sm:$0xf0] %v920
      %v925 = vld [vmem:[#allocation2] sm:$0xff]
      %v926 = vld [vmem:[#allocation2 + $0x8] sm:$0xf]
      %929 = vst [vmem:[#allocation1] ss:$2 sm:$0xff] %v925
      %s930 = scalar_lea.vmem [#allocation1], 16
      %931 = vst [vmem:[%s930] ss:$2 sm:$0xff] %v926
      %v932 = vld.sshfl [vmem:[#allocation1] sm:$0xff pattern:$0x75316420]
      %v933 = vld.sshfl [vmem:[#allocation1 + $0x8] sm:$0xff pattern:$0x75316420]
      %v934 = vld.sshfl [vmem:[#allocation1 + $0x10] sm:$0xff pattern:$0x75316420]
      %935 = vrot.lane.b32.xlu0 %v932, 32
      %v936 = vpop.permute.xlu0 %935
      %937 = vrot.lane.b32.xlu0 %v933, 32
      %v938 = vpop.permute.xlu0 %937
      %939 = vrot.lane.b32.xlu0 %v934, 32
      %v940 = vpop.permute.xlu0 %939
      %vm941 = vcmask 261120
      %v942 = vsel %vm941, %v936, %v938
      %v943 = vsel %vm941, %v938, %v940
      %946 = vst [vmem:[#allocation3 + $0xb0] sm:$0xf] %v942
      %947 = vst [vmem:[#allocation3 + $0xb8] sm:$0xf] %v943
      %v948 = vld [vmem:[#allocation2] sm:$0xff]
      %v949 = vld [vmem:[#allocation2 + $0x8] sm:$0xf]
      %952 = vst [vmem:[#allocation1] ss:$2 sm:$0xff] %v948
      %s953 = scalar_lea.vmem [#allocation1], 16
      %954 = vst [vmem:[%s953] ss:$2 sm:$0xff] %v949
      %v955 = vld.sshfl [vmem:[#allocation1] sm:$0xff pattern:$0x75316420]
      %v956 = vld.sshfl [vmem:[#allocation1 + $0x8] sm:$0xff pattern:$0x75316420]
      %v957 = vld.sshfl [vmem:[#allocation1 + $0x10] sm:$0xff pattern:$0x75316420]
      %958 = vrot.lane.b32.xlu0 %v955, 31
      %v959 = vpop.permute.xlu0 %958
      %960 = vrot.lane.b32.xlu0 %v956, 31
      %v961 = vpop.permute.xlu0 %960
      %962 = vrot.lane.b32.xlu0 %v957, 31
      %v963 = vpop.permute.xlu0 %962
      %vm964 = vcmask 252928
      %v965 = vsel %vm964, %v959, %v961
      %v966 = vsel %vm964, %v961, %v963
      %v969 = vsel %vm305, %v965, 0.0
      %v970 = vsel %vm306, %v966, 0.0
      %v973 = vrot.slane %v969, 4
      %v974 = vrot.slane %v970, 4
      %977 = vst [vmem:[#allocation3 + $0xb0] sm:$0xf0] %v973
      %978 = vst [vmem:[#allocation3 + $0xb8] sm:$0xf0] %v974
      %v979 = vld [vmem:[#allocation2] sm:$0xff]
      %v980 = vld [vmem:[#allocation2 + $0x8] sm:$0xf]
      %983 = vst [vmem:[#allocation1] ss:$2 sm:$0xff] %v979
      %s984 = scalar_lea.vmem [#allocation1], 16
      %985 = vst [vmem:[%s984] ss:$2 sm:$0xff] %v980
      %v986 = vld.sshfl [vmem:[#allocation1] sm:$0xff pattern:$0x75316420]
      %v987 = vld.sshfl [vmem:[#allocation1 + $0x8] sm:$0xff pattern:$0x75316420]
      %v988 = vld.sshfl [vmem:[#allocation1 + $0x10] sm:$0xff pattern:$0x75316420]
      %989 = vrot.lane.b32.xlu0 %v986, 30
      %v990 = vpop.permute.xlu0 %989
      %991 = vrot.lane.b32.xlu0 %v987, 30
      %v992 = vpop.permute.xlu0 %991
      %993 = vrot.lane.b32.xlu0 %v988, 30
      %v994 = vpop.permute.xlu0 %993
      %vm995 = vcmask 244736
      %v996 = vsel %vm995, %v990, %v992
      %v997 = vsel %vm995, %v992, %v994
      %v1000 = vsel %vm313, %v996, 0.0
      %v1001 = vsel %vm314, %v997, 0.0
      %1002 = vst [vmem:[#allocation3 + $0xc0] sm:$0xf] %v1000
      %1003 = vst [vmem:[#allocation3 + $0xc8] sm:$0xf] %v1001
      %v1004 = vld [vmem:[%s1] sm:$0xf]
      %v1005 = vld [vmem:[#allocation3] sm:$0xff]
      %v1006 = vld [vmem:[#allocation3 + $0x8] sm:$0xff]
      %v1007 = vld [vmem:[#allocation3 + $0x10] sm:$0xff]
      %v1008 = vld [vmem:[#allocation3 + $0x18] sm:$0xff]
      %v1009 = vld [vmem:[#allocation3 + $0x20] sm:$0xff]
      %v1010 = vld [vmem:[#allocation3 + $0x28] sm:$0xff]
      %v1011 = vld [vmem:[#allocation3 + $0x30] sm:$0xff]
      %v1012 = vld [vmem:[#allocation3 + $0x38] sm:$0xff]
      %v1013 = vld [vmem:[#allocation3 + $0x40] sm:$0xff]
      %v1014 = vld [vmem:[#allocation3 + $0x48] sm:$0xff]
      %v1015 = vld [vmem:[#allocation3 + $0x50] sm:$0xff]
      %v1016 = vld [vmem:[#allocation3 + $0x58] sm:$0xff]
      %v1017 = vld [vmem:[#allocation3 + $0x60] sm:$0xff]
      %v1018 = vld [vmem:[#allocation3 + $0x68] sm:$0xff]
      %v1019 = vld [vmem:[#allocation3 + $0x70] sm:$0xff]
      %v1020 = vld [vmem:[#allocation3 + $0x78] sm:$0xff]
      %v1021 = vld [vmem:[#allocation3 + $0x80] sm:$0xff]
      %v1022 = vld [vmem:[#allocation3 + $0x88] sm:$0xff]
      %v1023 = vld [vmem:[#allocation3 + $0x90] sm:$0xff]
      %v1024 = vld [vmem:[#allocation3 + $0x98] sm:$0xff]
      %v1025 = vld [vmem:[#allocation3 + $0xa0] sm:$0xff]
      %v1026 = vld [vmem:[#allocation3 + $0xa8] sm:$0xff]
      %v1027 = vld [vmem:[#allocation3 + $0xb0] sm:$0xff]
      %v1028 = vld [vmem:[#allocation3 + $0xb8] sm:$0xff]
      %v1029 = vld [vmem:[#allocation3 + $0xc0] sm:$0xf]
      %v1030 = vld [vmem:[#allocation3 + $0xc8] sm:$0xf]
      %v1031 = vld [vmem:[%s2] sm:$0xf]
      %1033 = vset.pattern.permute.xlu0 0
      %1034 = vperm.xlu0 %1033, %v1031
      %v1035 = vpop.permute.xlu0 %1034
      %vm1037 = vcmask 818176
      %v1039 = vsel %vm1037, %v1004, 0
      %vm1041 = vcmask 1043456
      %v1043 = vsel %vm1041, %v1029, 0
      %v1046 = vsel %vm1041, %v1030, 0
      %1048 = vmatpush.msra.mxu0 0.0
      %1049 = vmatpush.msra.mxu0 0.0
      %1050 = vmatpush.msra.mxu0 0.0
      %1051 = vmatpush.msra.mxu0 %v1043
      %1052 = vmatpush.msra.mxu0 %v1027
      %1053 = vmatpush.msra.mxu0 %v1025
      %1054 = vmatpush.msra.mxu0 %v1023
      %1055 = vmatpush.msra.mxu0 %v1021
      %1056 = vmatpush.msra.mxu0 %v1019
      %1057 = vmatpush.msra.mxu0 %v1017
      %1058 = vmatpush.msra.mxu0 %v1015
      %1059 = vmatpush.msra.mxu0 %v1013
      %1060 = vmatpush.msra.mxu0 %v1011
      %1061 = vmatpush.msra.mxu0 %v1009
      %1062 = vmatpush.msra.mxu0 %v1007
      %1063 = vmatpush.msra.mxu0 %v1005
      %1064 = vmatmul.f32.gmra.mxu0 %v1039
      %v1065 = vpop.f32.mrf.mxu0
      %v1066 = vadd.f32 %v1035, %v1065
      %1067 = vdwg.mxu0
      %1068 = vmatpush.msra.mxu0 0.0
      %1069 = vmatpush.msra.mxu0 0.0
      %1070 = vmatpush.msra.mxu0 0.0
      %1071 = vmatpush.msra.mxu0 %v1046
      %1072 = vmatpush.msra.mxu0 %v1028
      %1073 = vmatpush.msra.mxu0 %v1026
      %1074 = vmatpush.msra.mxu0 %v1024
      %1075 = vmatpush.msra.mxu0 %v1022
      %1076 = vmatpush.msra.mxu0 %v1020
      %1077 = vmatpush.msra.mxu0 %v1018
      %1078 = vmatpush.msra.mxu0 %v1016
      %1079 = vmatpush.msra.mxu0 %v1014
      %1080 = vmatpush.msra.mxu0 %v1012
      %1081 = vmatpush.msra.mxu0 %v1010
      %1082 = vmatpush.msra.mxu0 %v1008
      %1083 = vmatpush.msra.mxu0 %v1006
      %1084 = vmatmul.f32.gmra.mxu0 %v1039
      %v1085 = vpop.f32.mrf.mxu0
      %v1086 = vadd.f32 %v1035, %v1085
      %1087 = vdwg.mxu0
      %v1088 = vmax.f32 %v1066, 0.0
      %v1089 = vmax.f32 %v1086, 0.0
      %v1092 = vrot.slane %v1089, 4
      %v1093 = vsel %vm1041, %v1088, %v1092
      %1094 = vrot.lane.b32.xlu0 %v1093, 64
      %v1095 = vpop.permute.xlu0 %1094
      %v1096 = vrot.slane %v1095, 4
      %v1097 = vsel %vm320, %v1096, %v1095
      %1100 = vst.msk [vmem:[#allocation2] sm:$0xff] %vm325, %v1097
      %1101 = vst.msk [vmem:[#allocation2 + $0x8] sm:$0xf] %vm252, %v1096
      %v1102 = vld [vmem:[#allocation2] sm:$0xff]
      %v1103 = vld [vmem:[#allocation2 + $0x8] sm:$0xf]
      %1106 = vst [vmem:[#allocation1] ss:$2 sm:$0xff] %v1102
      %s1107 = scalar_lea.vmem [#allocation1], 16
      %1108 = vst [vmem:[%s1107] ss:$2 sm:$0xff] %v1103
      %v1109 = vld.sshfl [vmem:[#allocation1] sm:$0xff pattern:$0x75316420]
      %v1110 = vld.sshfl [vmem:[#allocation1 + $0x8] sm:$0xff pattern:$0x75316420]
      %v1111 = vld.sshfl [vmem:[#allocation1 + $0x10] sm:$0xff pattern:$0x75316420]
      %1112 = vrot.lane.b32.xlu0 %v1109, 98
      %v1113 = vpop.permute.xlu0 %1112
      %1114 = vrot.lane.b32.xlu0 %v1110, 98
      %v1115 = vpop.permute.xlu0 %1114
      %1116 = vrot.lane.b32.xlu0 %v1111, 98
      %v1117 = vpop.permute.xlu0 %1116
      %v1118 = vsel %vm344, %v1113, %v1115
      %v1119 = vsel %vm344, %v1115, %v1117
      %v1122 = vsel %vm289, %v1118, 0.0
      %v1123 = vsel %vm290, %v1119, 0.0
      %1124 = vst [vmem:[#allocation3] sm:$0xf] %v1122
      %1125 = vst [vmem:[#allocation3 + $0x8] sm:$0xf] %v1123
      %v1126 = vld [vmem:[#allocation2] sm:$0xff]
      %v1127 = vld [vmem:[#allocation2 + $0x8] sm:$0xf]
      %1130 = vst [vmem:[#allocation1] ss:$2 sm:$0xff] %v1126
      %s1131 = scalar_lea.vmem [#allocation1], 16
      %1132 = vst [vmem:[%s1131] ss:$2 sm:$0xff] %v1127
      %v1133 = vld.sshfl [vmem:[#allocation1] sm:$0xff pattern:$0x75316420]
      %v1134 = vld.sshfl [vmem:[#allocation1 + $0x8] sm:$0xff pattern:$0x75316420]
      %v1135 = vld.sshfl [vmem:[#allocation1 + $0x10] sm:$0xff pattern:$0x75316420]
      %1136 = vrot.lane.b32.xlu0 %v1133, 97
      %v1137 = vpop.permute.xlu0 %1136
      %1138 = vrot.lane.b32.xlu0 %v1134, 97
      %v1139 = vpop.permute.xlu0 %1138
      %1140 = vrot.lane.b32.xlu0 %v1135, 97
      %v1141 = vpop.permute.xlu0 %1140
      %v1142 = vsel %vm369, %v1137, %v1139
      %v1143 = vsel %vm369, %v1139, %v1141
      %v1146 = vsel %vm297, %v1142, 0.0
      %v1147 = vsel %vm298, %v1143, 0.0
      %v1150 = vrot.slane %v1146, 4
      %v1151 = vrot.slane %v1147, 4
      %1154 = vst [vmem:[#allocation3] sm:$0xf0] %v1150
      %1155 = vst [vmem:[#allocation3 + $0x8] sm:$0xf0] %v1151
      %v1156 = vld [vmem:[#allocation2] sm:$0xff]
      %v1157 = vld [vmem:[#allocation2 + $0x8] sm:$0xf]
      %1160 = vst [vmem:[#allocation1] ss:$2 sm:$0xff] %v1156
      %s1161 = scalar_lea.vmem [#allocation1], 16
      %1162 = vst [vmem:[%s1161] ss:$2 sm:$0xff] %v1157
      %v1163 = vld.sshfl [vmem:[#allocation1] sm:$0xff pattern:$0x75316420]
      %v1164 = vld.sshfl [vmem:[#allocation1 + $0x8] sm:$0xff pattern:$0x75316420]
      %v1165 = vld.sshfl [vmem:[#allocation1 + $0x10] sm:$0xff pattern:$0x75316420]
      %1166 = vrot.lane.b32.xlu0 %v1163, 96
      %v1167 = vpop.permute.xlu0 %1166
      %1168 = vrot.lane.b32.xlu0 %v1164, 96
      %v1169 = vpop.permute.xlu0 %1168
      %1170 = vrot.lane.b32.xlu0 %v1165, 96
      %v1171 = vpop.permute.xlu0 %1170
      %v1172 = vsel %vm400, %v1167, %v1169
      %v1173 = vsel %vm400, %v1169, %v1171
      %1176 = vst [vmem:[#allocation3 + $0x10] sm:$0xf] %v1172
      %1177 = vst [vmem:[#allocation3 + $0x18] sm:$0xf] %v1173
      %v1178 = vld [vmem:[#allocation2] sm:$0xff]
      %v1179 = vld [vmem:[#allocation2 + $0x8] sm:$0xf]
      %1182 = vst [vmem:[#allocation1] ss:$2 sm:$0xff] %v1178
      %s1183 = scalar_lea.vmem [#allocation1], 16
      %1184 = vst [vmem:[%s1183] ss:$2 sm:$0xff] %v1179
      %v1185 = vld.sshfl [vmem:[#allocation1] sm:$0xff pattern:$0x75316420]
      %v1186 = vld.sshfl [vmem:[#allocation1 + $0x8] sm:$0xff pattern:$0x75316420]
      %v1187 = vld.sshfl [vmem:[#allocation1 + $0x10] sm:$0xff pattern:$0x75316420]
      %1188 = vrot.lane.b32.xlu0 %v1185, 95
      %v1189 = vpop.permute.xlu0 %1188
      %1190 = vrot.lane.b32.xlu0 %v1186, 95
      %v1191 = vpop.permute.xlu0 %1190
      %1192 = vrot.lane.b32.xlu0 %v1187, 95
      %v1193 = vpop.permute.xlu0 %1192
      %v1194 = vsel %vm423, %v1189, %v1191
      %v1195 = vsel %vm423, %v1191, %v1193
      %v1198 = vsel %vm305, %v1194, 0.0
      %v1199 = vsel %vm306, %v1195, 0.0
      %v1202 = vrot.slane %v1198, 4
      %v1203 = vrot.slane %v1199, 4
      %1206 = vst [vmem:[#allocation3 + $0x10] sm:$0xf0] %v1202
      %1207 = vst [vmem:[#allocation3 + $0x18] sm:$0xf0] %v1203
      %v1208 = vld [vmem:[#allocation2] sm:$0xff]
      %v1209 = vld [vmem:[#allocation2 + $0x8] sm:$0xf]
      %1212 = vst [vmem:[#allocation1] ss:$2 sm:$0xff] %v1208
      %s1213 = scalar_lea.vmem [#allocation1], 16
      %1214 = vst [vmem:[%s1213] ss:$2 sm:$0xff] %v1209
      %v1215 = vld.sshfl [vmem:[#allocation1] sm:$0xff pattern:$0x75316420]
      %v1216 = vld.sshfl [vmem:[#allocation1 + $0x8] sm:$0xff pattern:$0x75316420]
      %v1217 = vld.sshfl [vmem:[#allocation1 + $0x10] sm:$0xff pattern:$0x75316420]
      %1218 = vrot.lane.b32.xlu0 %v1215, 94
      %v1219 = vpop.permute.xlu0 %1218
      %1220 = vrot.lane.b32.xlu0 %v1216, 94
      %v1221 = vpop.permute.xlu0 %1220
      %1222 = vrot.lane.b32.xlu0 %v1217, 94
      %v1223 = vpop.permute.xlu0 %1222
      %v1224 = vsel %vm454, %v1219, %v1221
      %v1225 = vsel %vm454, %v1221, %v1223
      %v1228 = vsel %vm313, %v1224, 0.0
      %v1229 = vsel %vm314, %v1225, 0.0
      %1230 = vst [vmem:[#allocation3 + $0x20] sm:$0xf] %v1228
      %1231 = vst [vmem:[#allocation3 + $0x28] sm:$0xf] %v1229
      %v1232 = vld [vmem:[#allocation2] sm:$0xff]
      %v1233 = vld [vmem:[#allocation2 + $0x8] sm:$0xf]
      %1236 = vst [vmem:[#allocation1] ss:$2 sm:$0xff] %v1232
      %s1237 = scalar_lea.vmem [#allocation1], 16
      %1238 = vst [vmem:[%s1237] ss:$2 sm:$0xff] %v1233
      %v1239 = vld.sshfl [vmem:[#allocation1] sm:$0xff pattern:$0x75316420]
      %v1240 = vld.sshfl [vmem:[#allocation1 + $0x8] sm:$0xff pattern:$0x75316420]
      %v1241 = vld.sshfl [vmem:[#allocation1 + $0x10] sm:$0xff pattern:$0x75316420]
      %1242 = vrot.lane.b32.xlu0 %v1239, 82
      %v1243 = vpop.permute.xlu0 %1242
      %1244 = vrot.lane.b32.xlu0 %v1240, 82
      %v1245 = vpop.permute.xlu0 %1244
      %1246 = vrot.lane.b32.xlu0 %v1241, 82
      %v1247 = vpop.permute.xlu0 %1246
      %v1248 = vsel %vm479, %v1243, %v1245
      %v1249 = vsel %vm479, %v1245, %v1247
      %v1252 = vsel %vm289, %v1248, 0.0
      %v1253 = vsel %vm290, %v1249, 0.0
      %v1256 = vrot.slane %v1252, 4
      %v1257 = vrot.slane %v1253, 4
      %1260 = vst [vmem:[#allocation3 + $0x20] sm:$0xf0] %v1256
      %1261 = vst [vmem:[#allocation3 + $0x28] sm:$0xf0] %v1257
      %v1262 = vld [vmem:[#allocation2] sm:$0xff]
      %v1263 = vld [vmem:[#allocation2 + $0x8] sm:$0xf]
      %1266 = vst [vmem:[#allocation1] ss:$2 sm:$0xff] %v1262
      %s1267 = scalar_lea.vmem [#allocation1], 16
      %1268 = vst [vmem:[%s1267] ss:$2 sm:$0xff] %v1263
      %v1269 = vld.sshfl [vmem:[#allocation1] sm:$0xff pattern:$0x75316420]
      %v1270 = vld.sshfl [vmem:[#allocation1 + $0x8] sm:$0xff pattern:$0x75316420]
      %v1271 = vld.sshfl [vmem:[#allocation1 + $0x10] sm:$0xff pattern:$0x75316420]
      %1272 = vrot.lane.b32.xlu0 %v1269, 81
      %v1273 = vpop.permute.xlu0 %1272
      %1274 = vrot.lane.b32.xlu0 %v1270, 81
      %v1275 = vpop.permute.xlu0 %1274
      %1276 = vrot.lane.b32.xlu0 %v1271, 81
      %v1277 = vpop.permute.xlu0 %1276
      %v1278 = vsel %vm510, %v1273, %v1275
      %v1279 = vsel %vm510, %v1275, %v1277
      %v1282 = vsel %vm297, %v1278, 0.0
      %v1283 = vsel %vm298, %v1279, 0.0
      %1284 = vst [vmem:[#allocation3 + $0x30] sm:$0xf] %v1282
      %1285 = vst [vmem:[#allocation3 + $0x38] sm:$0xf] %v1283
      %v1286 = vld [vmem:[#allocation2] sm:$0xff]
      %v1287 = vld [vmem:[#allocation2 + $0x8] sm:$0xf]
      %s1290 = scalar_lea.vmem [#allocation1], 1
      %1291 = vst [vmem:[%s1290] ss:$2 sm:$0xff] %v1286
      %s1292 = scalar_lea.vmem [#allocation1], 17
      %1293 = vst [vmem:[%s1292] ss:$2 sm:$0xff] %v1287
      %v1294 = vld.sshfl [vmem:[#allocation1] sm:$0xff pattern:$0x75316420]
      %v1295 = vld.sshfl [vmem:[#allocation1 + $0x8] sm:$0xff pattern:$0x75316420]
      %v1296 = vld.sshfl [vmem:[#allocation1 + $0x10] sm:$0xff pattern:$0x75316420]
      %1297 = vrot.lane.b32.xlu0 %v1294, 80
      %v1298 = vpop.permute.xlu0 %1297
      %1299 = vrot.lane.b32.xlu0 %v1295, 80
      %v1300 = vpop.permute.xlu0 %1299
      %1301 = vrot.lane.b32.xlu0 %v1296, 80
      %v1302 = vpop.permute.xlu0 %1301
      %v1303 = vsel %vm536, %v1298, %v1300
      %v1304 = vsel %vm536, %v1300, %v1302
      %1307 = vst [vmem:[#allocation3 + $0x30] sm:$0xf0] %v1303
      %1308 = vst [vmem:[#allocation3 + $0x38] sm:$0xf0] %v1304
      %v1309 = vld [vmem:[#allocation2] sm:$0xff]
      %v1310 = vld [vmem:[#allocation2 + $0x8] sm:$0xf]
      %1313 = vst [vmem:[#allocation1] ss:$2 sm:$0xff] %v1309
      %s1314 = scalar_lea.vmem [#allocation1], 16
      %1315 = vst [vmem:[%s1314] ss:$2 sm:$0xff] %v1310
      %v1316 = vld.sshfl [vmem:[#allocation1] sm:$0xff pattern:$0x75316420]
      %v1317 = vld.sshfl [vmem:[#allocation1 + $0x8] sm:$0xff pattern:$0x75316420]
      %v1318 = vld.sshfl [vmem:[#allocation1 + $0x10] sm:$0xff pattern:$0x75316420]
      %1319 = vrot.lane.b32.xlu0 %v1316, 79
      %v1320 = vpop.permute.xlu0 %1319
      %1321 = vrot.lane.b32.xlu0 %v1317, 79
      %v1322 = vpop.permute.xlu0 %1321
      %1323 = vrot.lane.b32.xlu0 %v1318, 79
      %v1324 = vpop.permute.xlu0 %1323
      %v1325 = vsel %vm559, %v1320, %v1322
      %v1326 = vsel %vm559, %v1322, %v1324
      %v1329 = vsel %vm305, %v1325, 0.0
      %v1330 = vsel %vm306, %v1326, 0.0
      %1331 = vst [vmem:[#allocation3 + $0x40] sm:$0xf] %v1329
      %1332 = vst [vmem:[#allocation3 + $0x48] sm:$0xf] %v1330
      %v1333 = vld [vmem:[#allocation2] sm:$0xff]
      %v1334 = vld [vmem:[#allocation2 + $0x8] sm:$0xf]
      %1337 = vst [vmem:[#allocation1] ss:$2 sm:$0xff] %v1333
      %s1338 = scalar_lea.vmem [#allocation1], 16
      %1339 = vst [vmem:[%s1338] ss:$2 sm:$0xff] %v1334
      %v1340 = vld.sshfl [vmem:[#allocation1] sm:$0xff pattern:$0x75316420]
      %v1341 = vld.sshfl [vmem:[#allocation1 + $0x8] sm:$0xff pattern:$0x75316420]
      %v1342 = vld.sshfl [vmem:[#allocation1 + $0x10] sm:$0xff pattern:$0x75316420]
      %1343 = vrot.lane.b32.xlu0 %v1340, 78
      %v1344 = vpop.permute.xlu0 %1343
      %1345 = vrot.lane.b32.xlu0 %v1341, 78
      %v1346 = vpop.permute.xlu0 %1345
      %1347 = vrot.lane.b32.xlu0 %v1342, 78
      %v1348 = vpop.permute.xlu0 %1347
      %v1349 = vsel %vm584, %v1344, %v1346
      %v1350 = vsel %vm584, %v1346, %v1348
      %v1353 = vsel %vm313, %v1349, 0.0
      %v1354 = vsel %vm314, %v1350, 0.0
      %v1357 = vrot.slane %v1353, 4
      %v1358 = vrot.slane %v1354, 4
      %1361 = vst [vmem:[#allocation3 + $0x40] sm:$0xf0] %v1357
      %1362 = vst [vmem:[#allocation3 + $0x48] sm:$0xf0] %v1358
      %v1363 = vld [vmem:[#allocation2] sm:$0xff]
      %v1364 = vld [vmem:[#allocation2 + $0x8] sm:$0xf]
      %1367 = vst [vmem:[#allocation1] ss:$2 sm:$0xff] %v1363
      %s1368 = scalar_lea.vmem [#allocation1], 16
      %1369 = vst [vmem:[%s1368] ss:$2 sm:$0xff] %v1364
      %v1370 = vld.sshfl [vmem:[#allocation1] sm:$0xff pattern:$0x75316420]
      %v1371 = vld.sshfl [vmem:[#allocation1 + $0x8] sm:$0xff pattern:$0x75316420]
      %v1372 = vld.sshfl [vmem:[#allocation1 + $0x10] sm:$0xff pattern:$0x75316420]
      %1373 = vrot.lane.b32.xlu0 %v1370, 66
      %v1374 = vpop.permute.xlu0 %1373
      %1375 = vrot.lane.b32.xlu0 %v1371, 66
      %v1376 = vpop.permute.xlu0 %1375
      %1377 = vrot.lane.b32.xlu0 %v1372, 66
      %v1378 = vpop.permute.xlu0 %1377
      %v1379 = vsel %vm615, %v1374, %v1376
      %v1380 = vsel %vm615, %v1376, %v1378
      %v1383 = vsel %vm289, %v1379, 0.0
      %v1384 = vsel %vm290, %v1380, 0.0
      %1385 = vst [vmem:[#allocation3 + $0x50] sm:$0xf] %v1383
      %1386 = vst [vmem:[#allocation3 + $0x58] sm:$0xf] %v1384
      %v1387 = vld [vmem:[#allocation2] sm:$0xff]
      %v1388 = vld [vmem:[#allocation2 + $0x8] sm:$0xf]
      %1391 = vst [vmem:[#allocation1] ss:$2 sm:$0xff] %v1387
      %s1392 = scalar_lea.vmem [#allocation1], 16
      %1393 = vst [vmem:[%s1392] ss:$2 sm:$0xff] %v1388
      %v1394 = vld.sshfl [vmem:[#allocation1] sm:$0xff pattern:$0x75316420]
      %v1395 = vld.sshfl [vmem:[#allocation1 + $0x8] sm:$0xff pattern:$0x75316420]
      %v1396 = vld.sshfl [vmem:[#allocation1 + $0x10] sm:$0xff pattern:$0x75316420]
      %1397 = vrot.lane.b32.xlu0 %v1394, 65
      %v1398 = vpop.permute.xlu0 %1397
      %1399 = vrot.lane.b32.xlu0 %v1395, 65
      %v1400 = vpop.permute.xlu0 %1399
      %1401 = vrot.lane.b32.xlu0 %v1396, 65
      %v1402 = vpop.permute.xlu0 %1401
      %v1403 = vsel %vm640, %v1398, %v1400
      %v1404 = vsel %vm640, %v1400, %v1402
      %v1407 = vsel %vm297, %v1403, 0.0
      %v1408 = vsel %vm298, %v1404, 0.0
      %v1411 = vrot.slane %v1407, 4
      %v1412 = vrot.slane %v1408, 4
      %1415 = vst [vmem:[#allocation3 + $0x50] sm:$0xf0] %v1411
      %1416 = vst [vmem:[#allocation3 + $0x58] sm:$0xf0] %v1412
      %v1417 = vld [vmem:[#allocation2] sm:$0xff]
      %v1418 = vld [vmem:[#allocation2 + $0x8] sm:$0xf]
      %1421 = vst [vmem:[#allocation1] ss:$2 sm:$0xff] %v1417
      %s1422 = scalar_lea.vmem [#allocation1], 16
      %1423 = vst [vmem:[%s1422] ss:$2 sm:$0xff] %v1418
      %v1424 = vld.sshfl [vmem:[#allocation1] sm:$0xff pattern:$0x75316420]
      %v1425 = vld.sshfl [vmem:[#allocation1 + $0x8] sm:$0xff pattern:$0x75316420]
      %v1426 = vld.sshfl [vmem:[#allocation1 + $0x10] sm:$0xff pattern:$0x75316420]
      %1427 = vrot.lane.b32.xlu0 %v1424, 64
      %v1428 = vpop.permute.xlu0 %1427
      %1429 = vrot.lane.b32.xlu0 %v1425, 64
      %v1430 = vpop.permute.xlu0 %1429
      %1431 = vrot.lane.b32.xlu0 %v1426, 64
      %v1432 = vpop.permute.xlu0 %1431
      %v1433 = vsel %vm320, %v1428, %v1430
      %v1434 = vsel %vm320, %v1430, %v1432
      %1437 = vst [vmem:[#allocation3 + $0x60] sm:$0xf] %v1433
      %1438 = vst [vmem:[#allocation3 + $0x68] sm:$0xf] %v1434
      %v1439 = vld [vmem:[#allocation2] sm:$0xff]
      %v1440 = vld [vmem:[#allocation2 + $0x8] sm:$0xf]
      %1443 = vst [vmem:[#allocation1] ss:$2 sm:$0xff] %v1439
      %s1444 = scalar_lea.vmem [#allocation1], 16
      %1445 = vst [vmem:[%s1444] ss:$2 sm:$0xff] %v1440
      %v1446 = vld.sshfl [vmem:[#allocation1] sm:$0xff pattern:$0x75316420]
      %v1447 = vld.sshfl [vmem:[#allocation1 + $0x8] sm:$0xff pattern:$0x75316420]
      %v1448 = vld.sshfl [vmem:[#allocation1 + $0x10] sm:$0xff pattern:$0x75316420]
      %1449 = vrot.lane.b32.xlu0 %v1446, 63
      %v1450 = vpop.permute.xlu0 %1449
      %1451 = vrot.lane.b32.xlu0 %v1447, 63
      %v1452 = vpop.permute.xlu0 %1451
      %1453 = vrot.lane.b32.xlu0 %v1448, 63
      %v1454 = vpop.permute.xlu0 %1453
      %v1455 = vsel %vm693, %v1450, %v1452
      %v1456 = vsel %vm693, %v1452, %v1454
      %v1459 = vsel %vm305, %v1455, 0.0
      %v1460 = vsel %vm306, %v1456, 0.0
      %v1463 = vrot.slane %v1459, 4
      %v1464 = vrot.slane %v1460, 4
      %1467 = vst [vmem:[#allocation3 + $0x60] sm:$0xf0] %v1463
      %1468 = vst [vmem:[#allocation3 + $0x68] sm:$0xf0] %v1464
      %v1469 = vld [vmem:[#allocation2] sm:$0xff]
      %v1470 = vld [vmem:[#allocation2 + $0x8] sm:$0xf]
      %1473 = vst [vmem:[#allocation1] ss:$2 sm:$0xff] %v1469
      %s1474 = scalar_lea.vmem [#allocation1], 16
      %1475 = vst [vmem:[%s1474] ss:$2 sm:$0xff] %v1470
      %v1476 = vld.sshfl [vmem:[#allocation1] sm:$0xff pattern:$0x75316420]
      %v1477 = vld.sshfl [vmem:[#allocation1 + $0x8] sm:$0xff pattern:$0x75316420]
      %v1478 = vld.sshfl [vmem:[#allocation1 + $0x10] sm:$0xff pattern:$0x75316420]
      %1479 = vrot.lane.b32.xlu0 %v1476, 62
      %v1480 = vpop.permute.xlu0 %1479
      %1481 = vrot.lane.b32.xlu0 %v1477, 62
      %v1482 = vpop.permute.xlu0 %1481
      %1483 = vrot.lane.b32.xlu0 %v1478, 62
      %v1484 = vpop.permute.xlu0 %1483
      %v1485 = vsel %vm724, %v1480, %v1482
      %v1486 = vsel %vm724, %v1482, %v1484
      %v1489 = vsel %vm313, %v1485, 0.0
      %v1490 = vsel %vm314, %v1486, 0.0
      %1491 = vst [vmem:[#allocation3 + $0x70] sm:$0xf] %v1489
      %1492 = vst [vmem:[#allocation3 + $0x78] sm:$0xf] %v1490
      %v1493 = vld [vmem:[#allocation2] sm:$0xff]
      %v1494 = vld [vmem:[#allocation2 + $0x8] sm:$0xf]
      %1497 = vst [vmem:[#allocation1] ss:$2 sm:$0xff] %v1493
      %s1498 = scalar_lea.vmem [#allocation1], 16
      %1499 = vst [vmem:[%s1498] ss:$2 sm:$0xff] %v1494
      %v1500 = vld.sshfl [vmem:[#allocation1] sm:$0xff pattern:$0x75316420]
      %v1501 = vld.sshfl [vmem:[#allocation1 + $0x8] sm:$0xff pattern:$0x75316420]
      %v1502 = vld.sshfl [vmem:[#allocation1 + $0x10] sm:$0xff pattern:$0x75316420]
      %1503 = vrot.lane.b32.xlu0 %v1500, 50
      %v1504 = vpop.permute.xlu0 %1503
      %1505 = vrot.lane.b32.xlu0 %v1501, 50
      %v1506 = vpop.permute.xlu0 %1505
      %1507 = vrot.lane.b32.xlu0 %v1502, 50
      %v1508 = vpop.permute.xlu0 %1507
      %v1509 = vsel %vm749, %v1504, %v1506
      %v1510 = vsel %vm749, %v1506, %v1508
      %v1513 = vsel %vm289, %v1509, 0.0
      %v1514 = vsel %vm290, %v1510, 0.0
      %v1517 = vrot.slane %v1513, 4
      %v1518 = vrot.slane %v1514, 4
      %1521 = vst [vmem:[#allocation3 + $0x70] sm:$0xf0] %v1517
      %1522 = vst [vmem:[#allocation3 + $0x78] sm:$0xf0] %v1518
      %v1523 = vld [vmem:[#allocation2] sm:$0xff]
      %v1524 = vld [vmem:[#allocation2 + $0x8] sm:$0xf]
      %1527 = vst [vmem:[#allocation1] ss:$2 sm:$0xff] %v1523
      %s1528 = scalar_lea.vmem [#allocation1], 16
      %1529 = vst [vmem:[%s1528] ss:$2 sm:$0xff] %v1524
      %v1530 = vld.sshfl [vmem:[#allocation1] sm:$0xff pattern:$0x75316420]
      %v1531 = vld.sshfl [vmem:[#allocation1 + $0x8] sm:$0xff pattern:$0x75316420]
      %v1532 = vld.sshfl [vmem:[#allocation1 + $0x10] sm:$0xff pattern:$0x75316420]
      %1533 = vrot.lane.b32.xlu0 %v1530, 49
      %v1534 = vpop.permute.xlu0 %1533
      %1535 = vrot.lane.b32.xlu0 %v1531, 49
      %v1536 = vpop.permute.xlu0 %1535
      %1537 = vrot.lane.b32.xlu0 %v1532, 49
      %v1538 = vpop.permute.xlu0 %1537
      %v1539 = vsel %vm780, %v1534, %v1536
      %v1540 = vsel %vm780, %v1536, %v1538
      %v1543 = vsel %vm297, %v1539, 0.0
      %v1544 = vsel %vm298, %v1540, 0.0
      %1545 = vst [vmem:[#allocation3 + $0x80] sm:$0xf] %v1543
      %1546 = vst [vmem:[#allocation3 + $0x88] sm:$0xf] %v1544
      %v1547 = vld [vmem:[#allocation2] sm:$0xff]
      %v1548 = vld [vmem:[#allocation2 + $0x8] sm:$0xf]
      %s1551 = scalar_lea.vmem [#allocation1], 1
      %1552 = vst [vmem:[%s1551] ss:$2 sm:$0xff] %v1547
      %s1553 = scalar_lea.vmem [#allocation1], 17
      %1554 = vst [vmem:[%s1553] ss:$2 sm:$0xff] %v1548
      %v1555 = vld.sshfl [vmem:[#allocation1] sm:$0xff pattern:$0x75316420]
      %v1556 = vld.sshfl [vmem:[#allocation1 + $0x8] sm:$0xff pattern:$0x75316420]
      %v1557 = vld.sshfl [vmem:[#allocation1 + $0x10] sm:$0xff pattern:$0x75316420]
      %1558 = vrot.lane.b32.xlu0 %v1555, 48
      %v1559 = vpop.permute.xlu0 %1558
      %1560 = vrot.lane.b32.xlu0 %v1556, 48
      %v1561 = vpop.permute.xlu0 %1560
      %1562 = vrot.lane.b32.xlu0 %v1557, 48
      %v1563 = vpop.permute.xlu0 %1562
      %v1564 = vsel %vm806, %v1559, %v1561
      %v1565 = vsel %vm806, %v1561, %v1563
      %1568 = vst [vmem:[#allocation3 + $0x80] sm:$0xf0] %v1564
      %1569 = vst [vmem:[#allocation3 + $0x88] sm:$0xf0] %v1565
      %v1570 = vld [vmem:[#allocation2] sm:$0xff]
      %v1571 = vld [vmem:[#allocation2 + $0x8] sm:$0xf]
      %1574 = vst [vmem:[#allocation1] ss:$2 sm:$0xff] %v1570
      %s1575 = scalar_lea.vmem [#allocation1], 16
      %1576 = vst [vmem:[%s1575] ss:$2 sm:$0xff] %v1571
      %v1577 = vld.sshfl [vmem:[#allocation1] sm:$0xff pattern:$0x75316420]
      %v1578 = vld.sshfl [vmem:[#allocation1 + $0x8] sm:$0xff pattern:$0x75316420]
      %v1579 = vld.sshfl [vmem:[#allocation1 + $0x10] sm:$0xff pattern:$0x75316420]
      %1580 = vrot.lane.b32.xlu0 %v1577, 47
      %v1581 = vpop.permute.xlu0 %1580
      %1582 = vrot.lane.b32.xlu0 %v1578, 47
      %v1583 = vpop.permute.xlu0 %1582
      %1584 = vrot.lane.b32.xlu0 %v1579, 47
      %v1585 = vpop.permute.xlu0 %1584
      %v1586 = vsel %vm829, %v1581, %v1583
      %v1587 = vsel %vm829, %v1583, %v1585
      %v1590 = vsel %vm305, %v1586, 0.0
      %v1591 = vsel %vm306, %v1587, 0.0
      %1592 = vst [vmem:[#allocation3 + $0x90] sm:$0xf] %v1590
      %1593 = vst [vmem:[#allocation3 + $0x98] sm:$0xf] %v1591
      %v1594 = vld [vmem:[#allocation2] sm:$0xff]
      %v1595 = vld [vmem:[#allocation2 + $0x8] sm:$0xf]
      %1598 = vst [vmem:[#allocation1] ss:$2 sm:$0xff] %v1594
      %s1599 = scalar_lea.vmem [#allocation1], 16
      %1600 = vst [vmem:[%s1599] ss:$2 sm:$0xff] %v1595
      %v1601 = vld.sshfl [vmem:[#allocation1] sm:$0xff pattern:$0x75316420]
      %v1602 = vld.sshfl [vmem:[#allocation1 + $0x8] sm:$0xff pattern:$0x75316420]
      %v1603 = vld.sshfl [vmem:[#allocation1 + $0x10] sm:$0xff pattern:$0x75316420]
      %1604 = vrot.lane.b32.xlu0 %v1601, 46
      %v1605 = vpop.permute.xlu0 %1604
      %1606 = vrot.lane.b32.xlu0 %v1602, 46
      %v1607 = vpop.permute.xlu0 %1606
      %1608 = vrot.lane.b32.xlu0 %v1603, 46
      %v1609 = vpop.permute.xlu0 %1608
      %v1610 = vsel %vm854, %v1605, %v1607
      %v1611 = vsel %vm854, %v1607, %v1609
      %v1614 = vsel %vm313, %v1610, 0.0
      %v1615 = vsel %vm314, %v1611, 0.0
      %v1618 = vrot.slane %v1614, 4
      %v1619 = vrot.slane %v1615, 4
      %1622 = vst [vmem:[#allocation3 + $0x90] sm:$0xf0] %v1618
      %1623 = vst [vmem:[#allocation3 + $0x98] sm:$0xf0] %v1619
      %v1624 = vld [vmem:[#allocation2] sm:$0xff]
      %v1625 = vld [vmem:[#allocation2 + $0x8] sm:$0xf]
      %1628 = vst [vmem:[#allocation1] ss:$2 sm:$0xff] %v1624
      %s1629 = scalar_lea.vmem [#allocation1], 16
      %1630 = vst [vmem:[%s1629] ss:$2 sm:$0xff] %v1625
      %v1631 = vld.sshfl [vmem:[#allocation1] sm:$0xff pattern:$0x75316420]
      %v1632 = vld.sshfl [vmem:[#allocation1 + $0x8] sm:$0xff pattern:$0x75316420]
      %v1633 = vld.sshfl [vmem:[#allocation1 + $0x10] sm:$0xff pattern:$0x75316420]
      %1634 = vrot.lane.b32.xlu0 %v1631, 34
      %v1635 = vpop.permute.xlu0 %1634
      %1636 = vrot.lane.b32.xlu0 %v1632, 34
      %v1637 = vpop.permute.xlu0 %1636
      %1638 = vrot.lane.b32.xlu0 %v1633, 34
      %v1639 = vpop.permute.xlu0 %1638
      %v1640 = vsel %vm885, %v1635, %v1637
      %v1641 = vsel %vm885, %v1637, %v1639
      %v1644 = vsel %vm289, %v1640, 0.0
      %v1645 = vsel %vm290, %v1641, 0.0
      %1646 = vst [vmem:[#allocation3 + $0xa0] sm:$0xf] %v1644
      %1647 = vst [vmem:[#allocation3 + $0xa8] sm:$0xf] %v1645
      %v1648 = vld [vmem:[#allocation2] sm:$0xff]
      %v1649 = vld [vmem:[#allocation2 + $0x8] sm:$0xf]
      %1652 = vst [vmem:[#allocation1] ss:$2 sm:$0xff] %v1648
      %s1653 = scalar_lea.vmem [#allocation1], 16
      %1654 = vst [vmem:[%s1653] ss:$2 sm:$0xff] %v1649
      %v1655 = vld.sshfl [vmem:[#allocation1] sm:$0xff pattern:$0x75316420]
      %v1656 = vld.sshfl [vmem:[#allocation1 + $0x8] sm:$0xff pattern:$0x75316420]
      %v1657 = vld.sshfl [vmem:[#allocation1 + $0x10] sm:$0xff pattern:$0x75316420]
      %1658 = vrot.lane.b32.xlu0 %v1655, 33
      %v1659 = vpop.permute.xlu0 %1658
      %1660 = vrot.lane.b32.xlu0 %v1656, 33
      %v1661 = vpop.permute.xlu0 %1660
      %1662 = vrot.lane.b32.xlu0 %v1657, 33
      %v1663 = vpop.permute.xlu0 %1662
      %v1664 = vsel %vm910, %v1659, %v1661
      %v1665 = vsel %vm910, %v1661, %v1663
      %v1668 = vsel %vm297, %v1664, 0.0
      %v1669 = vsel %vm298, %v1665, 0.0
      %v1672 = vrot.slane %v1668, 4
      %v1673 = vrot.slane %v1669, 4
      %1676 = vst [vmem:[#allocation3 + $0xa0] sm:$0xf0] %v1672
      %1677 = vst [vmem:[#allocation3 + $0xa8] sm:$0xf0] %v1673
      %v1678 = vld [vmem:[#allocation2] sm:$0xff]
      %v1679 = vld [vmem:[#allocation2 + $0x8] sm:$0xf]
      %1682 = vst [vmem:[#allocation1] ss:$2 sm:$0xff] %v1678
      %s1683 = scalar_lea.vmem [#allocation1], 16
      %1684 = vst [vmem:[%s1683] ss:$2 sm:$0xff] %v1679
      %v1685 = vld.sshfl [vmem:[#allocation1] sm:$0xff pattern:$0x75316420]
      %v1686 = vld.sshfl [vmem:[#allocation1 + $0x8] sm:$0xff pattern:$0x75316420]
      %v1687 = vld.sshfl [vmem:[#allocation1 + $0x10] sm:$0xff pattern:$0x75316420]
      %1688 = vrot.lane.b32.xlu0 %v1685, 32
      %v1689 = vpop.permute.xlu0 %1688
      %1690 = vrot.lane.b32.xlu0 %v1686, 32
      %v1691 = vpop.permute.xlu0 %1690
      %1692 = vrot.lane.b32.xlu0 %v1687, 32
      %v1693 = vpop.permute.xlu0 %1692
      %v1694 = vsel %vm941, %v1689, %v1691
      %v1695 = vsel %vm941, %v1691, %v1693
      %1698 = vst [vmem:[#allocation3 + $0xb0] sm:$0xf] %v1694
      %1699 = vst [vmem:[#allocation3 + $0xb8] sm:$0xf] %v1695
      %v1700 = vld [vmem:[#allocation2] sm:$0xff]
      %v1701 = vld [vmem:[#allocation2 + $0x8] sm:$0xf]
      %1704 = vst [vmem:[#allocation1] ss:$2 sm:$0xff] %v1700
      %s1705 = scalar_lea.vmem [#allocation1], 16
      %1706 = vst [vmem:[%s1705] ss:$2 sm:$0xff] %v1701
      %v1707 = vld.sshfl [vmem:[#allocation1] sm:$0xff pattern:$0x75316420]
      %v1708 = vld.sshfl [vmem:[#allocation1 + $0x8] sm:$0xff pattern:$0x75316420]
      %v1709 = vld.sshfl [vmem:[#allocation1 + $0x10] sm:$0xff pattern:$0x75316420]
      %1710 = vrot.lane.b32.xlu0 %v1707, 31
      %v1711 = vpop.permute.xlu0 %1710
      %1712 = vrot.lane.b32.xlu0 %v1708, 31
      %v1713 = vpop.permute.xlu0 %1712
      %1714 = vrot.lane.b32.xlu0 %v1709, 31
      %v1715 = vpop.permute.xlu0 %1714
      %v1716 = vsel %vm964, %v1711, %v1713
      %v1717 = vsel %vm964, %v1713, %v1715
      %v1720 = vsel %vm305, %v1716, 0.0
      %v1721 = vsel %vm306, %v1717, 0.0
      %v1724 = vrot.slane %v1720, 4
      %v1725 = vrot.slane %v1721, 4
      %1728 = vst [vmem:[#allocation3 + $0xb0] sm:$0xf0] %v1724
      %1729 = vst [vmem:[#allocation3 + $0xb8] sm:$0xf0] %v1725
      %v1730 = vld [vmem:[#allocation2] sm:$0xff]
      %v1731 = vld [vmem:[#allocation2 + $0x8] sm:$0xf]
      %1734 = vst [vmem:[#allocation1] ss:$2 sm:$0xff] %v1730
      %s1735 = scalar_lea.vmem [#allocation1], 16
      %1736 = vst [vmem:[%s1735] ss:$2 sm:$0xff] %v1731
      %v1737 = vld.sshfl [vmem:[#allocation1] sm:$0xff pattern:$0x75316420]
      %v1738 = vld.sshfl [vmem:[#allocation1 + $0x8] sm:$0xff pattern:$0x75316420]
      %v1739 = vld.sshfl [vmem:[#allocation1 + $0x10] sm:$0xff pattern:$0x75316420]
      %1740 = vrot.lane.b32.xlu0 %v1737, 30
      %v1741 = vpop.permute.xlu0 %1740
      %1742 = vrot.lane.b32.xlu0 %v1738, 30
      %v1743 = vpop.permute.xlu0 %1742
      %1744 = vrot.lane.b32.xlu0 %v1739, 30
      %v1745 = vpop.permute.xlu0 %1744
      %v1746 = vsel %vm995, %v1741, %v1743
      %v1747 = vsel %vm995, %v1743, %v1745
      %v1750 = vsel %vm313, %v1746, 0.0
      %v1751 = vsel %vm314, %v1747, 0.0
      %1752 = vst [vmem:[#allocation3 + $0xc0] sm:$0xf] %v1750
      %1753 = vst [vmem:[#allocation3 + $0xc8] sm:$0xf] %v1751
      %v1754 = vld [vmem:[%s3] sm:$0xf]
      %v1755 = vld [vmem:[#allocation3] sm:$0xff]
      %v1756 = vld [vmem:[#allocation3 + $0x8] sm:$0xff]
      %v1757 = vld [vmem:[#allocation3 + $0x10] sm:$0xff]
      %v1758 = vld [vmem:[#allocation3 + $0x18] sm:$0xff]
      %v1759 = vld [vmem:[#allocation3 + $0x20] sm:$0xff]
      %v1760 = vld [vmem:[#allocation3 + $0x28] sm:$0xff]
      %v1761 = vld [vmem:[#allocation3 + $0x30] sm:$0xff]
      %v1762 = vld [vmem:[#allocation3 + $0x38] sm:$0xff]
      %v1763 = vld [vmem:[#allocation3 + $0x40] sm:$0xff]
      %v1764 = vld [vmem:[#allocation3 + $0x48] sm:$0xff]
      %v1765 = vld [vmem:[#allocation3 + $0x50] sm:$0xff]
      %v1766 = vld [vmem:[#allocation3 + $0x58] sm:$0xff]
      %v1767 = vld [vmem:[#allocation3 + $0x60] sm:$0xff]
      %v1768 = vld [vmem:[#allocation3 + $0x68] sm:$0xff]
      %v1769 = vld [vmem:[#allocation3 + $0x70] sm:$0xff]
      %v1770 = vld [vmem:[#allocation3 + $0x78] sm:$0xff]
      %v1771 = vld [vmem:[#allocation3 + $0x80] sm:$0xff]
      %v1772 = vld [vmem:[#allocation3 + $0x88] sm:$0xff]
      %v1773 = vld [vmem:[#allocation3 + $0x90] sm:$0xff]
      %v1774 = vld [vmem:[#allocation3 + $0x98] sm:$0xff]
      %v1775 = vld [vmem:[#allocation3 + $0xa0] sm:$0xff]
      %v1776 = vld [vmem:[#allocation3 + $0xa8] sm:$0xff]
      %v1777 = vld [vmem:[#allocation3 + $0xb0] sm:$0xff]
      %v1778 = vld [vmem:[#allocation3 + $0xb8] sm:$0xff]
      %v1779 = vld [vmem:[#allocation3 + $0xc0] sm:$0xf]
      %v1780 = vld [vmem:[#allocation3 + $0xc8] sm:$0xf]
      %v1781 = vld [vmem:[%s4] sm:$0xf]
      %1783 = vset.pattern.permute.xlu0 0
      %1784 = vperm.xlu0 %1783, %v1781
      %v1785 = vpop.permute.xlu0 %1784
      %v1788 = vsel %vm1037, %v1754, 0
      %v1791 = vsel %vm1041, %v1779, 0
      %v1794 = vsel %vm1041, %v1780, 0
      %1796 = vmatpush.msra.mxu0 0.0
      %1797 = vmatpush.msra.mxu0 0.0
      %1798 = vmatpush.msra.mxu0 0.0
      %1799 = vmatpush.msra.mxu0 %v1791
      %1800 = vmatpush.msra.mxu0 %v1777
      %1801 = vmatpush.msra.mxu0 %v1775
      %1802 = vmatpush.msra.mxu0 %v1773
      %1803 = vmatpush.msra.mxu0 %v1771
      %1804 = vmatpush.msra.mxu0 %v1769
      %1805 = vmatpush.msra.mxu0 %v1767
      %1806 = vmatpush.msra.mxu0 %v1765
      %1807 = vmatpush.msra.mxu0 %v1763
      %1808 = vmatpush.msra.mxu0 %v1761
      %1809 = vmatpush.msra.mxu0 %v1759
      %1810 = vmatpush.msra.mxu0 %v1757
      %1811 = vmatpush.msra.mxu0 %v1755
      %1812 = vmatmul.f32.gmra.mxu0 %v1788
      %v1813 = vpop.f32.mrf.mxu0
      %v1814 = vadd.f32 %v1785, %v1813
      %1815 = vdwg.mxu0
      %1816 = vmatpush.msra.mxu0 0.0
      %1817 = vmatpush.msra.mxu0 0.0
      %1818 = vmatpush.msra.mxu0 0.0
      %1819 = vmatpush.msra.mxu0 %v1794
      %1820 = vmatpush.msra.mxu0 %v1778
      %1821 = vmatpush.msra.mxu0 %v1776
      %1822 = vmatpush.msra.mxu0 %v1774
      %1823 = vmatpush.msra.mxu0 %v1772
      %1824 = vmatpush.msra.mxu0 %v1770
      %1825 = vmatpush.msra.mxu0 %v1768
      %1826 = vmatpush.msra.mxu0 %v1766
      %1827 = vmatpush.msra.mxu0 %v1764
      %1828 = vmatpush.msra.mxu0 %v1762
      %1829 = vmatpush.msra.mxu0 %v1760
      %1830 = vmatpush.msra.mxu0 %v1758
      %1831 = vmatpush.msra.mxu0 %v1756
      %1832 = vmatmul.f32.gmra.mxu0 %v1788
      %v1833 = vpop.f32.mrf.mxu0
      %v1834 = vadd.f32 %v1785, %v1833
      %1835 = vdwg.mxu0
      %v1838 = vrot.slane %v1834, 4
      %v1839 = vsel %vm1041, %v1814, %v1838
      %v1841 = vadd.f32 %v315, %v1839
      %v1842 = vmax.f32 %v1841, 0.0
      %1844 = vrot.lane.b32.xlu0 %v1842, 64
      %v1845 = vpop.permute.xlu0 %1844
      %v1846 = vrot.slane %v1845, 4
      %v1847 = vsel %vm320, %v1846, %v1845
      %1850 = vst.msk [vmem:[#allocation2] sm:$0xff] %vm325, %v1847
      %1851 = vst.msk [vmem:[#allocation2 + $0x8] sm:$0xf] %vm252, %v1846
      %v1852 = vld [vmem:[#allocation2] sm:$0xff]
      %v1853 = vld [vmem:[#allocation2 + $0x8] sm:$0xf]
      %1856 = vst [vmem:[#allocation1] ss:$2 sm:$0xff] %v1852
      %s1857 = scalar_lea.vmem [#allocation1], 16
      %1858 = vst [vmem:[%s1857] ss:$2 sm:$0xff] %v1853
      %v1859 = vld.sshfl [vmem:[#allocation1] sm:$0xff pattern:$0x75316420]
      %v1860 = vld.sshfl [vmem:[#allocation1 + $0x8] sm:$0xff pattern:$0x75316420]
      %v1861 = vld.sshfl [vmem:[#allocation1 + $0x10] sm:$0xff pattern:$0x75316420]
      %1862 = vrot.lane.b32.xlu0 %v1859, 98
      %v1863 = vpop.permute.xlu0 %1862
      %1864 = vrot.lane.b32.xlu0 %v1860, 98
      %v1865 = vpop.permute.xlu0 %1864
      %1866 = vrot.lane.b32.xlu0 %v1861, 98
      %v1867 = vpop.permute.xlu0 %1866
      %v1868 = vsel %vm344, %v1863, %v1865
      %v1869 = vsel %vm344, %v1865, %v1867
      %v1872 = vsel %vm289, %v1868, 0.0
      %v1873 = vsel %vm290, %v1869, 0.0
      %1874 = vst [vmem:[#allocation3] sm:$0xf] %v1872
      %1875 = vst [vmem:[#allocation3 + $0x8] sm:$0xf] %v1873
      %v1876 = vld [vmem:[#allocation2] sm:$0xff]
      %v1877 = vld [vmem:[#allocation2 + $0x8] sm:$0xf]
      %1880 = vst [vmem:[#allocation1] ss:$2 sm:$0xff] %v1876
      %s1881 = scalar_lea.vmem [#allocation1], 16
      %1882 = vst [vmem:[%s1881] ss:$2 sm:$0xff] %v1877
      %v1883 = vld.sshfl [vmem:[#allocation1] sm:$0xff pattern:$0x75316420]
      %v1884 = vld.sshfl [vmem:[#allocation1 + $0x8] sm:$0xff pattern:$0x75316420]
      %v1885 = vld.sshfl [vmem:[#allocation1 + $0x10] sm:$0xff pattern:$0x75316420]
      %1886 = vrot.lane.b32.xlu0 %v1883, 97
      %v1887 = vpop.permute.xlu0 %1886
      %1888 = vrot.lane.b32.xlu0 %v1884, 97
      %v1889 = vpop.permute.xlu0 %1888
      %1890 = vrot.lane.b32.xlu0 %v1885, 97
      %v1891 = vpop.permute.xlu0 %1890
      %v1892 = vsel %vm369, %v1887, %v1889
      %v1893 = vsel %vm369, %v1889, %v1891
      %v1896 = vsel %vm297, %v1892, 0.0
      %v1897 = vsel %vm298, %v1893, 0.0
      %v1900 = vrot.slane %v1896, 4
      %v1901 = vrot.slane %v1897, 4
      %1904 = vst [vmem:[#allocation3] sm:$0xf0] %v1900
      %1905 = vst [vmem:[#allocation3 + $0x8] sm:$0xf0] %v1901
      %v1906 = vld [vmem:[#allocation2] sm:$0xff]
      %v1907 = vld [vmem:[#allocation2 + $0x8] sm:$0xf]
      %1910 = vst [vmem:[#allocation1] ss:$2 sm:$0xff] %v1906
      %s1911 = scalar_lea.vmem [#allocation1], 16
      %1912 = vst [vmem:[%s1911] ss:$2 sm:$0xff] %v1907
      %v1913 = vld.sshfl [vmem:[#allocation1] sm:$0xff pattern:$0x75316420]
      %v1914 = vld.sshfl [vmem:[#allocation1 + $0x8] sm:$0xff pattern:$0x75316420]
      %v1915 = vld.sshfl [vmem:[#allocation1 + $0x10] sm:$0xff pattern:$0x75316420]
      %1916 = vrot.lane.b32.xlu0 %v1913, 96
      %v1917 = vpop.permute.xlu0 %1916
      %1918 = vrot.lane.b32.xlu0 %v1914, 96
      %v1919 = vpop.permute.xlu0 %1918
      %1920 = vrot.lane.b32.xlu0 %v1915, 96
      %v1921 = vpop.permute.xlu0 %1920
      %v1922 = vsel %vm400, %v1917, %v1919
      %v1923 = vsel %vm400, %v1919, %v1921
      %1926 = vst [vmem:[#allocation3 + $0x10] sm:$0xf] %v1922
      %1927 = vst [vmem:[#allocation3 + $0x18] sm:$0xf] %v1923
      %v1928 = vld [vmem:[#allocation2] sm:$0xff]
      %v1929 = vld [vmem:[#allocation2 + $0x8] sm:$0xf]
      %1932 = vst [vmem:[#allocation1] ss:$2 sm:$0xff] %v1928
      %s1933 = scalar_lea.vmem [#allocation1], 16
      %1934 = vst [vmem:[%s1933] ss:$2 sm:$0xff] %v1929
      %v1935 = vld.sshfl [vmem:[#allocation1] sm:$0xff pattern:$0x75316420]
      %v1936 = vld.sshfl [vmem:[#allocation1 + $0x8] sm:$0xff pattern:$0x75316420]
      %v1937 = vld.sshfl [vmem:[#allocation1 + $0x10] sm:$0xff pattern:$0x75316420]
      %1938 = vrot.lane.b32.xlu0 %v1935, 95
      %v1939 = vpop.permute.xlu0 %1938
      %1940 = vrot.lane.b32.xlu0 %v1936, 95
      %v1941 = vpop.permute.xlu0 %1940
      %1942 = vrot.lane.b32.xlu0 %v1937, 95
      %v1943 = vpop.permute.xlu0 %1942
      %v1944 = vsel %vm423, %v1939, %v1941
      %v1945 = vsel %vm423, %v1941, %v1943
      %v1948 = vsel %vm305, %v1944, 0.0
      %v1949 = vsel %vm306, %v1945, 0.0
      %v1952 = vrot.slane %v1948, 4
      %v1953 = vrot.slane %v1949, 4
      %1956 = vst [vmem:[#allocation3 + $0x10] sm:$0xf0] %v1952
      %1957 = vst [vmem:[#allocation3 + $0x18] sm:$0xf0] %v1953
      %v1958 = vld [vmem:[#allocation2] sm:$0xff]
      %v1959 = vld [vmem:[#allocation2 + $0x8] sm:$0xf]
      %1962 = vst [vmem:[#allocation1] ss:$2 sm:$0xff] %v1958
      %s1963 = scalar_lea.vmem [#allocation1], 16
      %1964 = vst [vmem:[%s1963] ss:$2 sm:$0xff] %v1959
      %v1965 = vld.sshfl [vmem:[#allocation1] sm:$0xff pattern:$0x75316420]
      %v1966 = vld.sshfl [vmem:[#allocation1 + $0x8] sm:$0xff pattern:$0x75316420]
      %v1967 = vld.sshfl [vmem:[#allocation1 + $0x10] sm:$0xff pattern:$0x75316420]
      %1968 = vrot.lane.b32.xlu0 %v1965, 94
      %v1969 = vpop.permute.xlu0 %1968
      %1970 = vrot.lane.b32.xlu0 %v1966, 94
      %v1971 = vpop.permute.xlu0 %1970
      %1972 = vrot.lane.b32.xlu0 %v1967, 94
      %v1973 = vpop.permute.xlu0 %1972
      %v1974 = vsel %vm454, %v1969, %v1971
      %v1975 = vsel %vm454, %v1971, %v1973
      %v1978 = vsel %vm313, %v1974, 0.0
      %v1979 = vsel %vm314, %v1975, 0.0
      %1980 = vst [vmem:[#allocation3 + $0x20] sm:$0xf] %v1978
      %1981 = vst [vmem:[#allocation3 + $0x28] sm:$0xf] %v1979
      %v1982 = vld [vmem:[#allocation2] sm:$0xff]
      %v1983 = vld [vmem:[#allocation2 + $0x8] sm:$0xf]
      %1986 = vst [vmem:[#allocation1] ss:$2 sm:$0xff] %v1982
      %s1987 = scalar_lea.vmem [#allocation1], 16
      %1988 = vst [vmem:[%s1987] ss:$2 sm:$0xff] %v1983
      %v1989 = vld.sshfl [vmem:[#allocation1] sm:$0xff pattern:$0x75316420]
      %v1990 = vld.sshfl [vmem:[#allocation1 + $0x8] sm:$0xff pattern:$0x75316420]
      %v1991 = vld.sshfl [vmem:[#allocation1 + $0x10] sm:$0xff pattern:$0x75316420]
      %1992 = vrot.lane.b32.xlu0 %v1989, 82
      %v1993 = vpop.permute.xlu0 %1992
      %1994 = vrot.lane.b32.xlu0 %v1990, 82
      %v1995 = vpop.permute.xlu0 %1994
      %1996 = vrot.lane.b32.xlu0 %v1991, 82
      %v1997 = vpop.permute.xlu0 %1996
      %v1998 = vsel %vm479, %v1993, %v1995
      %v1999 = vsel %vm479, %v1995, %v1997
      %v2002 = vsel %vm289, %v1998, 0.0
      %v2003 = vsel %vm290, %v1999, 0.0
      %v2006 = vrot.slane %v2002, 4
      %v2007 = vrot.slane %v2003, 4
      %2010 = vst [vmem:[#allocation3 + $0x20] sm:$0xf0] %v2006
      %2011 = vst [vmem:[#allocation3 + $0x28] sm:$0xf0] %v2007
      %v2012 = vld [vmem:[#allocation2] sm:$0xff]
      %v2013 = vld [vmem:[#allocation2 + $0x8] sm:$0xf]
      %2016 = vst [vmem:[#allocation1] ss:$2 sm:$0xff] %v2012
      %s2017 = scalar_lea.vmem [#allocation1], 16
      %2018 = vst [vmem:[%s2017] ss:$2 sm:$0xff] %v2013
      %v2019 = vld.sshfl [vmem:[#allocation1] sm:$0xff pattern:$0x75316420]
      %v2020 = vld.sshfl [vmem:[#allocation1 + $0x8] sm:$0xff pattern:$0x75316420]
      %v2021 = vld.sshfl [vmem:[#allocation1 + $0x10] sm:$0xff pattern:$0x75316420]
      %2022 = vrot.lane.b32.xlu0 %v2019, 81
      %v2023 = vpop.permute.xlu0 %2022
      %2024 = vrot.lane.b32.xlu0 %v2020, 81
      %v2025 = vpop.permute.xlu0 %2024
      %2026 = vrot.lane.b32.xlu0 %v2021, 81
      %v2027 = vpop.permute.xlu0 %2026
      %v2028 = vsel %vm510, %v2023, %v2025
      %v2029 = vsel %vm510, %v2025, %v2027
      %v2032 = vsel %vm297, %v2028, 0.0
      %v2033 = vsel %vm298, %v2029, 0.0
      %2034 = vst [vmem:[#allocation3 + $0x30] sm:$0xf] %v2032
      %2035 = vst [vmem:[#allocation3 + $0x38] sm:$0xf] %v2033
      %v2036 = vld [vmem:[#allocation2] sm:$0xff]
      %v2037 = vld [vmem:[#allocation2 + $0x8] sm:$0xf]
      %s2040 = scalar_lea.vmem [#allocation1], 1
      %2041 = vst [vmem:[%s2040] ss:$2 sm:$0xff] %v2036
      %s2042 = scalar_lea.vmem [#allocation1], 17
      %2043 = vst [vmem:[%s2042] ss:$2 sm:$0xff] %v2037
      %v2044 = vld.sshfl [vmem:[#allocation1] sm:$0xff pattern:$0x75316420]
      %v2045 = vld.sshfl [vmem:[#allocation1 + $0x8] sm:$0xff pattern:$0x75316420]
      %v2046 = vld.sshfl [vmem:[#allocation1 + $0x10] sm:$0xff pattern:$0x75316420]
      %2047 = vrot.lane.b32.xlu0 %v2044, 80
      %v2048 = vpop.permute.xlu0 %2047
      %2049 = vrot.lane.b32.xlu0 %v2045, 80
      %v2050 = vpop.permute.xlu0 %2049
      %2051 = vrot.lane.b32.xlu0 %v2046, 80
      %v2052 = vpop.permute.xlu0 %2051
      %v2053 = vsel %vm536, %v2048, %v2050
      %v2054 = vsel %vm536, %v2050, %v2052
      %2057 = vst [vmem:[#allocation3 + $0x30] sm:$0xf0] %v2053
      %2058 = vst [vmem:[#allocation3 + $0x38] sm:$0xf0] %v2054
      %v2059 = vld [vmem:[#allocation2] sm:$0xff]
      %v2060 = vld [vmem:[#allocation2 + $0x8] sm:$0xf]
      %2063 = vst [vmem:[#allocation1] ss:$2 sm:$0xff] %v2059
      %s2064 = scalar_lea.vmem [#allocation1], 16
      %2065 = vst [vmem:[%s2064] ss:$2 sm:$0xff] %v2060
      %v2066 = vld.sshfl [vmem:[#allocation1] sm:$0xff pattern:$0x75316420]
      %v2067 = vld.sshfl [vmem:[#allocation1 + $0x8] sm:$0xff pattern:$0x75316420]
      %v2068 = vld.sshfl [vmem:[#allocation1 + $0x10] sm:$0xff pattern:$0x75316420]
      %2069 = vrot.lane.b32.xlu0 %v2066, 79
      %v2070 = vpop.permute.xlu0 %2069
      %2071 = vrot.lane.b32.xlu0 %v2067, 79
      %v2072 = vpop.permute.xlu0 %2071
      %2073 = vrot.lane.b32.xlu0 %v2068, 79
      %v2074 = vpop.permute.xlu0 %2073
      %v2075 = vsel %vm559, %v2070, %v2072
      %v2076 = vsel %vm559, %v2072, %v2074
      %v2079 = vsel %vm305, %v2075, 0.0
      %v2080 = vsel %vm306, %v2076, 0.0
      %2081 = vst [vmem:[#allocation3 + $0x40] sm:$0xf] %v2079
      %2082 = vst [vmem:[#allocation3 + $0x48] sm:$0xf] %v2080
      %v2083 = vld [vmem:[#allocation2] sm:$0xff]
      %v2084 = vld [vmem:[#allocation2 + $0x8] sm:$0xf]
      %2087 = vst [vmem:[#allocation1] ss:$2 sm:$0xff] %v2083
      %s2088 = scalar_lea.vmem [#allocation1], 16
      %2089 = vst [vmem:[%s2088] ss:$2 sm:$0xff] %v2084
      %v2090 = vld.sshfl [vmem:[#allocation1] sm:$0xff pattern:$0x75316420]
      %v2091 = vld.sshfl [vmem:[#allocation1 + $0x8] sm:$0xff pattern:$0x75316420]
      %v2092 = vld.sshfl [vmem:[#allocation1 + $0x10] sm:$0xff pattern:$0x75316420]
      %2093 = vrot.lane.b32.xlu0 %v2090, 78
      %v2094 = vpop.permute.xlu0 %2093
      %2095 = vrot.lane.b32.xlu0 %v2091, 78
      %v2096 = vpop.permute.xlu0 %2095
      %2097 = vrot.lane.b32.xlu0 %v2092, 78
      %v2098 = vpop.permute.xlu0 %2097
      %v2099 = vsel %vm584, %v2094, %v2096
      %v2100 = vsel %vm584, %v2096, %v2098
      %v2103 = vsel %vm313, %v2099, 0.0
      %v2104 = vsel %vm314, %v2100, 0.0
      %v2107 = vrot.slane %v2103, 4
      %v2108 = vrot.slane %v2104, 4
      %2111 = vst [vmem:[#allocation3 + $0x40] sm:$0xf0] %v2107
      %2112 = vst [vmem:[#allocation3 + $0x48] sm:$0xf0] %v2108
      %v2113 = vld [vmem:[#allocation2] sm:$0xff]
      %v2114 = vld [vmem:[#allocation2 + $0x8] sm:$0xf]
      %2117 = vst [vmem:[#allocation1] ss:$2 sm:$0xff] %v2113
      %s2118 = scalar_lea.vmem [#allocation1], 16
      %2119 = vst [vmem:[%s2118] ss:$2 sm:$0xff] %v2114
      %v2120 = vld.sshfl [vmem:[#allocation1] sm:$0xff pattern:$0x75316420]
      %v2121 = vld.sshfl [vmem:[#allocation1 + $0x8] sm:$0xff pattern:$0x75316420]
      %v2122 = vld.sshfl [vmem:[#allocation1 + $0x10] sm:$0xff pattern:$0x75316420]
      %2123 = vrot.lane.b32.xlu0 %v2120, 66
      %v2124 = vpop.permute.xlu0 %2123
      %2125 = vrot.lane.b32.xlu0 %v2121, 66
      %v2126 = vpop.permute.xlu0 %2125
      %2127 = vrot.lane.b32.xlu0 %v2122, 66
      %v2128 = vpop.permute.xlu0 %2127
      %v2129 = vsel %vm615, %v2124, %v2126
      %v2130 = vsel %vm615, %v2126, %v2128
      %v2133 = vsel %vm289, %v2129, 0.0
      %v2134 = vsel %vm290, %v2130, 0.0
      %2135 = vst [vmem:[#allocation3 + $0x50] sm:$0xf] %v2133
      %2136 = vst [vmem:[#allocation3 + $0x58] sm:$0xf] %v2134
      %v2137 = vld [vmem:[#allocation2] sm:$0xff]
      %v2138 = vld [vmem:[#allocation2 + $0x8] sm:$0xf]
      %2141 = vst [vmem:[#allocation1] ss:$2 sm:$0xff] %v2137
      %s2142 = scalar_lea.vmem [#allocation1], 16
      %2143 = vst [vmem:[%s2142] ss:$2 sm:$0xff] %v2138
      %v2144 = vld.sshfl [vmem:[#allocation1] sm:$0xff pattern:$0x75316420]
      %v2145 = vld.sshfl [vmem:[#allocation1 + $0x8] sm:$0xff pattern:$0x75316420]
      %v2146 = vld.sshfl [vmem:[#allocation1 + $0x10] sm:$0xff pattern:$0x75316420]
      %2147 = vrot.lane.b32.xlu0 %v2144, 65
      %v2148 = vpop.permute.xlu0 %2147
      %2149 = vrot.lane.b32.xlu0 %v2145, 65
      %v2150 = vpop.permute.xlu0 %2149
      %2151 = vrot.lane.b32.xlu0 %v2146, 65
      %v2152 = vpop.permute.xlu0 %2151
      %v2153 = vsel %vm640, %v2148, %v2150
      %v2154 = vsel %vm640, %v2150, %v2152
      %v2157 = vsel %vm297, %v2153, 0.0
      %v2158 = vsel %vm298, %v2154, 0.0
      %v2161 = vrot.slane %v2157, 4
      %v2162 = vrot.slane %v2158, 4
      %2165 = vst [vmem:[#allocation3 + $0x50] sm:$0xf0] %v2161
      %2166 = vst [vmem:[#allocation3 + $0x58] sm:$0xf0] %v2162
      %v2167 = vld [vmem:[#allocation2] sm:$0xff]
      %v2168 = vld [vmem:[#allocation2 + $0x8] sm:$0xf]
      %2171 = vst [vmem:[#allocation1] ss:$2 sm:$0xff] %v2167
      %s2172 = scalar_lea.vmem [#allocation1], 16
      %2173 = vst [vmem:[%s2172] ss:$2 sm:$0xff] %v2168
      %v2174 = vld.sshfl [vmem:[#allocation1] sm:$0xff pattern:$0x75316420]
      %v2175 = vld.sshfl [vmem:[#allocation1 + $0x8] sm:$0xff pattern:$0x75316420]
      %v2176 = vld.sshfl [vmem:[#allocation1 + $0x10] sm:$0xff pattern:$0x75316420]
      %2177 = vrot.lane.b32.xlu0 %v2174, 64
      %v2178 = vpop.permute.xlu0 %2177
      %2179 = vrot.lane.b32.xlu0 %v2175, 64
      %v2180 = vpop.permute.xlu0 %2179
      %2181 = vrot.lane.b32.xlu0 %v2176, 64
      %v2182 = vpop.permute.xlu0 %2181
      %v2183 = vsel %vm320, %v2178, %v2180
      %v2184 = vsel %vm320, %v2180, %v2182
      %2187 = vst [vmem:[#allocation3 + $0x60] sm:$0xf] %v2183
      %2188 = vst [vmem:[#allocation3 + $0x68] sm:$0xf] %v2184
      %v2189 = vld [vmem:[#allocation2] sm:$0xff]
      %v2190 = vld [vmem:[#allocation2 + $0x8] sm:$0xf]
      %2193 = vst [vmem:[#allocation1] ss:$2 sm:$0xff] %v2189
      %s2194 = scalar_lea.vmem [#allocation1], 16
      %2195 = vst [vmem:[%s2194] ss:$2 sm:$0xff] %v2190
      %v2196 = vld.sshfl [vmem:[#allocation1] sm:$0xff pattern:$0x75316420]
      %v2197 = vld.sshfl [vmem:[#allocation1 + $0x8] sm:$0xff pattern:$0x75316420]
      %v2198 = vld.sshfl [vmem:[#allocation1 + $0x10] sm:$0xff pattern:$0x75316420]
      %2199 = vrot.lane.b32.xlu0 %v2196, 63
      %v2200 = vpop.permute.xlu0 %2199
      %2201 = vrot.lane.b32.xlu0 %v2197, 63
      %v2202 = vpop.permute.xlu0 %2201
      %2203 = vrot.lane.b32.xlu0 %v2198, 63
      %v2204 = vpop.permute.xlu0 %2203
      %v2205 = vsel %vm693, %v2200, %v2202
      %v2206 = vsel %vm693, %v2202, %v2204
      %v2209 = vsel %vm305, %v2205, 0.0
      %v2210 = vsel %vm306, %v2206, 0.0
      %v2213 = vrot.slane %v2209, 4
      %v2214 = vrot.slane %v2210, 4
      %2217 = vst [vmem:[#allocation3 + $0x60] sm:$0xf0] %v2213
      %2218 = vst [vmem:[#allocation3 + $0x68] sm:$0xf0] %v2214
      %v2219 = vld [vmem:[#allocation2] sm:$0xff]
      %v2220 = vld [vmem:[#allocation2 + $0x8] sm:$0xf]
      %2223 = vst [vmem:[#allocation1] ss:$2 sm:$0xff] %v2219
      %s2224 = scalar_lea.vmem [#allocation1], 16
      %2225 = vst [vmem:[%s2224] ss:$2 sm:$0xff] %v2220
      %v2226 = vld.sshfl [vmem:[#allocation1] sm:$0xff pattern:$0x75316420]
      %v2227 = vld.sshfl [vmem:[#allocation1 + $0x8] sm:$0xff pattern:$0x75316420]
      %v2228 = vld.sshfl [vmem:[#allocation1 + $0x10] sm:$0xff pattern:$0x75316420]
      %2229 = vrot.lane.b32.xlu0 %v2226, 62
      %v2230 = vpop.permute.xlu0 %2229
      %2231 = vrot.lane.b32.xlu0 %v2227, 62
      %v2232 = vpop.permute.xlu0 %2231
      %2233 = vrot.lane.b32.xlu0 %v2228, 62
      %v2234 = vpop.permute.xlu0 %2233
      %v2235 = vsel %vm724, %v2230, %v2232
      %v2236 = vsel %vm724, %v2232, %v2234
      %v2239 = vsel %vm313, %v2235, 0.0
      %v2240 = vsel %vm314, %v2236, 0.0
      %2241 = vst [vmem:[#allocation3 + $0x70] sm:$0xf] %v2239
      %2242 = vst [vmem:[#allocation3 + $0x78] sm:$0xf] %v2240
      %v2243 = vld [vmem:[#allocation2] sm:$0xff]
      %v2244 = vld [vmem:[#allocation2 + $0x8] sm:$0xf]
      %2247 = vst [vmem:[#allocation1] ss:$2 sm:$0xff] %v2243
      %s2248 = scalar_lea.vmem [#allocation1], 16
      %2249 = vst [vmem:[%s2248] ss:$2 sm:$0xff] %v2244
      %v2250 = vld.sshfl [vmem:[#allocation1] sm:$0xff pattern:$0x75316420]
      %v2251 = vld.sshfl [vmem:[#allocation1 + $0x8] sm:$0xff pattern:$0x75316420]
      %v2252 = vld.sshfl [vmem:[#allocation1 + $0x10] sm:$0xff pattern:$0x75316420]
      %2253 = vrot.lane.b32.xlu0 %v2250, 50
      %v2254 = vpop.permute.xlu0 %2253
      %2255 = vrot.lane.b32.xlu0 %v2251, 50
      %v2256 = vpop.permute.xlu0 %2255
      %2257 = vrot.lane.b32.xlu0 %v2252, 50
      %v2258 = vpop.permute.xlu0 %2257
      %v2259 = vsel %vm749, %v2254, %v2256
      %v2260 = vsel %vm749, %v2256, %v2258
      %v2263 = vsel %vm289, %v2259, 0.0
      %v2264 = vsel %vm290, %v2260, 0.0
      %v2267 = vrot.slane %v2263, 4
      %v2268 = vrot.slane %v2264, 4
      %2271 = vst [vmem:[#allocation3 + $0x70] sm:$0xf0] %v2267
      %2272 = vst [vmem:[#allocation3 + $0x78] sm:$0xf0] %v2268
      %v2273 = vld [vmem:[#allocation2] sm:$0xff]
      %v2274 = vld [vmem:[#allocation2 + $0x8] sm:$0xf]
      %2277 = vst [vmem:[#allocation1] ss:$2 sm:$0xff] %v2273
      %s2278 = scalar_lea.vmem [#allocation1], 16
      %2279 = vst [vmem:[%s2278] ss:$2 sm:$0xff] %v2274
      %v2280 = vld.sshfl [vmem:[#allocation1] sm:$0xff pattern:$0x75316420]
      %v2281 = vld.sshfl [vmem:[#allocation1 + $0x8] sm:$0xff pattern:$0x75316420]
      %v2282 = vld.sshfl [vmem:[#allocation1 + $0x10] sm:$0xff pattern:$0x75316420]
      %2283 = vrot.lane.b32.xlu0 %v2280, 49
      %v2284 = vpop.permute.xlu0 %2283
      %2285 = vrot.lane.b32.xlu0 %v2281, 49
      %v2286 = vpop.permute.xlu0 %2285
      %2287 = vrot.lane.b32.xlu0 %v2282, 49
      %v2288 = vpop.permute.xlu0 %2287
      %v2289 = vsel %vm780, %v2284, %v2286
      %v2290 = vsel %vm780, %v2286, %v2288
      %v2293 = vsel %vm297, %v2289, 0.0
      %v2294 = vsel %vm298, %v2290, 0.0
      %2295 = vst [vmem:[#allocation3 + $0x80] sm:$0xf] %v2293
      %2296 = vst [vmem:[#allocation3 + $0x88] sm:$0xf] %v2294
      %v2297 = vld [vmem:[#allocation2] sm:$0xff]
      %v2298 = vld [vmem:[#allocation2 + $0x8] sm:$0xf]
      %s2301 = scalar_lea.vmem [#allocation1], 1
      %2302 = vst [vmem:[%s2301] ss:$2 sm:$0xff] %v2297
      %s2303 = scalar_lea.vmem [#allocation1], 17
      %2304 = vst [vmem:[%s2303] ss:$2 sm:$0xff] %v2298
      %v2305 = vld.sshfl [vmem:[#allocation1] sm:$0xff pattern:$0x75316420]
      %v2306 = vld.sshfl [vmem:[#allocation1 + $0x8] sm:$0xff pattern:$0x75316420]
      %v2307 = vld.sshfl [vmem:[#allocation1 + $0x10] sm:$0xff pattern:$0x75316420]
      %2308 = vrot.lane.b32.xlu0 %v2305, 48
      %v2309 = vpop.permute.xlu0 %2308
      %2310 = vrot.lane.b32.xlu0 %v2306, 48
      %v2311 = vpop.permute.xlu0 %2310
      %2312 = vrot.lane.b32.xlu0 %v2307, 48
      %v2313 = vpop.permute.xlu0 %2312
      %v2314 = vsel %vm806, %v2309, %v2311
      %v2315 = vsel %vm806, %v2311, %v2313
      %2318 = vst [vmem:[#allocation3 + $0x80] sm:$0xf0] %v2314
      %2319 = vst [vmem:[#allocation3 + $0x88] sm:$0xf0] %v2315
      %v2320 = vld [vmem:[#allocation2] sm:$0xff]
      %v2321 = vld [vmem:[#allocation2 + $0x8] sm:$0xf]
      %2324 = vst [vmem:[#allocation1] ss:$2 sm:$0xff] %v2320
      %s2325 = scalar_lea.vmem [#allocation1], 16
      %2326 = vst [vmem:[%s2325] ss:$2 sm:$0xff] %v2321
      %v2327 = vld.sshfl [vmem:[#allocation1] sm:$0xff pattern:$0x75316420]
      %v2328 = vld.sshfl [vmem:[#allocation1 + $0x8] sm:$0xff pattern:$0x75316420]
      %v2329 = vld.sshfl [vmem:[#allocation1 + $0x10] sm:$0xff pattern:$0x75316420]
      %2330 = vrot.lane.b32.xlu0 %v2327, 47
      %v2331 = vpop.permute.xlu0 %2330
      %2332 = vrot.lane.b32.xlu0 %v2328, 47
      %v2333 = vpop.permute.xlu0 %2332
      %2334 = vrot.lane.b32.xlu0 %v2329, 47
      %v2335 = vpop.permute.xlu0 %2334
      %v2336 = vsel %vm829, %v2331, %v2333
      %v2337 = vsel %vm829, %v2333, %v2335
      %v2340 = vsel %vm305, %v2336, 0.0
      %v2341 = vsel %vm306, %v2337, 0.0
      %2342 = vst [vmem:[#allocation3 + $0x90] sm:$0xf] %v2340
      %2343 = vst [vmem:[#allocation3 + $0x98] sm:$0xf] %v2341
      %v2344 = vld [vmem:[#allocation2] sm:$0xff]
      %v2345 = vld [vmem:[#allocation2 + $0x8] sm:$0xf]
      %2348 = vst [vmem:[#allocation1] ss:$2 sm:$0xff] %v2344
      %s2349 = scalar_lea.vmem [#allocation1], 16
      %2350 = vst [vmem:[%s2349] ss:$2 sm:$0xff] %v2345
      %v2351 = vld.sshfl [vmem:[#allocation1] sm:$0xff pattern:$0x75316420]
      %v2352 = vld.sshfl [vmem:[#allocation1 + $0x8] sm:$0xff pattern:$0x75316420]
      %v2353 = vld.sshfl [vmem:[#allocation1 + $0x10] sm:$0xff pattern:$0x75316420]
      %2354 = vrot.lane.b32.xlu0 %v2351, 46
      %v2355 = vpop.permute.xlu0 %2354
      %2356 = vrot.lane.b32.xlu0 %v2352, 46
      %v2357 = vpop.permute.xlu0 %2356
      %2358 = vrot.lane.b32.xlu0 %v2353, 46
      %v2359 = vpop.permute.xlu0 %2358
      %v2360 = vsel %vm854, %v2355, %v2357
      %v2361 = vsel %vm854, %v2357, %v2359
      %v2364 = vsel %vm313, %v2360, 0.0
      %v2365 = vsel %vm314, %v2361, 0.0
      %v2368 = vrot.slane %v2364, 4
      %v2369 = vrot.slane %v2365, 4
      %2372 = vst [vmem:[#allocation3 + $0x90] sm:$0xf0] %v2368
      %2373 = vst [vmem:[#allocation3 + $0x98] sm:$0xf0] %v2369
      %v2374 = vld [vmem:[#allocation2] sm:$0xff]
      %v2375 = vld [vmem:[#allocation2 + $0x8] sm:$0xf]
      %2378 = vst [vmem:[#allocation1] ss:$2 sm:$0xff] %v2374
      %s2379 = scalar_lea.vmem [#allocation1], 16
      %2380 = vst [vmem:[%s2379] ss:$2 sm:$0xff] %v2375
      %v2381 = vld.sshfl [vmem:[#allocation1] sm:$0xff pattern:$0x75316420]
      %v2382 = vld.sshfl [vmem:[#allocation1 + $0x8] sm:$0xff pattern:$0x75316420]
      %v2383 = vld.sshfl [vmem:[#allocation1 + $0x10] sm:$0xff pattern:$0x75316420]
      %2384 = vrot.lane.b32.xlu0 %v2381, 34
      %v2385 = vpop.permute.xlu0 %2384
      %2386 = vrot.lane.b32.xlu0 %v2382, 34
      %v2387 = vpop.permute.xlu0 %2386
      %2388 = vrot.lane.b32.xlu0 %v2383, 34
      %v2389 = vpop.permute.xlu0 %2388
      %v2390 = vsel %vm885, %v2385, %v2387
      %v2391 = vsel %vm885, %v2387, %v2389
      %v2394 = vsel %vm289, %v2390, 0.0
      %v2395 = vsel %vm290, %v2391, 0.0
      %2396 = vst [vmem:[#allocation3 + $0xa0] sm:$0xf] %v2394
      %2397 = vst [vmem:[#allocation3 + $0xa8] sm:$0xf] %v2395
      %v2398 = vld [vmem:[#allocation2] sm:$0xff]
      %v2399 = vld [vmem:[#allocation2 + $0x8] sm:$0xf]
      %2402 = vst [vmem:[#allocation1] ss:$2 sm:$0xff] %v2398
      %s2403 = scalar_lea.vmem [#allocation1], 16
      %2404 = vst [vmem:[%s2403] ss:$2 sm:$0xff] %v2399
      %v2405 = vld.sshfl [vmem:[#allocation1] sm:$0xff pattern:$0x75316420]
      %v2406 = vld.sshfl [vmem:[#allocation1 + $0x8] sm:$0xff pattern:$0x75316420]
      %v2407 = vld.sshfl [vmem:[#allocation1 + $0x10] sm:$0xff pattern:$0x75316420]
      %2408 = vrot.lane.b32.xlu0 %v2405, 33
      %v2409 = vpop.permute.xlu0 %2408
      %2410 = vrot.lane.b32.xlu0 %v2406, 33
      %v2411 = vpop.permute.xlu0 %2410
      %2412 = vrot.lane.b32.xlu0 %v2407, 33
      %v2413 = vpop.permute.xlu0 %2412
      %v2414 = vsel %vm910, %v2409, %v2411
      %v2415 = vsel %vm910, %v2411, %v2413
      %v2418 = vsel %vm297, %v2414, 0.0
      %v2419 = vsel %vm298, %v2415, 0.0
      %v2422 = vrot.slane %v2418, 4
      %v2423 = vrot.slane %v2419, 4
      %2426 = vst [vmem:[#allocation3 + $0xa0] sm:$0xf0] %v2422
      %2427 = vst [vmem:[#allocation3 + $0xa8] sm:$0xf0] %v2423
      %v2428 = vld [vmem:[#allocation2] sm:$0xff]
      %v2429 = vld [vmem:[#allocation2 + $0x8] sm:$0xf]
      %2432 = vst [vmem:[#allocation1] ss:$2 sm:$0xff] %v2428
      %s2433 = scalar_lea.vmem [#allocation1], 16
      %2434 = vst [vmem:[%s2433] ss:$2 sm:$0xff] %v2429
      %v2435 = vld.sshfl [vmem:[#allocation1] sm:$0xff pattern:$0x75316420]
      %v2436 = vld.sshfl [vmem:[#allocation1 + $0x8] sm:$0xff pattern:$0x75316420]
      %v2437 = vld.sshfl [vmem:[#allocation1 + $0x10] sm:$0xff pattern:$0x75316420]
      %2438 = vrot.lane.b32.xlu0 %v2435, 32
      %v2439 = vpop.permute.xlu0 %2438
      %2440 = vrot.lane.b32.xlu0 %v2436, 32
      %v2441 = vpop.permute.xlu0 %2440
      %2442 = vrot.lane.b32.xlu0 %v2437, 32
      %v2443 = vpop.permute.xlu0 %2442
      %v2444 = vsel %vm941, %v2439, %v2441
      %v2445 = vsel %vm941, %v2441, %v2443
      %2448 = vst [vmem:[#allocation3 + $0xb0] sm:$0xf] %v2444
      %2449 = vst [vmem:[#allocation3 + $0xb8] sm:$0xf] %v2445
      %v2450 = vld [vmem:[#allocation2] sm:$0xff]
      %v2451 = vld [vmem:[#allocation2 + $0x8] sm:$0xf]
      %2454 = vst [vmem:[#allocation1] ss:$2 sm:$0xff] %v2450
      %s2455 = scalar_lea.vmem [#allocation1], 16
      %2456 = vst [vmem:[%s2455] ss:$2 sm:$0xff] %v2451
      %v2457 = vld.sshfl [vmem:[#allocation1] sm:$0xff pattern:$0x75316420]
      %v2458 = vld.sshfl [vmem:[#allocation1 + $0x8] sm:$0xff pattern:$0x75316420]
      %v2459 = vld.sshfl [vmem:[#allocation1 + $0x10] sm:$0xff pattern:$0x75316420]
      %2460 = vrot.lane.b32.xlu0 %v2457, 31
      %v2461 = vpop.permute.xlu0 %2460
      %2462 = vrot.lane.b32.xlu0 %v2458, 31
      %v2463 = vpop.permute.xlu0 %2462
      %2464 = vrot.lane.b32.xlu0 %v2459, 31
      %v2465 = vpop.permute.xlu0 %2464
      %v2466 = vsel %vm964, %v2461, %v2463
      %v2467 = vsel %vm964, %v2463, %v2465
      %v2470 = vsel %vm305, %v2466, 0.0
      %v2471 = vsel %vm306, %v2467, 0.0
      %v2474 = vrot.slane %v2470, 4
      %v2475 = vrot.slane %v2471, 4
      %2478 = vst [vmem:[#allocation3 + $0xb0] sm:$0xf0] %v2474
      %2479 = vst [vmem:[#allocation3 + $0xb8] sm:$0xf0] %v2475
      %v2480 = vld [vmem:[#allocation2] sm:$0xff]
      %v2481 = vld [vmem:[#allocation2 + $0x8] sm:$0xf]
      %2484 = vst [vmem:[#allocation1] ss:$2 sm:$0xff] %v2480
      %s2485 = scalar_lea.vmem [#allocation1], 16
      %2486 = vst [vmem:[%s2485] ss:$2 sm:$0xff] %v2481
      %v2487 = vld.sshfl [vmem:[#allocation1] sm:$0xff pattern:$0x75316420]
      %v2488 = vld.sshfl [vmem:[#allocation1 + $0x8] sm:$0xff pattern:$0x75316420]
      %v2489 = vld.sshfl [vmem:[#allocation1 + $0x10] sm:$0xff pattern:$0x75316420]
      %2490 = vrot.lane.b32.xlu0 %v2487, 30
      %v2491 = vpop.permute.xlu0 %2490
      %2492 = vrot.lane.b32.xlu0 %v2488, 30
      %v2493 = vpop.permute.xlu0 %2492
      %2494 = vrot.lane.b32.xlu0 %v2489, 30
      %v2495 = vpop.permute.xlu0 %2494
      %v2496 = vsel %vm995, %v2491, %v2493
      %v2497 = vsel %vm995, %v2493, %v2495
      %v2500 = vsel %vm313, %v2496, 0.0
      %v2501 = vsel %vm314, %v2497, 0.0
      %2502 = vst [vmem:[#allocation3 + $0xc0] sm:$0xf] %v2500
      %2503 = vst [vmem:[#allocation3 + $0xc8] sm:$0xf] %v2501
      %s2504 = scalar_lea.vmem %s1, 4
      %v2505 = vld [vmem:[%s2504] sm:$0xf]
      %v2506 = vld [vmem:[#allocation3] sm:$0xff]
      %v2507 = vld [vmem:[#allocation3 + $0x8] sm:$0xff]
      %v2508 = vld [vmem:[#allocation3 + $0x10] sm:$0xff]
      %v2509 = vld [vmem:[#allocation3 + $0x18] sm:$0xff]
      %v2510 = vld [vmem:[#allocation3 + $0x20] sm:$0xff]
      %v2511 = vld [vmem:[#allocation3 + $0x28] sm:$0xff]
      %v2512 = vld [vmem:[#allocation3 + $0x30] sm:$0xff]
      %v2513 = vld [vmem:[#allocation3 + $0x38] sm:$0xff]
      %v2514 = vld [vmem:[#allocation3 + $0x40] sm:$0xff]
      %v2515 = vld [vmem:[#allocation3 + $0x48] sm:$0xff]
      %v2516 = vld [vmem:[#allocation3 + $0x50] sm:$0xff]
      %v2517 = vld [vmem:[#allocation3 + $0x58] sm:$0xff]
      %v2518 = vld [vmem:[#allocation3 + $0x60] sm:$0xff]
      %v2519 = vld [vmem:[#allocation3 + $0x68] sm:$0xff]
      %v2520 = vld [vmem:[#allocation3 + $0x70] sm:$0xff]
      %v2521 = vld [vmem:[#allocation3 + $0x78] sm:$0xff]
      %v2522 = vld [vmem:[#allocation3 + $0x80] sm:$0xff]
      %v2523 = vld [vmem:[#allocation3 + $0x88] sm:$0xff]
      %v2524 = vld [vmem:[#allocation3 + $0x90] sm:$0xff]
      %v2525 = vld [vmem:[#allocation3 + $0x98] sm:$0xff]
      %v2526 = vld [vmem:[#allocation3 + $0xa0] sm:$0xff]
      %v2527 = vld [vmem:[#allocation3 + $0xa8] sm:$0xff]
      %v2528 = vld [vmem:[#allocation3 + $0xb0] sm:$0xff]
      %v2529 = vld [vmem:[#allocation3 + $0xb8] sm:$0xff]
      %v2530 = vld [vmem:[#allocation3 + $0xc0] sm:$0xf]
      %v2531 = vld [vmem:[#allocation3 + $0xc8] sm:$0xf]
      %s2532 = scalar_lea.vmem %s2, 4
      %v2533 = vld [vmem:[%s2532] sm:$0xf]
      %2535 = vset.pattern.permute.xlu0 0
      %2536 = vperm.xlu0 %2535, %v2533
      %v2537 = vpop.permute.xlu0 %2536
      %v2540 = vsel %vm1037, %v2505, 0
      %v2543 = vsel %vm1041, %v2530, 0
      %v2546 = vsel %vm1041, %v2531, 0
      %2548 = vmatpush.msra.mxu0 0.0
      %2549 = vmatpush.msra.mxu0 0.0
      %2550 = vmatpush.msra.mxu0 0.0
      %2551 = vmatpush.msra.mxu0 %v2543
      %2552 = vmatpush.msra.mxu0 %v2528
      %2553 = vmatpush.msra.mxu0 %v2526
      %2554 = vmatpush.msra.mxu0 %v2524
      %2555 = vmatpush.msra.mxu0 %v2522
      %2556 = vmatpush.msra.mxu0 %v2520
      %2557 = vmatpush.msra.mxu0 %v2518
      %2558 = vmatpush.msra.mxu0 %v2516
      %2559 = vmatpush.msra.mxu0 %v2514
      %2560 = vmatpush.msra.mxu0 %v2512
      %2561 = vmatpush.msra.mxu0 %v2510
      %2562 = vmatpush.msra.mxu0 %v2508
      %2563 = vmatpush.msra.mxu0 %v2506
      %2564 = vmatmul.f32.gmra.mxu0 %v2540
      %v2565 = vpop.f32.mrf.mxu0
      %v2566 = vadd.f32 %v2537, %v2565
      %2567 = vdwg.mxu0
      %2568 = vmatpush.msra.mxu0 0.0
      %2569 = vmatpush.msra.mxu0 0.0
      %2570 = vmatpush.msra.mxu0 0.0
      %2571 = vmatpush.msra.mxu0 %v2546
      %2572 = vmatpush.msra.mxu0 %v2529
      %2573 = vmatpush.msra.mxu0 %v2527
      %2574 = vmatpush.msra.mxu0 %v2525
      %2575 = vmatpush.msra.mxu0 %v2523
      %2576 = vmatpush.msra.mxu0 %v2521
      %2577 = vmatpush.msra.mxu0 %v2519
      %2578 = vmatpush.msra.mxu0 %v2517
      %2579 = vmatpush.msra.mxu0 %v2515
      %2580 = vmatpush.msra.mxu0 %v2513
      %2581 = vmatpush.msra.mxu0 %v2511
      %2582 = vmatpush.msra.mxu0 %v2509
      %2583 = vmatpush.msra.mxu0 %v2507
      %2584 = vmatmul.f32.gmra.mxu0 %v2540
      %v2585 = vpop.f32.mrf.mxu0
      %v2586 = vadd.f32 %v2537, %v2585
      %2587 = vdwg.mxu0
      %v2588 = vmax.f32 %v2566, 0.0
      %v2589 = vmax.f32 %v2586, 0.0
      %v2592 = vrot.slane %v2589, 4
      %v2593 = vsel %vm1041, %v2588, %v2592
      %2594 = vrot.lane.b32.xlu0 %v2593, 64
      %v2595 = vpop.permute.xlu0 %2594
      %v2596 = vrot.slane %v2595, 4
      %v2597 = vsel %vm320, %v2596, %v2595
      %2600 = vst.msk [vmem:[#allocation2] sm:$0xff] %vm325, %v2597
      %2601 = vst.msk [vmem:[#allocation2 + $0x8] sm:$0xf] %vm252, %v2596
      %v2602 = vld [vmem:[#allocation2] sm:$0xff]
      %v2603 = vld [vmem:[#allocation2 + $0x8] sm:$0xf]
      %2606 = vst [vmem:[#allocation1] ss:$2 sm:$0xff] %v2602
      %s2607 = scalar_lea.vmem [#allocation1], 16
      %2608 = vst [vmem:[%s2607] ss:$2 sm:$0xff] %v2603
      %v2609 = vld.sshfl [vmem:[#allocation1] sm:$0xff pattern:$0x75316420]
      %v2610 = vld.sshfl [vmem:[#allocation1 + $0x8] sm:$0xff pattern:$0x75316420]
      %v2611 = vld.sshfl [vmem:[#allocation1 + $0x10] sm:$0xff pattern:$0x75316420]
      %2612 = vrot.lane.b32.xlu0 %v2609, 98
      %v2613 = vpop.permute.xlu0 %2612
      %2614 = vrot.lane.b32.xlu0 %v2610, 98
      %v2615 = vpop.permute.xlu0 %2614
      %2616 = vrot.lane.b32.xlu0 %v2611, 98
      %v2617 = vpop.permute.xlu0 %2616
      %v2618 = vsel %vm344, %v2613, %v2615
      %v2619 = vsel %vm344, %v2615, %v2617
      %v2622 = vsel %vm289, %v2618, 0.0
      %v2623 = vsel %vm290, %v2619, 0.0
      %2624 = vst [vmem:[#allocation3] sm:$0xf] %v2622
      %2625 = vst [vmem:[#allocation3 + $0x8] sm:$0xf] %v2623
      %v2626 = vld [vmem:[#allocation2] sm:$0xff]
      %v2627 = vld [vmem:[#allocation2 + $0x8] sm:$0xf]
      %2630 = vst [vmem:[#allocation1] ss:$2 sm:$0xff] %v2626
      %s2631 = scalar_lea.vmem [#allocation1], 16
      %2632 = vst [vmem:[%s2631] ss:$2 sm:$0xff] %v2627
      %v2633 = vld.sshfl [vmem:[#allocation1] sm:$0xff pattern:$0x75316420]
      %v2634 = vld.sshfl [vmem:[#allocation1 + $0x8] sm:$0xff pattern:$0x75316420]
      %v2635 = vld.sshfl [vmem:[#allocation1 + $0x10] sm:$0xff pattern:$0x75316420]
      %2636 = vrot.lane.b32.xlu0 %v2633, 97
      %v2637 = vpop.permute.xlu0 %2636
      %2638 = vrot.lane.b32.xlu0 %v2634, 97
      %v2639 = vpop.permute.xlu0 %2638
      %2640 = vrot.lane.b32.xlu0 %v2635, 97
      %v2641 = vpop.permute.xlu0 %2640
      %v2642 = vsel %vm369, %v2637, %v2639
      %v2643 = vsel %vm369, %v2639, %v2641
      %v2646 = vsel %vm297, %v2642, 0.0
      %v2647 = vsel %vm298, %v2643, 0.0
      %v2650 = vrot.slane %v2646, 4
      %v2651 = vrot.slane %v2647, 4
      %2654 = vst [vmem:[#allocation3] sm:$0xf0] %v2650
      %2655 = vst [vmem:[#allocation3 + $0x8] sm:$0xf0] %v2651
      %v2656 = vld [vmem:[#allocation2] sm:$0xff]
      %v2657 = vld [vmem:[#allocation2 + $0x8] sm:$0xf]
      %2660 = vst [vmem:[#allocation1] ss:$2 sm:$0xff] %v2656
      %s2661 = scalar_lea.vmem [#allocation1], 16
      %2662 = vst [vmem:[%s2661] ss:$2 sm:$0xff] %v2657
      %v2663 = vld.sshfl [vmem:[#allocation1] sm:$0xff pattern:$0x75316420]
      %v2664 = vld.sshfl [vmem:[#allocation1 + $0x8] sm:$0xff pattern:$0x75316420]
      %v2665 = vld.sshfl [vmem:[#allocation1 + $0x10] sm:$0xff pattern:$0x75316420]
      %2666 = vrot.lane.b32.xlu0 %v2663, 96
      %v2667 = vpop.permute.xlu0 %2666
      %2668 = vrot.lane.b32.xlu0 %v2664, 96
      %v2669 = vpop.permute.xlu0 %2668
      %2670 = vrot.lane.b32.xlu0 %v2665, 96
      %v2671 = vpop.permute.xlu0 %2670
      %v2672 = vsel %vm400, %v2667, %v2669
      %v2673 = vsel %vm400, %v2669, %v2671
      %2676 = vst [vmem:[#allocation3 + $0x10] sm:$0xf] %v2672
      %2677 = vst [vmem:[#allocation3 + $0x18] sm:$0xf] %v2673
      %v2678 = vld [vmem:[#allocation2] sm:$0xff]
      %v2679 = vld [vmem:[#allocation2 + $0x8] sm:$0xf]
      %2682 = vst [vmem:[#allocation1] ss:$2 sm:$0xff] %v2678
      %s2683 = scalar_lea.vmem [#allocation1], 16
      %2684 = vst [vmem:[%s2683] ss:$2 sm:$0xff] %v2679
      %v2685 = vld.sshfl [vmem:[#allocation1] sm:$0xff pattern:$0x75316420]
      %v2686 = vld.sshfl [vmem:[#allocation1 + $0x8] sm:$0xff pattern:$0x75316420]
      %v2687 = vld.sshfl [vmem:[#allocation1 + $0x10] sm:$0xff pattern:$0x75316420]
      %2688 = vrot.lane.b32.xlu0 %v2685, 95
      %v2689 = vpop.permute.xlu0 %2688
      %2690 = vrot.lane.b32.xlu0 %v2686, 95
      %v2691 = vpop.permute.xlu0 %2690
      %2692 = vrot.lane.b32.xlu0 %v2687, 95
      %v2693 = vpop.permute.xlu0 %2692
      %v2694 = vsel %vm423, %v2689, %v2691
      %v2695 = vsel %vm423, %v2691, %v2693
      %v2698 = vsel %vm305, %v2694, 0.0
      %v2699 = vsel %vm306, %v2695, 0.0
      %v2702 = vrot.slane %v2698, 4
      %v2703 = vrot.slane %v2699, 4
      %2706 = vst [vmem:[#allocation3 + $0x10] sm:$0xf0] %v2702
      %2707 = vst [vmem:[#allocation3 + $0x18] sm:$0xf0] %v2703
      %v2708 = vld [vmem:[#allocation2] sm:$0xff]
      %v2709 = vld [vmem:[#allocation2 + $0x8] sm:$0xf]
      %2712 = vst [vmem:[#allocation1] ss:$2 sm:$0xff] %v2708
      %s2713 = scalar_lea.vmem [#allocation1], 16
      %2714 = vst [vmem:[%s2713] ss:$2 sm:$0xff] %v2709
      %v2715 = vld.sshfl [vmem:[#allocation1] sm:$0xff pattern:$0x75316420]
      %v2716 = vld.sshfl [vmem:[#allocation1 + $0x8] sm:$0xff pattern:$0x75316420]
      %v2717 = vld.sshfl [vmem:[#allocation1 + $0x10] sm:$0xff pattern:$0x75316420]
      %2718 = vrot.lane.b32.xlu0 %v2715, 94
      %v2719 = vpop.permute.xlu0 %2718
      %2720 = vrot.lane.b32.xlu0 %v2716, 94
      %v2721 = vpop.permute.xlu0 %2720
      %2722 = vrot.lane.b32.xlu0 %v2717, 94
      %v2723 = vpop.permute.xlu0 %2722
      %v2724 = vsel %vm454, %v2719, %v2721
      %v2725 = vsel %vm454, %v2721, %v2723
      %v2728 = vsel %vm313, %v2724, 0.0
      %v2729 = vsel %vm314, %v2725, 0.0
      %2730 = vst [vmem:[#allocation3 + $0x20] sm:$0xf] %v2728
      %2731 = vst [vmem:[#allocation3 + $0x28] sm:$0xf] %v2729
      %v2732 = vld [vmem:[#allocation2] sm:$0xff]
      %v2733 = vld [vmem:[#allocation2 + $0x8] sm:$0xf]
      %2736 = vst [vmem:[#allocation1] ss:$2 sm:$0xff] %v2732
      %s2737 = scalar_lea.vmem [#allocation1], 16
      %2738 = vst [vmem:[%s2737] ss:$2 sm:$0xff] %v2733
      %v2739 = vld.sshfl [vmem:[#allocation1] sm:$0xff pattern:$0x75316420]
      %v2740 = vld.sshfl [vmem:[#allocation1 + $0x8] sm:$0xff pattern:$0x75316420]
      %v2741 = vld.sshfl [vmem:[#allocation1 + $0x10] sm:$0xff pattern:$0x75316420]
      %2742 = vrot.lane.b32.xlu0 %v2739, 82
      %v2743 = vpop.permute.xlu0 %2742
      %2744 = vrot.lane.b32.xlu0 %v2740, 82
      %v2745 = vpop.permute.xlu0 %2744
      %2746 = vrot.lane.b32.xlu0 %v2741, 82
      %v2747 = vpop.permute.xlu0 %2746
      %v2748 = vsel %vm479, %v2743, %v2745
      %v2749 = vsel %vm479, %v2745, %v2747
      %v2752 = vsel %vm289, %v2748, 0.0
      %v2753 = vsel %vm290, %v2749, 0.0
      %v2756 = vrot.slane %v2752, 4
      %v2757 = vrot.slane %v2753, 4
      %2760 = vst [vmem:[#allocation3 + $0x20] sm:$0xf0] %v2756
      %2761 = vst [vmem:[#allocation3 + $0x28] sm:$0xf0] %v2757
      %v2762 = vld [vmem:[#allocation2] sm:$0xff]
      %v2763 = vld [vmem:[#allocation2 + $0x8] sm:$0xf]
      %2766 = vst [vmem:[#allocation1] ss:$2 sm:$0xff] %v2762
      %s2767 = scalar_lea.vmem [#allocation1], 16
      %2768 = vst [vmem:[%s2767] ss:$2 sm:$0xff] %v2763
      %v2769 = vld.sshfl [vmem:[#allocation1] sm:$0xff pattern:$0x75316420]
      %v2770 = vld.sshfl [vmem:[#allocation1 + $0x8] sm:$0xff pattern:$0x75316420]
      %v2771 = vld.sshfl [vmem:[#allocation1 + $0x10] sm:$0xff pattern:$0x75316420]
      %2772 = vrot.lane.b32.xlu0 %v2769, 81
      %v2773 = vpop.permute.xlu0 %2772
      %2774 = vrot.lane.b32.xlu0 %v2770, 81
      %v2775 = vpop.permute.xlu0 %2774
      %2776 = vrot.lane.b32.xlu0 %v2771, 81
      %v2777 = vpop.permute.xlu0 %2776
      %v2778 = vsel %vm510, %v2773, %v2775
      %v2779 = vsel %vm510, %v2775, %v2777
      %v2782 = vsel %vm297, %v2778, 0.0
      %v2783 = vsel %vm298, %v2779, 0.0
      %2784 = vst [vmem:[#allocation3 + $0x30] sm:$0xf] %v2782
      %2785 = vst [vmem:[#allocation3 + $0x38] sm:$0xf] %v2783
      %v2786 = vld [vmem:[#allocation2] sm:$0xff]
      %v2787 = vld [vmem:[#allocation2 + $0x8] sm:$0xf]
      %s2790 = scalar_lea.vmem [#allocation1], 1
      %2791 = vst [vmem:[%s2790] ss:$2 sm:$0xff] %v2786
      %s2792 = scalar_lea.vmem [#allocation1], 17
      %2793 = vst [vmem:[%s2792] ss:$2 sm:$0xff] %v2787
      %v2794 = vld.sshfl [vmem:[#allocation1] sm:$0xff pattern:$0x75316420]
      %v2795 = vld.sshfl [vmem:[#allocation1 + $0x8] sm:$0xff pattern:$0x75316420]
      %v2796 = vld.sshfl [vmem:[#allocation1 + $0x10] sm:$0xff pattern:$0x75316420]
      %2797 = vrot.lane.b32.xlu0 %v2794, 80
      %v2798 = vpop.permute.xlu0 %2797
      %2799 = vrot.lane.b32.xlu0 %v2795, 80
      %v2800 = vpop.permute.xlu0 %2799
      %2801 = vrot.lane.b32.xlu0 %v2796, 80
      %v2802 = vpop.permute.xlu0 %2801
      %v2803 = vsel %vm536, %v2798, %v2800
      %v2804 = vsel %vm536, %v2800, %v2802
      %2807 = vst [vmem:[#allocation3 + $0x30] sm:$0xf0] %v2803
      %2808 = vst [vmem:[#allocation3 + $0x38] sm:$0xf0] %v2804
      %v2809 = vld [vmem:[#allocation2] sm:$0xff]
      %v2810 = vld [vmem:[#allocation2 + $0x8] sm:$0xf]
      %2813 = vst [vmem:[#allocation1] ss:$2 sm:$0xff] %v2809
      %s2814 = scalar_lea.vmem [#allocation1], 16
      %2815 = vst [vmem:[%s2814] ss:$2 sm:$0xff] %v2810
      %v2816 = vld.sshfl [vmem:[#allocation1] sm:$0xff pattern:$0x75316420]
      %v2817 = vld.sshfl [vmem:[#allocation1 + $0x8] sm:$0xff pattern:$0x75316420]
      %v2818 = vld.sshfl [vmem:[#allocation1 + $0x10] sm:$0xff pattern:$0x75316420]
      %2819 = vrot.lane.b32.xlu0 %v2816, 79
      %v2820 = vpop.permute.xlu0 %2819
      %2821 = vrot.lane.b32.xlu0 %v2817, 79
      %v2822 = vpop.permute.xlu0 %2821
      %2823 = vrot.lane.b32.xlu0 %v2818, 79
      %v2824 = vpop.permute.xlu0 %2823
      %v2825 = vsel %vm559, %v2820, %v2822
      %v2826 = vsel %vm559, %v2822, %v2824
      %v2829 = vsel %vm305, %v2825, 0.0
      %v2830 = vsel %vm306, %v2826, 0.0
      %2831 = vst [vmem:[#allocation3 + $0x40] sm:$0xf] %v2829
      %2832 = vst [vmem:[#allocation3 + $0x48] sm:$0xf] %v2830
      %v2833 = vld [vmem:[#allocation2] sm:$0xff]
      %v2834 = vld [vmem:[#allocation2 + $0x8] sm:$0xf]
      %2837 = vst [vmem:[#allocation1] ss:$2 sm:$0xff] %v2833
      %s2838 = scalar_lea.vmem [#allocation1], 16
      %2839 = vst [vmem:[%s2838] ss:$2 sm:$0xff] %v2834
      %v2840 = vld.sshfl [vmem:[#allocation1] sm:$0xff pattern:$0x75316420]
      %v2841 = vld.sshfl [vmem:[#allocation1 + $0x8] sm:$0xff pattern:$0x75316420]
      %v2842 = vld.sshfl [vmem:[#allocation1 + $0x10] sm:$0xff pattern:$0x75316420]
      %2843 = vrot.lane.b32.xlu0 %v2840, 78
      %v2844 = vpop.permute.xlu0 %2843
      %2845 = vrot.lane.b32.xlu0 %v2841, 78
      %v2846 = vpop.permute.xlu0 %2845
      %2847 = vrot.lane.b32.xlu0 %v2842, 78
      %v2848 = vpop.permute.xlu0 %2847
      %v2849 = vsel %vm584, %v2844, %v2846
      %v2850 = vsel %vm584, %v2846, %v2848
      %v2853 = vsel %vm313, %v2849, 0.0
      %v2854 = vsel %vm314, %v2850, 0.0
      %v2857 = vrot.slane %v2853, 4
      %v2858 = vrot.slane %v2854, 4
      %2861 = vst [vmem:[#allocation3 + $0x40] sm:$0xf0] %v2857
      %2862 = vst [vmem:[#allocation3 + $0x48] sm:$0xf0] %v2858
      %v2863 = vld [vmem:[#allocation2] sm:$0xff]
      %v2864 = vld [vmem:[#allocation2 + $0x8] sm:$0xf]
      %2867 = vst [vmem:[#allocation1] ss:$2 sm:$0xff] %v2863
      %s2868 = scalar_lea.vmem [#allocation1], 16
      %2869 = vst [vmem:[%s2868] ss:$2 sm:$0xff] %v2864
      %v2870 = vld.sshfl [vmem:[#allocation1] sm:$0xff pattern:$0x75316420]
      %v2871 = vld.sshfl [vmem:[#allocation1 + $0x8] sm:$0xff pattern:$0x75316420]
      %v2872 = vld.sshfl [vmem:[#allocation1 + $0x10] sm:$0xff pattern:$0x75316420]
      %2873 = vrot.lane.b32.xlu0 %v2870, 66
      %v2874 = vpop.permute.xlu0 %2873
      %2875 = vrot.lane.b32.xlu0 %v2871, 66
      %v2876 = vpop.permute.xlu0 %2875
      %2877 = vrot.lane.b32.xlu0 %v2872, 66
      %v2878 = vpop.permute.xlu0 %2877
      %v2879 = vsel %vm615, %v2874, %v2876
      %v2880 = vsel %vm615, %v2876, %v2878
      %v2883 = vsel %vm289, %v2879, 0.0
      %v2884 = vsel %vm290, %v2880, 0.0
      %2885 = vst [vmem:[#allocation3 + $0x50] sm:$0xf] %v2883
      %2886 = vst [vmem:[#allocation3 + $0x58] sm:$0xf] %v2884
      %v2887 = vld [vmem:[#allocation2] sm:$0xff]
      %v2888 = vld [vmem:[#allocation2 + $0x8] sm:$0xf]
      %2891 = vst [vmem:[#allocation1] ss:$2 sm:$0xff] %v2887
      %s2892 = scalar_lea.vmem [#allocation1], 16
      %2893 = vst [vmem:[%s2892] ss:$2 sm:$0xff] %v2888
      %v2894 = vld.sshfl [vmem:[#allocation1] sm:$0xff pattern:$0x75316420]
      %v2895 = vld.sshfl [vmem:[#allocation1 + $0x8] sm:$0xff pattern:$0x75316420]
      %v2896 = vld.sshfl [vmem:[#allocation1 + $0x10] sm:$0xff pattern:$0x75316420]
      %2897 = vrot.lane.b32.xlu0 %v2894, 65
      %v2898 = vpop.permute.xlu0 %2897
      %2899 = vrot.lane.b32.xlu0 %v2895, 65
      %v2900 = vpop.permute.xlu0 %2899
      %2901 = vrot.lane.b32.xlu0 %v2896, 65
      %v2902 = vpop.permute.xlu0 %2901
      %v2903 = vsel %vm640, %v2898, %v2900
      %v2904 = vsel %vm640, %v2900, %v2902
      %v2907 = vsel %vm297, %v2903, 0.0
      %v2908 = vsel %vm298, %v2904, 0.0
      %v2911 = vrot.slane %v2907, 4
      %v2912 = vrot.slane %v2908, 4
      %2915 = vst [vmem:[#allocation3 + $0x50] sm:$0xf0] %v2911
      %2916 = vst [vmem:[#allocation3 + $0x58] sm:$0xf0] %v2912
      %v2917 = vld [vmem:[#allocation2] sm:$0xff]
      %v2918 = vld [vmem:[#allocation2 + $0x8] sm:$0xf]
      %2921 = vst [vmem:[#allocation1] ss:$2 sm:$0xff] %v2917
      %s2922 = scalar_lea.vmem [#allocation1], 16
      %2923 = vst [vmem:[%s2922] ss:$2 sm:$0xff] %v2918
      %v2924 = vld.sshfl [vmem:[#allocation1] sm:$0xff pattern:$0x75316420]
      %v2925 = vld.sshfl [vmem:[#allocation1 + $0x8] sm:$0xff pattern:$0x75316420]
      %v2926 = vld.sshfl [vmem:[#allocation1 + $0x10] sm:$0xff pattern:$0x75316420]
      %2927 = vrot.lane.b32.xlu0 %v2924, 64
      %v2928 = vpop.permute.xlu0 %2927
      %2929 = vrot.lane.b32.xlu0 %v2925, 64
      %v2930 = vpop.permute.xlu0 %2929
      %2931 = vrot.lane.b32.xlu0 %v2926, 64
      %v2932 = vpop.permute.xlu0 %2931
      %v2933 = vsel %vm320, %v2928, %v2930
      %v2934 = vsel %vm320, %v2930, %v2932
      %2937 = vst [vmem:[#allocation3 + $0x60] sm:$0xf] %v2933
      %2938 = vst [vmem:[#allocation3 + $0x68] sm:$0xf] %v2934
      %v2939 = vld [vmem:[#allocation2] sm:$0xff]
      %v2940 = vld [vmem:[#allocation2 + $0x8] sm:$0xf]
      %2943 = vst [vmem:[#allocation1] ss:$2 sm:$0xff] %v2939
      %s2944 = scalar_lea.vmem [#allocation1], 16
      %2945 = vst [vmem:[%s2944] ss:$2 sm:$0xff] %v2940
      %v2946 = vld.sshfl [vmem:[#allocation1] sm:$0xff pattern:$0x75316420]
      %v2947 = vld.sshfl [vmem:[#allocation1 + $0x8] sm:$0xff pattern:$0x75316420]
      %v2948 = vld.sshfl [vmem:[#allocation1 + $0x10] sm:$0xff pattern:$0x75316420]
      %2949 = vrot.lane.b32.xlu0 %v2946, 63
      %v2950 = vpop.permute.xlu0 %2949
      %2951 = vrot.lane.b32.xlu0 %v2947, 63
      %v2952 = vpop.permute.xlu0 %2951
      %2953 = vrot.lane.b32.xlu0 %v2948, 63
      %v2954 = vpop.permute.xlu0 %2953
      %v2955 = vsel %vm693, %v2950, %v2952
      %v2956 = vsel %vm693, %v2952, %v2954
      %v2959 = vsel %vm305, %v2955, 0.0
      %v2960 = vsel %vm306, %v2956, 0.0
      %v2963 = vrot.slane %v2959, 4
      %v2964 = vrot.slane %v2960, 4
      %2967 = vst [vmem:[#allocation3 + $0x60] sm:$0xf0] %v2963
      %2968 = vst [vmem:[#allocation3 + $0x68] sm:$0xf0] %v2964
      %v2969 = vld [vmem:[#allocation2] sm:$0xff]
      %v2970 = vld [vmem:[#allocation2 + $0x8] sm:$0xf]
      %2973 = vst [vmem:[#allocation1] ss:$2 sm:$0xff] %v2969
      %s2974 = scalar_lea.vmem [#allocation1], 16
      %2975 = vst [vmem:[%s2974] ss:$2 sm:$0xff] %v2970
      %v2976 = vld.sshfl [vmem:[#allocation1] sm:$0xff pattern:$0x75316420]
      %v2977 = vld.sshfl [vmem:[#allocation1 + $0x8] sm:$0xff pattern:$0x75316420]
      %v2978 = vld.sshfl [vmem:[#allocation1 + $0x10] sm:$0xff pattern:$0x75316420]
      %2979 = vrot.lane.b32.xlu0 %v2976, 62
      %v2980 = vpop.permute.xlu0 %2979
      %2981 = vrot.lane.b32.xlu0 %v2977, 62
      %v2982 = vpop.permute.xlu0 %2981
      %2983 = vrot.lane.b32.xlu0 %v2978, 62
      %v2984 = vpop.permute.xlu0 %2983
      %v2985 = vsel %vm724, %v2980, %v2982
      %v2986 = vsel %vm724, %v2982, %v2984
      %v2989 = vsel %vm313, %v2985, 0.0
      %v2990 = vsel %vm314, %v2986, 0.0
      %2991 = vst [vmem:[#allocation3 + $0x70] sm:$0xf] %v2989
      %2992 = vst [vmem:[#allocation3 + $0x78] sm:$0xf] %v2990
      %v2993 = vld [vmem:[#allocation2] sm:$0xff]
      %v2994 = vld [vmem:[#allocation2 + $0x8] sm:$0xf]
      %2997 = vst [vmem:[#allocation1] ss:$2 sm:$0xff] %v2993
      %s2998 = scalar_lea.vmem [#allocation1], 16
      %2999 = vst [vmem:[%s2998] ss:$2 sm:$0xff] %v2994
      %v3000 = vld.sshfl [vmem:[#allocation1] sm:$0xff pattern:$0x75316420]
      %v3001 = vld.sshfl [vmem:[#allocation1 + $0x8] sm:$0xff pattern:$0x75316420]
      %v3002 = vld.sshfl [vmem:[#allocation1 + $0x10] sm:$0xff pattern:$0x75316420]
      %3003 = vrot.lane.b32.xlu0 %v3000, 50
      %v3004 = vpop.permute.xlu0 %3003
      %3005 = vrot.lane.b32.xlu0 %v3001, 50
      %v3006 = vpop.permute.xlu0 %3005
      %3007 = vrot.lane.b32.xlu0 %v3002, 50
      %v3008 = vpop.permute.xlu0 %3007
      %v3009 = vsel %vm749, %v3004, %v3006
      %v3010 = vsel %vm749, %v3006, %v3008
      %v3013 = vsel %vm289, %v3009, 0.0
      %v3014 = vsel %vm290, %v3010, 0.0
      %v3017 = vrot.slane %v3013, 4
      %v3018 = vrot.slane %v3014, 4
      %3021 = vst [vmem:[#allocation3 + $0x70] sm:$0xf0] %v3017
      %3022 = vst [vmem:[#allocation3 + $0x78] sm:$0xf0] %v3018
      %v3023 = vld [vmem:[#allocation2] sm:$0xff]
      %v3024 = vld [vmem:[#allocation2 + $0x8] sm:$0xf]
      %3027 = vst [vmem:[#allocation1] ss:$2 sm:$0xff] %v3023
      %s3028 = scalar_lea.vmem [#allocation1], 16
      %3029 = vst [vmem:[%s3028] ss:$2 sm:$0xff] %v3024
      %v3030 = vld.sshfl [vmem:[#allocation1] sm:$0xff pattern:$0x75316420]
      %v3031 = vld.sshfl [vmem:[#allocation1 + $0x8] sm:$0xff pattern:$0x75316420]
      %v3032 = vld.sshfl [vmem:[#allocation1 + $0x10] sm:$0xff pattern:$0x75316420]
      %3033 = vrot.lane.b32.xlu0 %v3030, 49
      %v3034 = vpop.permute.xlu0 %3033
      %3035 = vrot.lane.b32.xlu0 %v3031, 49
      %v3036 = vpop.permute.xlu0 %3035
      %3037 = vrot.lane.b32.xlu0 %v3032, 49
      %v3038 = vpop.permute.xlu0 %3037
      %v3039 = vsel %vm780, %v3034, %v3036
      %v3040 = vsel %vm780, %v3036, %v3038
      %v3043 = vsel %vm297, %v3039, 0.0
      %v3044 = vsel %vm298, %v3040, 0.0
      %3045 = vst [vmem:[#allocation3 + $0x80] sm:$0xf] %v3043
      %3046 = vst [vmem:[#allocation3 + $0x88] sm:$0xf] %v3044
      %v3047 = vld [vmem:[#allocation2] sm:$0xff]
      %v3048 = vld [vmem:[#allocation2 + $0x8] sm:$0xf]
      %s3051 = scalar_lea.vmem [#allocation1], 1
      %3052 = vst [vmem:[%s3051] ss:$2 sm:$0xff] %v3047
      %s3053 = scalar_lea.vmem [#allocation1], 17
      %3054 = vst [vmem:[%s3053] ss:$2 sm:$0xff] %v3048
      %v3055 = vld.sshfl [vmem:[#allocation1] sm:$0xff pattern:$0x75316420]
      %v3056 = vld.sshfl [vmem:[#allocation1 + $0x8] sm:$0xff pattern:$0x75316420]
      %v3057 = vld.sshfl [vmem:[#allocation1 + $0x10] sm:$0xff pattern:$0x75316420]
      %3058 = vrot.lane.b32.xlu0 %v3055, 48
      %v3059 = vpop.permute.xlu0 %3058
      %3060 = vrot.lane.b32.xlu0 %v3056, 48
      %v3061 = vpop.permute.xlu0 %3060
      %3062 = vrot.lane.b32.xlu0 %v3057, 48
      %v3063 = vpop.permute.xlu0 %3062
      %v3064 = vsel %vm806, %v3059, %v3061
      %v3065 = vsel %vm806, %v3061, %v3063
      %3068 = vst [vmem:[#allocation3 + $0x80] sm:$0xf0] %v3064
      %3069 = vst [vmem:[#allocation3 + $0x88] sm:$0xf0] %v3065
      %v3070 = vld [vmem:[#allocation2] sm:$0xff]
      %v3071 = vld [vmem:[#allocation2 + $0x8] sm:$0xf]
      %3074 = vst [vmem:[#allocation1] ss:$2 sm:$0xff] %v3070
      %s3075 = scalar_lea.vmem [#allocation1], 16
      %3076 = vst [vmem:[%s3075] ss:$2 sm:$0xff] %v3071
      %v3077 = vld.sshfl [vmem:[#allocation1] sm:$0xff pattern:$0x75316420]
      %v3078 = vld.sshfl [vmem:[#allocation1 + $0x8] sm:$0xff pattern:$0x75316420]
      %v3079 = vld.sshfl [vmem:[#allocation1 + $0x10] sm:$0xff pattern:$0x75316420]
      %3080 = vrot.lane.b32.xlu0 %v3077, 47
      %v3081 = vpop.permute.xlu0 %3080
      %3082 = vrot.lane.b32.xlu0 %v3078, 47
      %v3083 = vpop.permute.xlu0 %3082
      %3084 = vrot.lane.b32.xlu0 %v3079, 47
      %v3085 = vpop.permute.xlu0 %3084
      %v3086 = vsel %vm829, %v3081, %v3083
      %v3087 = vsel %vm829, %v3083, %v3085
      %v3090 = vsel %vm305, %v3086, 0.0
      %v3091 = vsel %vm306, %v3087, 0.0
      %3092 = vst [vmem:[#allocation3 + $0x90] sm:$0xf] %v3090
      %3093 = vst [vmem:[#allocation3 + $0x98] sm:$0xf] %v3091
      %v3094 = vld [vmem:[#allocation2] sm:$0xff]
      %v3095 = vld [vmem:[#allocation2 + $0x8] sm:$0xf]
      %3098 = vst [vmem:[#allocation1] ss:$2 sm:$0xff] %v3094
      %s3099 = scalar_lea.vmem [#allocation1], 16
      %3100 = vst [vmem:[%s3099] ss:$2 sm:$0xff] %v3095
      %v3101 = vld.sshfl [vmem:[#allocation1] sm:$0xff pattern:$0x75316420]
      %v3102 = vld.sshfl [vmem:[#allocation1 + $0x8] sm:$0xff pattern:$0x75316420]
      %v3103 = vld.sshfl [vmem:[#allocation1 + $0x10] sm:$0xff pattern:$0x75316420]
      %3104 = vrot.lane.b32.xlu0 %v3101, 46
      %v3105 = vpop.permute.xlu0 %3104
      %3106 = vrot.lane.b32.xlu0 %v3102, 46
      %v3107 = vpop.permute.xlu0 %3106
      %3108 = vrot.lane.b32.xlu0 %v3103, 46
      %v3109 = vpop.permute.xlu0 %3108
      %v3110 = vsel %vm854, %v3105, %v3107
      %v3111 = vsel %vm854, %v3107, %v3109
      %v3114 = vsel %vm313, %v3110, 0.0
      %v3115 = vsel %vm314, %v3111, 0.0
      %v3118 = vrot.slane %v3114, 4
      %v3119 = vrot.slane %v3115, 4
      %3122 = vst [vmem:[#allocation3 + $0x90] sm:$0xf0] %v3118
      %3123 = vst [vmem:[#allocation3 + $0x98] sm:$0xf0] %v3119
      %v3124 = vld [vmem:[#allocation2] sm:$0xff]
      %v3125 = vld [vmem:[#allocation2 + $0x8] sm:$0xf]
      %3128 = vst [vmem:[#allocation1] ss:$2 sm:$0xff] %v3124
      %s3129 = scalar_lea.vmem [#allocation1], 16
      %3130 = vst [vmem:[%s3129] ss:$2 sm:$0xff] %v3125
      %v3131 = vld.sshfl [vmem:[#allocation1] sm:$0xff pattern:$0x75316420]
      %v3132 = vld.sshfl [vmem:[#allocation1 + $0x8] sm:$0xff pattern:$0x75316420]
      %v3133 = vld.sshfl [vmem:[#allocation1 + $0x10] sm:$0xff pattern:$0x75316420]
      %3134 = vrot.lane.b32.xlu0 %v3131, 34
      %v3135 = vpop.permute.xlu0 %3134
      %3136 = vrot.lane.b32.xlu0 %v3132, 34
      %v3137 = vpop.permute.xlu0 %3136
      %3138 = vrot.lane.b32.xlu0 %v3133, 34
      %v3139 = vpop.permute.xlu0 %3138
      %v3140 = vsel %vm885, %v3135, %v3137
      %v3141 = vsel %vm885, %v3137, %v3139
      %v3144 = vsel %vm289, %v3140, 0.0
      %v3145 = vsel %vm290, %v3141, 0.0
      %3146 = vst [vmem:[#allocation3 + $0xa0] sm:$0xf] %v3144
      %3147 = vst [vmem:[#allocation3 + $0xa8] sm:$0xf] %v3145
      %v3148 = vld [vmem:[#allocation2] sm:$0xff]
      %v3149 = vld [vmem:[#allocation2 + $0x8] sm:$0xf]
      %3152 = vst [vmem:[#allocation1] ss:$2 sm:$0xff] %v3148
      %s3153 = scalar_lea.vmem [#allocation1], 16
      %3154 = vst [vmem:[%s3153] ss:$2 sm:$0xff] %v3149
      %v3155 = vld.sshfl [vmem:[#allocation1] sm:$0xff pattern:$0x75316420]
      %v3156 = vld.sshfl [vmem:[#allocation1 + $0x8] sm:$0xff pattern:$0x75316420]
      %v3157 = vld.sshfl [vmem:[#allocation1 + $0x10] sm:$0xff pattern:$0x75316420]
      %3158 = vrot.lane.b32.xlu0 %v3155, 33
      %v3159 = vpop.permute.xlu0 %3158
      %3160 = vrot.lane.b32.xlu0 %v3156, 33
      %v3161 = vpop.permute.xlu0 %3160
      %3162 = vrot.lane.b32.xlu0 %v3157, 33
      %v3163 = vpop.permute.xlu0 %3162
      %v3164 = vsel %vm910, %v3159, %v3161
      %v3165 = vsel %vm910, %v3161, %v3163
      %v3168 = vsel %vm297, %v3164, 0.0
      %v3169 = vsel %vm298, %v3165, 0.0
      %v3172 = vrot.slane %v3168, 4
      %v3173 = vrot.slane %v3169, 4
      %3176 = vst [vmem:[#allocation3 + $0xa0] sm:$0xf0] %v3172
      %3177 = vst [vmem:[#allocation3 + $0xa8] sm:$0xf0] %v3173
      %v3178 = vld [vmem:[#allocation2] sm:$0xff]
      %v3179 = vld [vmem:[#allocation2 + $0x8] sm:$0xf]
      %3182 = vst [vmem:[#allocation1] ss:$2 sm:$0xff] %v3178
      %s3183 = scalar_lea.vmem [#allocation1], 16
      %3184 = vst [vmem:[%s3183] ss:$2 sm:$0xff] %v3179
      %v3185 = vld.sshfl [vmem:[#allocation1] sm:$0xff pattern:$0x75316420]
      %v3186 = vld.sshfl [vmem:[#allocation1 + $0x8] sm:$0xff pattern:$0x75316420]
      %v3187 = vld.sshfl [vmem:[#allocation1 + $0x10] sm:$0xff pattern:$0x75316420]
      %3188 = vrot.lane.b32.xlu0 %v3185, 32
      %v3189 = vpop.permute.xlu0 %3188
      %3190 = vrot.lane.b32.xlu0 %v3186, 32
      %v3191 = vpop.permute.xlu0 %3190
      %3192 = vrot.lane.b32.xlu0 %v3187, 32
      %v3193 = vpop.permute.xlu0 %3192
      %v3194 = vsel %vm941, %v3189, %v3191
      %v3195 = vsel %vm941, %v3191, %v3193
      %3198 = vst [vmem:[#allocation3 + $0xb0] sm:$0xf] %v3194
      %3199 = vst [vmem:[#allocation3 + $0xb8] sm:$0xf] %v3195
      %v3200 = vld [vmem:[#allocation2] sm:$0xff]
      %v3201 = vld [vmem:[#allocation2 + $0x8] sm:$0xf]
      %3204 = vst [vmem:[#allocation1] ss:$2 sm:$0xff] %v3200
      %s3205 = scalar_lea.vmem [#allocation1], 16
      %3206 = vst [vmem:[%s3205] ss:$2 sm:$0xff] %v3201
      %v3207 = vld.sshfl [vmem:[#allocation1] sm:$0xff pattern:$0x75316420]
      %v3208 = vld.sshfl [vmem:[#allocation1 + $0x8] sm:$0xff pattern:$0x75316420]
      %v3209 = vld.sshfl [vmem:[#allocation1 + $0x10] sm:$0xff pattern:$0x75316420]
      %3210 = vrot.lane.b32.xlu0 %v3207, 31
      %v3211 = vpop.permute.xlu0 %3210
      %3212 = vrot.lane.b32.xlu0 %v3208, 31
      %v3213 = vpop.permute.xlu0 %3212
      %3214 = vrot.lane.b32.xlu0 %v3209, 31
      %v3215 = vpop.permute.xlu0 %3214
      %v3216 = vsel %vm964, %v3211, %v3213
      %v3217 = vsel %vm964, %v3213, %v3215
      %v3220 = vsel %vm305, %v3216, 0.0
      %v3221 = vsel %vm306, %v3217, 0.0
      %v3224 = vrot.slane %v3220, 4
      %v3225 = vrot.slane %v3221, 4
      %3228 = vst [vmem:[#allocation3 + $0xb0] sm:$0xf0] %v3224
      %3229 = vst [vmem:[#allocation3 + $0xb8] sm:$0xf0] %v3225
      %v3230 = vld [vmem:[#allocation2] sm:$0xff]
      %v3231 = vld [vmem:[#allocation2 + $0x8] sm:$0xf]
      %3234 = vst [vmem:[#allocation1] ss:$2 sm:$0xff] %v3230
      %s3235 = scalar_lea.vmem [#allocation1], 16
      %3236 = vst [vmem:[%s3235] ss:$2 sm:$0xff] %v3231
      %v3237 = vld.sshfl [vmem:[#allocation1] sm:$0xff pattern:$0x75316420]
      %v3238 = vld.sshfl [vmem:[#allocation1 + $0x8] sm:$0xff pattern:$0x75316420]
      %v3239 = vld.sshfl [vmem:[#allocation1 + $0x10] sm:$0xff pattern:$0x75316420]
      %3240 = vrot.lane.b32.xlu0 %v3237, 30
      %v3241 = vpop.permute.xlu0 %3240
      %3242 = vrot.lane.b32.xlu0 %v3238, 30
      %v3243 = vpop.permute.xlu0 %3242
      %3244 = vrot.lane.b32.xlu0 %v3239, 30
      %v3245 = vpop.permute.xlu0 %3244
      %v3246 = vsel %vm995, %v3241, %v3243
      %v3247 = vsel %vm995, %v3243, %v3245
      %v3250 = vsel %vm313, %v3246, 0.0
      %v3251 = vsel %vm314, %v3247, 0.0
      %3252 = vst [vmem:[#allocation3 + $0xc0] sm:$0xf] %v3250
      %3253 = vst [vmem:[#allocation3 + $0xc8] sm:$0xf] %v3251
      %s3254 = scalar_lea.vmem %s3, 4
      %v3255 = vld [vmem:[%s3254] sm:$0xf]
      %v3256 = vld [vmem:[#allocation3] sm:$0xff]
      %v3257 = vld [vmem:[#allocation3 + $0x8] sm:$0xff]
      %v3258 = vld [vmem:[#allocation3 + $0x10] sm:$0xff]
      %v3259 = vld [vmem:[#allocation3 + $0x18] sm:$0xff]
      %v3260 = vld [vmem:[#allocation3 + $0x20] sm:$0xff]
      %v3261 = vld [vmem:[#allocation3 + $0x28] sm:$0xff]
      %v3262 = vld [vmem:[#allocation3 + $0x30] sm:$0xff]
      %v3263 = vld [vmem:[#allocation3 + $0x38] sm:$0xff]
      %v3264 = vld [vmem:[#allocation3 + $0x40] sm:$0xff]
      %v3265 = vld [vmem:[#allocation3 + $0x48] sm:$0xff]
      %v3266 = vld [vmem:[#allocation3 + $0x50] sm:$0xff]
      %v3267 = vld [vmem:[#allocation3 + $0x58] sm:$0xff]
      %v3268 = vld [vmem:[#allocation3 + $0x60] sm:$0xff]
      %v3269 = vld [vmem:[#allocation3 + $0x68] sm:$0xff]
      %v3270 = vld [vmem:[#allocation3 + $0x70] sm:$0xff]
      %v3271 = vld [vmem:[#allocation3 + $0x78] sm:$0xff]
      %v3272 = vld [vmem:[#allocation3 + $0x80] sm:$0xff]
      %v3273 = vld [vmem:[#allocation3 + $0x88] sm:$0xff]
      %v3274 = vld [vmem:[#allocation3 + $0x90] sm:$0xff]
      %v3275 = vld [vmem:[#allocation3 + $0x98] sm:$0xff]
      %v3276 = vld [vmem:[#allocation3 + $0xa0] sm:$0xff]
      %v3277 = vld [vmem:[#allocation3 + $0xa8] sm:$0xff]
      %v3278 = vld [vmem:[#allocation3 + $0xb0] sm:$0xff]
      %v3279 = vld [vmem:[#allocation3 + $0xb8] sm:$0xff]
      %v3280 = vld [vmem:[#allocation3 + $0xc0] sm:$0xf]
      %v3281 = vld [vmem:[#allocation3 + $0xc8] sm:$0xf]
      %s3282 = scalar_lea.vmem %s4, 4
      %v3283 = vld [vmem:[%s3282] sm:$0xf]
      %3285 = vset.pattern.permute.xlu0 0
      %3286 = vperm.xlu0 %3285, %v3283
      %v3287 = vpop.permute.xlu0 %3286
      %v3290 = vsel %vm1037, %v3255, 0
      %v3293 = vsel %vm1041, %v3280, 0
      %v3296 = vsel %vm1041, %v3281, 0
      %3298 = vmatpush.msra.mxu0 0.0
      %3299 = vmatpush.msra.mxu0 0.0
      %3300 = vmatpush.msra.mxu0 0.0
      %3301 = vmatpush.msra.mxu0 %v3293
      %3302 = vmatpush.msra.mxu0 %v3278
      %3303 = vmatpush.msra.mxu0 %v3276
      %3304 = vmatpush.msra.mxu0 %v3274
      %3305 = vmatpush.msra.mxu0 %v3272
      %3306 = vmatpush.msra.mxu0 %v3270
      %3307 = vmatpush.msra.mxu0 %v3268
      %3308 = vmatpush.msra.mxu0 %v3266
      %3309 = vmatpush.msra.mxu0 %v3264
      %3310 = vmatpush.msra.mxu0 %v3262
      %3311 = vmatpush.msra.mxu0 %v3260
      %3312 = vmatpush.msra.mxu0 %v3258
      %3313 = vmatpush.msra.mxu0 %v3256
      %3314 = vmatmul.f32.gmra.mxu0 %v3290
      %v3315 = vpop.f32.mrf.mxu0
      %v3316 = vadd.f32 %v3287, %v3315
      %3317 = vdwg.mxu0
      %3318 = vmatpush.msra.mxu0 0.0
      %3319 = vmatpush.msra.mxu0 0.0
      %3320 = vmatpush.msra.mxu0 0.0
      %3321 = vmatpush.msra.mxu0 %v3296
      %3322 = vmatpush.msra.mxu0 %v3279
      %3323 = vmatpush.msra.mxu0 %v3277
      %3324 = vmatpush.msra.mxu0 %v3275
      %3325 = vmatpush.msra.mxu0 %v3273
      %3326 = vmatpush.msra.mxu0 %v3271
      %3327 = vmatpush.msra.mxu0 %v3269
      %3328 = vmatpush.msra.mxu0 %v3267
      %3329 = vmatpush.msra.mxu0 %v3265
      %3330 = vmatpush.msra.mxu0 %v3263
      %3331 = vmatpush.msra.mxu0 %v3261
      %3332 = vmatpush.msra.mxu0 %v3259
      %3333 = vmatpush.msra.mxu0 %v3257
      %3334 = vmatmul.f32.gmra.mxu0 %v3290
      %v3335 = vpop.f32.mrf.mxu0
      %v3336 = vadd.f32 %v3287, %v3335
      %3337 = vdwg.mxu0
      %v3340 = vrot.slane %v3336, 4
      %v3341 = vsel %vm1041, %v3316, %v3340
      %v3343 = vadd.f32 %v1842, %v3341
      %v3344 = vmax.f32 %v3343, 0.0
      %v3345 = vld [vmem:[%s5] sm:$0xf]
      %3347 = vset.pattern.permute.xlu0 0
      %3348 = vperm.xlu0 %3347, %v3345
      %v3349 = vpop.permute.xlu0 %3348
      %v3351 = vunpack.c.l.s4 839922192
      %v3352 = vunpack.c.0.s8 %v3351
      %v3353 = vperm.slane %v3349, %v3352
      %v3355 = vsub.f32 %v3344, %v3353
      %v3356 = vmax.f32 %v3355, 0.0
      %3357 = vst [vmem:[%s251] sm:$0xff] %v3356
      %p3358 = scmp.lt.s32.totalorder %s17, 1
      %s3359 = scalar_select %p3358, %s17, 1
      %s3360 = smul.addr %s3359, 2
      %s3361 = smul.addr %s3360, 4
      %s3362 = scalar_lea.vmem %s6, %s3361
      // Predicated region
      $region45: #{mnet_forward.1} parent=43 // pred_check
        %p3363 = pneg %p166
      $region46: #{mnet_forward.1} parent=43 // pred_check_branch
        %3365 = sbr.rel (%p3363) target = $region48
      $region47: #{mnet_forward.1} parent=43 // pred_region
        _
      $region48: #{mnet_forward.1} parent=43 // pred_fallthru
        _
    $region44: #{mnet_forward.1} parent=5 // pred_fallthru
      _
    %p3366 = scmp.le.s32.totalorder 2, %s12
    // Predicated region
    $region49: #{mnet_forward.1} parent=5 // pred_check
      %p3367 = pneg %p3366
    $region50: #{mnet_forward.1} parent=5 // pred_check_branch
      %3369 = sbr.rel (%p3367) target = $region52
    $region51: #{mnet_forward.1} parent=5 // pred_region
      %s3370 = ssub.s32 %s12, 2
      // Predicated region
      $region53: #{mnet_forward.1} parent=51 // pred_check
        %p3371 = pneg %p172
      $region54: #{mnet_forward.1} parent=51 // pred_check_branch
        %3373 = sbr.rel (%p3371) target = $region56
      $region55: #{mnet_forward.1} parent=51 // pred_region
        %p3374 = scmp.lt.s32.totalorder %s18, 1
        %s3375 = scalar_select %p3374, %s18, 1
        %s3376 = smul.addr %s3375, 2
        %s3377 = smul.addr %s3376, 4
        %s3378 = scalar_lea.vmem %s6, %s3377
      $region56: #{mnet_forward.1} parent=51 // pred_fallthru
        _
    $region52: #{mnet_forward.1} parent=5 // pred_fallthru
      _
  $region6: #{mnet_forward.1} parent=0 // loop_footer
    %s16 = sadd.s32 1, %s12
  $region7: #{mnet_forward.1} parent=0 // loop_footer_branch
    %11 = sbr.rel target = $region3
  $region8: #{mnet_forward.1} parent=0 // loop_exit
    _

</llo_original>
